<compile_context>
chip_gen: v7x
topology: tpu7x:2x2x1
jax: 0.10.0
libtpu: 0.0.40
codegen_flags: <defaults>
</compile_context>

<pallas_src>
import functools
import math

import jax
import jax.numpy as jnp
import numpy as np
from jax.experimental import pallas as pl
from jax.experimental.pallas import tpu as pltpu


def _gelu(x):
    # BERT's exact erf-based GELU (matches the PyTorch reference `gelu`).
    return x * 0.5 * (1.0 + jax.lax.erf(x / math.sqrt(2.0)))


def bert_selfatt_kernel(
    x_ref, mask_ref,
    wq_ref, bq_ref, wk_ref, bk_ref, wv_ref, bv_ref,
    wo_ref, bo_ref, gamma_ref, beta_ref,
    o_ref,
    k_scratch, v_scratch,
    *, num_heads, q_tile,
):
    f32 = jnp.float32
    bf16 = jnp.bfloat16
    nh = num_heads

    S = x_ref.shape[1]
    H = x_ref.shape[2]
    d = H // nh
    qi = pl.program_id(1)

    # ---- K / V projections: full-width (S,H)@(H,H) matmuls, computed once per
    #      batch row (qi == 0) and cached head-split in persistent VMEM scratch.
    @pl.when(qi == 0)
    def _():
        x_b = x_ref[0].astype(bf16)                                            # (S, H)
        k_full = jnp.dot(x_b, wk_ref[...], preferred_element_type=f32) + bk_ref[...]
        v_full = jnp.dot(x_b, wv_ref[...], preferred_element_type=f32) + bv_ref[...]
        k_b = k_full.astype(bf16)
        v_b = v_full.astype(bf16)
        for h in range(nh):                      # head split: cheap static lane slices
            k_scratch[h] = k_b[:, h * d:(h + 1) * d]
            v_scratch[h] = v_b[:, h * d:(h + 1) * d]

    # ---- residual / query rows for this q-tile ----
    if q_tile == S:
        x_res = x_ref[0]                                                       # (tq, H) f32
    else:
        x_res = x_ref[0, pl.ds(qi * q_tile, q_tile), :]
    xq_b = x_res.astype(bf16)

    # ---- Q projection: full-width (tq,H)@(H,H); 1/sqrt(d) folded into Wq/bq ----
    q_full = jnp.dot(xq_b, wq_ref[...], preferred_element_type=f32) + bq_ref[...]
    q_b = q_full.astype(bf16)
    q_heads = jnp.stack([q_b[:, h * d:(h + 1) * d] for h in range(nh)], axis=0)  # (nh, tq, d)

    k_heads = k_scratch[...]                                                   # (nh, S, d) bf16
    v_heads = v_scratch[...]

    # ---- scaled dot-product attention, head-batched dot_generals ----
    scores = jnp.einsum("hqd,hkd->hqk", q_heads, k_heads,
                        preferred_element_type=f32)                            # (nh, tq, S)
    scores = scores + mask_ref[...]                                            # (1,1,S) additive mask

    m = jnp.max(scores, axis=-1, keepdims=True)
    e = jnp.exp(scores - m)                                                    # f32 exp (safe on v5e too)
    denom = jnp.sum(e, axis=-1, keepdims=True)
    probs = (e * pl.reciprocal(denom, approx=True)).astype(bf16)               # bf16 immediately
    # TODO(synk): attention-probs dropout omitted (eval mode / p == 0 => identity).

    ctx = jnp.einsum("hqk,hkd->hqd", probs, v_heads,
                     preferred_element_type=f32)                               # (nh, tq, d)

    # ---- output dense: concat heads -> lane-dense (tq, H), ONE full-depth matmul ----
    ctx_cat = jnp.concatenate([ctx[h] for h in range(nh)], axis=-1).astype(bf16)
    out = jnp.dot(ctx_cat, wo_ref[...], preferred_element_type=f32) + bo_ref[...]

    # ---- residual + LayerNorm(eps=1e-12) + erf-GELU, all f32 ----
    res = out + x_res
    mu = jnp.mean(res, axis=-1, keepdims=True)
    cen = res - mu
    var = jnp.mean(cen * cen, axis=-1, keepdims=True)
    normed = cen * jax.lax.rsqrt(var + 1e-12) * gamma_ref[...] + beta_ref[...]
    o_ref[0] = _gelu(normed).astype(o_ref.dtype)


def bert_selfatt_layer(x, attention_mask, params, *, num_heads, q_tile=None):
    """x: (B, S, H) f32; attention_mask: (B, 1, S) f32 additive mask.

    params follow the PyTorch convention: W[out, in], b[1, out].
    """
    B, S, H = x.shape
    assert H % num_heads == 0
    d = H // num_heads

    # Physical VMEM (v5e/v6e: 128 MiB, v7x: 64 MiB) drives the q-tile size and the
    # scoped-VMEM limit.
    try:
        vmem_cap = int(pltpu.get_tpu_info().vmem_capacity_bytes)
        if vmem_cap <= 0:
            vmem_cap = 128 * 1024 * 1024
    except Exception:
        vmem_cap = 128 * 1024 * 1024

    if q_tile is None:
        q_tile = S
        if vmem_cap <= 64 * 1024 * 1024 and S > 256:     # v7x-class: keep scores small
            for t in (256, 128, 64, 32, 16, 8):
                if S % t == 0:
                    q_tile = t
                    break
    assert S % q_tile == 0, "q_tile must divide S"
    num_q = S // q_tile

    f32, bf16 = jnp.float32, jnp.bfloat16
    scale = 1.0 / math.sqrt(d)

    # Host-side layout: torch Linear W[out, in] -> "x @ W" orientation (transpose),
    # bf16 weights, f32 biases.  Output columns are already head-major, so no
    # per-head weight splitting is needed; 1/sqrt(d) is folded into Wq / bq.
    wq = (params["wq"].T * scale).astype(bf16)
    wk = params["wk"].T.astype(bf16)
    wv = params["wv"].T.astype(bf16)
    wo = params["wo"].T.astype(bf16)
    bq = (params["bq"] * scale).astype(f32)
    bk = params["bk"].astype(f32)
    bv = params["bv"].astype(f32)
    bo = params["bo"].astype(f32)
    gamma = params["ln_gamma"].astype(f32)
    beta = params["ln_beta"].astype(f32)

    kernel = functools.partial(bert_selfatt_kernel, num_heads=num_heads, q_tile=q_tile)

    # K/V are no longer recomputed per q-tile, so the FLOP count is exact.
    flops = int(B * (8 * S * H * H + 4 * num_heads * S * S * d))
    transcendentals = int(B * (num_heads * S * S + S * H))
    bytes_accessed = int(
        4 * 2 * H * H            # 4 bf16 (H,H) weight matrices
        + 4 * 6 * H              # f32 biases + LayerNorm params
        + 4 * B * S * H * 2      # x read once per batch row + output write
        + 4 * B * S              # mask
    )
    vmem_limit = max(int(min(0.6 * vmem_cap, 100 * 1024 * 1024)), 32 * 1024 * 1024)

    def build(single_buffer_consts):
        const_kw = {"pipeline_mode": pl.Buffered(1)} if single_buffer_consts else {}
        w_spec = pl.BlockSpec((H, H), lambda b, qi: (0, 0), **const_kw)
        vec_spec = pl.BlockSpec((1, H), lambda b, qi: (0, 0), **const_kw)
        return pl.pallas_call(
            kernel,
            out_shape=jax.ShapeDtypeStruct((B, S, H), x.dtype),
            grid_spec=pltpu.PrefetchScalarGridSpec(
                num_scalar_prefetch=0,
                grid=(B, num_q),
                in_specs=[
                    pl.BlockSpec((1, S, H), lambda b, qi: (b, 0, 0)),   # x: K/V source + query rows
                    pl.BlockSpec((1, 1, S), lambda b, qi: (b, 0, 0)),   # additive attention mask
                    w_spec, vec_spec,                                   # Wq (pre-scaled), bq
                    w_spec, vec_spec,                                   # Wk, bk
                    w_spec, vec_spec,                                   # Wv, bv
                    w_spec, vec_spec,                                   # Wo, bo
                    vec_spec, vec_spec,                                 # LN gamma, beta
                ],
                out_specs=pl.BlockSpec((1, q_tile, H), lambda b, qi: (b, qi, 0)),
                scratch_shapes=[
                    pltpu.VMEM((num_heads, S, d), bf16),   # K cache (head-split, per batch row)
                    pltpu.VMEM((num_heads, S, d), bf16),   # V cache
                ],
            ),
            compiler_params=pltpu.CompilerParams(
                # qi carries the K/V scratch cache -> "arbitrary"; batch rows stay
                # "parallel" so megacore / dual-TC chips can split them.
                dimension_semantics=("parallel", "arbitrary"),
                vmem_limit_bytes=vmem_limit,
            ),
            cost_estimate=pl.CostEstimate(
                flops=flops, transcendentals=transcendentals,
                bytes_accessed=bytes_accessed),
        )

    args = (x, attention_mask, wq, bq, wk, bk, wv, bv, wo, bo, gamma, beta)
    try:
        return build(single_buffer_consts=True)(*args)
    except Exception:
        # Fallback for JAX builds without BlockSpec(pipeline_mode=...) support.
        return build(single_buffer_consts=False)(*args)


def _reference(x, mask, params, num_heads):
    """Pure-JAX reference mirroring the PyTorch module (eval mode, f32)."""
    B, S, H = x.shape
    d = H // num_heads

    def lin(a, w, b):
        return jnp.einsum("bsh,oh->bso", a, w) + b[0]

    q = lin(x, params["wq"], params["bq"]).reshape(B, S, num_heads, d).transpose(0, 2, 1, 3)
    k = lin(x, params["wk"], params["bk"]).reshape(B, S, num_heads, d).transpose(0, 2, 1, 3)
    v = lin(x, params["wv"], params["bv"]).reshape(B, S, num_heads, d).transpose(0, 2, 1, 3)

    scores = jnp.einsum("bhqd,bhkd->bhqk", q, k) / math.sqrt(d)
    scores = scores + mask[:, None, :, :]          # (B,1,S) -> (B,1,1,S)
    probs = jax.nn.softmax(scores, axis=-1)
    ctx = jnp.einsum("bhqk,bhkd->bhqd", probs, v)
    ctx = ctx.transpose(0, 2, 1, 3).reshape(B, S, H)

    out = lin(ctx, params["wo"], params["bo"])
    res = out + x
    mean = jnp.mean(res, -1, keepdims=True)
    var = jnp.mean((res - mean) ** 2, -1, keepdims=True)
    normed = (res - mean) / jnp.sqrt(var + 1e-12) * params["ln_gamma"][0] + params["ln_beta"][0]
    return normed * 0.5 * (1.0 + jax.lax.erf(normed / math.sqrt(2.0)))


if __name__ == "__main__":
    B, S, H, NUM_HEADS = 2, 8, 32, 4

    key = jax.random.PRNGKey(0)
    keys = jax.random.split(key, 8)

    scale = 0.05
    params = {
        "wq": scale * jax.random.normal(keys[0], (H, H), jnp.float32),
        "bq": scale * jax.random.normal(keys[1], (1, H), jnp.float32),
        "wk": scale * jax.random.normal(keys[2], (H, H), jnp.float32),
        "bk": scale * jax.random.normal(keys[3], (1, H), jnp.float32),
        "wv": scale * jax.random.normal(keys[4], (H, H), jnp.float32),
        "bv": scale * jax.random.normal(keys[5], (1, H), jnp.float32),
        "wo": scale * jax.random.normal(keys[6], (H, H), jnp.float32),
        "bo": jnp.zeros((1, H), jnp.float32),
        "ln_gamma": jnp.ones((1, H), jnp.float32),
        "ln_beta": jnp.zeros((1, H), jnp.float32),
    }

    xkey, mkey = jax.random.split(keys[7])
    x = jax.random.normal(xkey, (B, S, H), jnp.float32)
    # Additive attention mask: 0 for attended positions, -10000 for masked ones.
    keep = (jax.random.uniform(mkey, (B, 1, S)) > 0.2).astype(jnp.float32)
    attention_mask = (1.0 - keep) * -10000.0

    y = bert_selfatt_layer(x, attention_mask, params, num_heads=NUM_HEADS)
    y = jax.block_until_ready(y)

    y_ref = _reference(x, attention_mask, params, NUM_HEADS)
    # bf16 MXU operands + approx reciprocal -> loosen tolerance vs. pure-f32 reference.
    np.testing.assert_allclose(np.asarray(y), np.asarray(y_ref), rtol=2e-2, atol=2e-2)

    print("KERNEL_OK")
</pallas_src>

<mosaic_0001>
module attributes {stable_mosaic.version = 11 : i64} {
  func.func @bert_selfatt_kernel(%arg0: i32, %arg1: i32, %arg2: memref<1x8x32xf32, #tpu.memory_space<vmem>>, %arg3: memref<1x1x8xf32, #tpu.memory_space<vmem>>, %arg4: memref<32x32xbf16, #tpu.memory_space<vmem>>, %arg5: memref<1x32xf32, #tpu.memory_space<vmem>>, %arg6: memref<32x32xbf16, #tpu.memory_space<vmem>>, %arg7: memref<1x32xf32, #tpu.memory_space<vmem>>, %arg8: memref<32x32xbf16, #tpu.memory_space<vmem>>, %arg9: memref<1x32xf32, #tpu.memory_space<vmem>>, %arg10: memref<32x32xbf16, #tpu.memory_space<vmem>>, %arg11: memref<1x32xf32, #tpu.memory_space<vmem>>, %arg12: memref<1x32xf32, #tpu.memory_space<vmem>>, %arg13: memref<1x32xf32, #tpu.memory_space<vmem>>, %arg14: memref<1x8x32xf32, #tpu.memory_space<vmem>>, %arg15: memref<4x8x8xbf16, #tpu.memory_space<vmem>>, %arg16: memref<4x8x8xbf16, #tpu.memory_space<vmem>>) attributes {dimension_semantics = [#tpu.dimension_semantics<parallel>, #tpu.dimension_semantics<arbitrary>], iteration_bounds = array<i64: 2, 1>, scalar_prefetch = 0 : i64, scratch_operands = 2 : i64, tpu.core_type = #tpu.core_type<tc>, window_params = [{transform_indices = @transform_0, window_bounds = array<i64: 1, 8, 32>}, {transform_indices = @transform_1, window_bounds = array<i64: 1, 1, 8>}, {pipeline_mode = #tpu.pipeline_mode<synchronous>, transform_indices = @transform_2, window_bounds = array<i64: 32, 32>}, {pipeline_mode = #tpu.pipeline_mode<synchronous>, transform_indices = @transform_3, window_bounds = array<i64: 1, 32>}, {pipeline_mode = #tpu.pipeline_mode<synchronous>, transform_indices = @transform_4, window_bounds = array<i64: 32, 32>}, {pipeline_mode = #tpu.pipeline_mode<synchronous>, transform_indices = @transform_5, window_bounds = array<i64: 1, 32>}, {pipeline_mode = #tpu.pipeline_mode<synchronous>, transform_indices = @transform_6, window_bounds = array<i64: 32, 32>}, {pipeline_mode = #tpu.pipeline_mode<synchronous>, transform_indices = @transform_7, window_bounds = array<i64: 1, 32>}, {pipeline_mode = #tpu.pipeline_mode<synchronous>, transform_indices = @transform_8, window_bounds = array<i64: 32, 32>}, {pipeline_mode = #tpu.pipeline_mode<synchronous>, transform_indices = @transform_9, window_bounds = array<i64: 1, 32>}, {pipeline_mode = #tpu.pipeline_mode<synchronous>, transform_indices = @transform_10, window_bounds = array<i64: 1, 32>}, {pipeline_mode = #tpu.pipeline_mode<synchronous>, transform_indices = @transform_11, window_bounds = array<i64: 1, 32>}, {transform_indices = @transform_12, window_bounds = array<i64: 1, 8, 32>}]} {
    %c0_i32 = arith.constant 0 : i32
    %0 = arith.cmpi eq, %arg1, %c0_i32 : i32
    %1 = arith.extui %0 : i1 to i32
    %c0_i32_0 = arith.constant 0 : i32
    %2 = arith.cmpi ne, %1, %c0_i32_0 : i32
    scf.if %2 {
      %c0_40 = arith.constant 0 : index
      %c0_41 = arith.constant 0 : index
      %c0_42 = arith.constant 0 : index
      %88 = vector.load %arg2[%c0_40, %c0_41, %c0_42] : memref<1x8x32xf32, #tpu.memory_space<vmem>>, vector<1x8x32xf32>
      %89 = vector.shape_cast %88 : vector<1x8x32xf32> to vector<8x32xf32>
      %90 = arith.truncf %89 : vector<8x32xf32> to vector<8x32xbf16>
      %c0_43 = arith.constant 0 : index
      %c0_44 = arith.constant 0 : index
      %91 = vector.load %arg6[%c0_43, %c0_44] : memref<32x32xbf16, #tpu.memory_space<vmem>>, vector<32x32xbf16>
      %cst_45 = arith.constant dense<0.000000e+00> : vector<8x32xf32>
      %92 = tpu.matmul %90, %91, %cst_45 {dimension_numbers = #tpu.dot_dimension_numbers<[1], [0], [0], [1], [0, 0, 1, 1], [], []>} : vector<8x32xbf16>, vector<32x32xbf16>, vector<8x32xf32> -> vector<8x32xf32>
      %c0_46 = arith.constant 0 : index
      %c0_47 = arith.constant 0 : index
      %93 = vector.load %arg7[%c0_46, %c0_47] : memref<1x32xf32, #tpu.memory_space<vmem>>, vector<1x32xf32>
      %94 = vector.broadcast %93 : vector<1x32xf32> to vector<8x32xf32>
      %95 = arith.addf %92, %94 : vector<8x32xf32>
      %c0_48 = arith.constant 0 : index
      %c0_49 = arith.constant 0 : index
      %96 = vector.load %arg8[%c0_48, %c0_49] : memref<32x32xbf16, #tpu.memory_space<vmem>>, vector<32x32xbf16>
      %cst_50 = arith.constant dense<0.000000e+00> : vector<8x32xf32>
      %97 = tpu.matmul %90, %96, %cst_50 {dimension_numbers = #tpu.dot_dimension_numbers<[1], [0], [0], [1], [0, 0, 1, 1], [], []>} : vector<8x32xbf16>, vector<32x32xbf16>, vector<8x32xf32> -> vector<8x32xf32>
      %c0_51 = arith.constant 0 : index
      %c0_52 = arith.constant 0 : index
      %98 = vector.load %arg9[%c0_51, %c0_52] : memref<1x32xf32, #tpu.memory_space<vmem>>, vector<1x32xf32>
      %99 = vector.broadcast %98 : vector<1x32xf32> to vector<8x32xf32>
      %100 = arith.addf %97, %99 : vector<8x32xf32>
      %101 = arith.truncf %95 : vector<8x32xf32> to vector<8x32xbf16>
      %102 = arith.truncf %100 : vector<8x32xf32> to vector<8x32xbf16>
      %103 = vector.extract_strided_slice %101 {offsets = [0, 0], sizes = [8, 8], strides = [1, 1]} : vector<8x32xbf16> to vector<8x8xbf16>
      %c0_53 = arith.constant 0 : index
      %c0_54 = arith.constant 0 : index
      %c0_55 = arith.constant 0 : index
      %104 = vector.load %arg15[%c0_53, %c0_54, %c0_55] : memref<4x8x8xbf16, #tpu.memory_space<vmem>>, vector<1x8x8xbf16>
      %105 = vector.shape_cast %104 : vector<1x8x8xbf16> to vector<8x8xbf16>
      %106 = vector.shape_cast %103 : vector<8x8xbf16> to vector<1x8x8xbf16>
      tpu.vector_store %arg15[%c0_53, %c0_54, %c0_55], %106 {strides = array<i32>} : memref<4x8x8xbf16, #tpu.memory_space<vmem>>, vector<1x8x8xbf16>,
      %107 = vector.extract_strided_slice %102 {offsets = [0, 0], sizes = [8, 8], strides = [1, 1]} : vector<8x32xbf16> to vector<8x8xbf16>
      %c0_56 = arith.constant 0 : index
      %c0_57 = arith.constant 0 : index
      %c0_58 = arith.constant 0 : index
      %108 = vector.load %arg16[%c0_56, %c0_57, %c0_58] : memref<4x8x8xbf16, #tpu.memory_space<vmem>>, vector<1x8x8xbf16>
      %109 = vector.shape_cast %108 : vector<1x8x8xbf16> to vector<8x8xbf16>
      %110 = vector.shape_cast %107 : vector<8x8xbf16> to vector<1x8x8xbf16>
      tpu.vector_store %arg16[%c0_56, %c0_57, %c0_58], %110 {strides = array<i32>} : memref<4x8x8xbf16, #tpu.memory_space<vmem>>, vector<1x8x8xbf16>,
      %111 = vector.extract_strided_slice %101 {offsets = [0, 8], sizes = [8, 8], strides = [1, 1]} : vector<8x32xbf16> to vector<8x8xbf16>
      %c1 = arith.constant 1 : index
      %c0_59 = arith.constant 0 : index
      %c0_60 = arith.constant 0 : index
      %112 = vector.load %arg15[%c1, %c0_59, %c0_60] : memref<4x8x8xbf16, #tpu.memory_space<vmem>>, vector<1x8x8xbf16>
      %113 = vector.shape_cast %112 : vector<1x8x8xbf16> to vector<8x8xbf16>
      %114 = vector.shape_cast %111 : vector<8x8xbf16> to vector<1x8x8xbf16>
      tpu.vector_store %arg15[%c1, %c0_59, %c0_60], %114 {strides = array<i32>} : memref<4x8x8xbf16, #tpu.memory_space<vmem>>, vector<1x8x8xbf16>,
      %115 = vector.extract_strided_slice %102 {offsets = [0, 8], sizes = [8, 8], strides = [1, 1]} : vector<8x32xbf16> to vector<8x8xbf16>
      %c1_61 = arith.constant 1 : index
      %c0_62 = arith.constant 0 : index
      %c0_63 = arith.constant 0 : index
      %116 = vector.load %arg16[%c1_61, %c0_62, %c0_63] : memref<4x8x8xbf16, #tpu.memory_space<vmem>>, vector<1x8x8xbf16>
      %117 = vector.shape_cast %116 : vector<1x8x8xbf16> to vector<8x8xbf16>
      %118 = vector.shape_cast %115 : vector<8x8xbf16> to vector<1x8x8xbf16>
      tpu.vector_store %arg16[%c1_61, %c0_62, %c0_63], %118 {strides = array<i32>} : memref<4x8x8xbf16, #tpu.memory_space<vmem>>, vector<1x8x8xbf16>,
      %119 = vector.extract_strided_slice %101 {offsets = [0, 16], sizes = [8, 8], strides = [1, 1]} : vector<8x32xbf16> to vector<8x8xbf16>
      %c2 = arith.constant 2 : index
      %c0_64 = arith.constant 0 : index
      %c0_65 = arith.constant 0 : index
      %120 = vector.load %arg15[%c2, %c0_64, %c0_65] : memref<4x8x8xbf16, #tpu.memory_space<vmem>>, vector<1x8x8xbf16>
      %121 = vector.shape_cast %120 : vector<1x8x8xbf16> to vector<8x8xbf16>
      %122 = vector.shape_cast %119 : vector<8x8xbf16> to vector<1x8x8xbf16>
      tpu.vector_store %arg15[%c2, %c0_64, %c0_65], %122 {strides = array<i32>} : memref<4x8x8xbf16, #tpu.memory_space<vmem>>, vector<1x8x8xbf16>,
      %123 = vector.extract_strided_slice %102 {offsets = [0, 16], sizes = [8, 8], strides = [1, 1]} : vector<8x32xbf16> to vector<8x8xbf16>
      %c2_66 = arith.constant 2 : index
      %c0_67 = arith.constant 0 : index
      %c0_68 = arith.constant 0 : index
      %124 = vector.load %arg16[%c2_66, %c0_67, %c0_68] : memref<4x8x8xbf16, #tpu.memory_space<vmem>>, vector<1x8x8xbf16>
      %125 = vector.shape_cast %124 : vector<1x8x8xbf16> to vector<8x8xbf16>
      %126 = vector.shape_cast %123 : vector<8x8xbf16> to vector<1x8x8xbf16>
      tpu.vector_store %arg16[%c2_66, %c0_67, %c0_68], %126 {strides = array<i32>} : memref<4x8x8xbf16, #tpu.memory_space<vmem>>, vector<1x8x8xbf16>,
      %127 = vector.extract_strided_slice %101 {offsets = [0, 24], sizes = [8, 8], strides = [1, 1]} : vector<8x32xbf16> to vector<8x8xbf16>
      %c3 = arith.constant 3 : index
      %c0_69 = arith.constant 0 : index
      %c0_70 = arith.constant 0 : index
      %128 = vector.load %arg15[%c3, %c0_69, %c0_70] : memref<4x8x8xbf16, #tpu.memory_space<vmem>>, vector<1x8x8xbf16>
      %129 = vector.shape_cast %128 : vector<1x8x8xbf16> to vector<8x8xbf16>
      %130 = vector.shape_cast %127 : vector<8x8xbf16> to vector<1x8x8xbf16>
      tpu.vector_store %arg15[%c3, %c0_69, %c0_70], %130 {strides = array<i32>} : memref<4x8x8xbf16, #tpu.memory_space<vmem>>, vector<1x8x8xbf16>,
      %131 = vector.extract_strided_slice %102 {offsets = [0, 24], sizes = [8, 8], strides = [1, 1]} : vector<8x32xbf16> to vector<8x8xbf16>
      %c3_71 = arith.constant 3 : index
      %c0_72 = arith.constant 0 : index
      %c0_73 = arith.constant 0 : index
      %132 = vector.load %arg16[%c3_71, %c0_72, %c0_73] : memref<4x8x8xbf16, #tpu.memory_space<vmem>>, vector<1x8x8xbf16>
      %133 = vector.shape_cast %132 : vector<1x8x8xbf16> to vector<8x8xbf16>
      %134 = vector.shape_cast %131 : vector<8x8xbf16> to vector<1x8x8xbf16>
      tpu.vector_store %arg16[%c3_71, %c0_72, %c0_73], %134 {strides = array<i32>} : memref<4x8x8xbf16, #tpu.memory_space<vmem>>, vector<1x8x8xbf16>,
    } else {
    }
    %c0 = arith.constant 0 : index
    %c0_1 = arith.constant 0 : index
    %c0_2 = arith.constant 0 : index
    %3 = vector.load %arg2[%c0, %c0_1, %c0_2] : memref<1x8x32xf32, #tpu.memory_space<vmem>>, vector<1x8x32xf32>
    %4 = vector.shape_cast %3 : vector<1x8x32xf32> to vector<8x32xf32>
    %5 = arith.truncf %4 : vector<8x32xf32> to vector<8x32xbf16>
    %c0_3 = arith.constant 0 : index
    %c0_4 = arith.constant 0 : index
    %6 = vector.load %arg4[%c0_3, %c0_4] : memref<32x32xbf16, #tpu.memory_space<vmem>>, vector<32x32xbf16>
    %cst = arith.constant dense<0.000000e+00> : vector<8x32xf32>
    %7 = tpu.matmul %5, %6, %cst {dimension_numbers = #tpu.dot_dimension_numbers<[1], [0], [0], [1], [0, 0, 1, 1], [], []>} : vector<8x32xbf16>, vector<32x32xbf16>, vector<8x32xf32> -> vector<8x32xf32>
    %c0_5 = arith.constant 0 : index
    %c0_6 = arith.constant 0 : index
    %8 = vector.load %arg5[%c0_5, %c0_6] : memref<1x32xf32, #tpu.memory_space<vmem>>, vector<1x32xf32>
    %9 = vector.broadcast %8 : vector<1x32xf32> to vector<8x32xf32>
    %10 = arith.addf %7, %9 : vector<8x32xf32>
    %11 = arith.truncf %10 : vector<8x32xf32> to vector<8x32xbf16>
    %12 = vector.extract_strided_slice %11 {offsets = [0, 0], sizes = [8, 8], strides = [1, 1]} : vector<8x32xbf16> to vector<8x8xbf16>
    %13 = vector.extract_strided_slice %11 {offsets = [0, 8], sizes = [8, 8], strides = [1, 1]} : vector<8x32xbf16> to vector<8x8xbf16>
    %14 = vector.extract_strided_slice %11 {offsets = [0, 16], sizes = [8, 8], strides = [1, 1]} : vector<8x32xbf16> to vector<8x8xbf16>
    %15 = vector.extract_strided_slice %11 {offsets = [0, 24], sizes = [8, 8], strides = [1, 1]} : vector<8x32xbf16> to vector<8x8xbf16>
    %16 = vector.shape_cast %12 : vector<8x8xbf16> to vector<1x8x8xbf16>
    %17 = vector.shape_cast %13 : vector<8x8xbf16> to vector<1x8x8xbf16>
    %18 = vector.shape_cast %14 : vector<8x8xbf16> to vector<1x8x8xbf16>
    %19 = vector.shape_cast %15 : vector<8x8xbf16> to vector<1x8x8xbf16>
    %20 = tpu.concatenate %16, %17, %18, %19 in 0 : vector<1x8x8xbf16>, vector<1x8x8xbf16>, vector<1x8x8xbf16>, vector<1x8x8xbf16> -> vector<4x8x8xbf16>
    %c0_7 = arith.constant 0 : index
    %c0_8 = arith.constant 0 : index
    %c0_9 = arith.constant 0 : index
    %21 = vector.load %arg15[%c0_7, %c0_8, %c0_9] : memref<4x8x8xbf16, #tpu.memory_space<vmem>>, vector<4x8x8xbf16>
    %c0_10 = arith.constant 0 : index
    %c0_11 = arith.constant 0 : index
    %c0_12 = arith.constant 0 : index
    %22 = vector.load %arg16[%c0_10, %c0_11, %c0_12] : memref<4x8x8xbf16, #tpu.memory_space<vmem>>, vector<4x8x8xbf16>
    "tpu.trace_start"() <{level = 10 : i32, message = "hqd,hkd->hqk"}> : () -> ()
    %cst_13 = arith.constant dense<0.000000e+00> : vector<4x8x8xf32>
    %23 = tpu.matmul %20, %21, %cst_13 {dimension_numbers = #tpu.dot_dimension_numbers<[2], [2], [1], [1], [0, 0, 0, 1, 1, 1], [0], [0]>} : vector<4x8x8xbf16>, vector<4x8x8xbf16>, vector<4x8x8xf32> -> vector<4x8x8xf32>
    "tpu.trace_stop"() : () -> ()
    %c0_14 = arith.constant 0 : index
    %c0_15 = arith.constant 0 : index
    %c0_16 = arith.constant 0 : index
    %24 = vector.load %arg3[%c0_14, %c0_15, %c0_16] : memref<1x1x8xf32, #tpu.memory_space<vmem>>, vector<1x1x8xf32>
    %25 = vector.broadcast %24 : vector<1x1x8xf32> to vector<4x8x8xf32>
    %26 = arith.addf %23, %25 : vector<4x8x8xf32>
    %cst_17 = arith.constant dense<0xFF800000> : vector<4x8xf32>
    %27 = vector.multi_reduction <maximumf>, %26, %cst_17 [2] : vector<4x8x8xf32> to vector<4x8xf32>
    %28 = vector.shape_cast %27 : vector<4x8xf32> to vector<4x8x1xf32>
    %29 = vector.broadcast %28 : vector<4x8x1xf32> to vector<4x8x8xf32>
    %30 = arith.subf %26, %29 : vector<4x8x8xf32>
    %31 = math.exp %30 : vector<4x8x8xf32>
    %cst_18 = arith.constant dense<0.000000e+00> : vector<4x8xf32>
    %32 = vector.multi_reduction <add>, %31, %cst_18 [2] : vector<4x8x8xf32> to vector<4x8xf32>
    %33 = vector.shape_cast %32 : vector<4x8xf32> to vector<4x8x1xf32>
    %34 = tpu.reciprocal %33 {approx = true} : vector<4x8x1xf32> -> vector<4x8x1xf32>
    %35 = vector.broadcast %34 : vector<4x8x1xf32> to vector<4x8x8xf32>
    %36 = arith.mulf %31, %35 : vector<4x8x8xf32>
    %37 = arith.truncf %36 : vector<4x8x8xf32> to vector<4x8x8xbf16>
    "tpu.trace_start"() <{level = 10 : i32, message = "hqk,hkd->hqd"}> : () -> ()
    %cst_19 = arith.constant dense<0.000000e+00> : vector<4x8x8xf32>
    %38 = tpu.matmul %37, %22, %cst_19 {dimension_numbers = #tpu.dot_dimension_numbers<[2], [1], [1], [2], [0, 0, 0, 1, 1, 2], [0], [0]>} : vector<4x8x8xbf16>, vector<4x8x8xbf16>, vector<4x8x8xf32> -> vector<4x8x8xf32>
    "tpu.trace_stop"() : () -> ()
    %39 = vector.extract_strided_slice %38 {offsets = [0, 0, 0], sizes = [1, 8, 8], strides = [1, 1, 1]} : vector<4x8x8xf32> to vector<1x8x8xf32>
    %40 = vector.shape_cast %39 : vector<1x8x8xf32> to vector<8x8xf32>
    %41 = vector.extract_strided_slice %38 {offsets = [1, 0, 0], sizes = [1, 8, 8], strides = [1, 1, 1]} : vector<4x8x8xf32> to vector<1x8x8xf32>
    %42 = vector.shape_cast %41 : vector<1x8x8xf32> to vector<8x8xf32>
    %43 = vector.extract_strided_slice %38 {offsets = [2, 0, 0], sizes = [1, 8, 8], strides = [1, 1, 1]} : vector<4x8x8xf32> to vector<1x8x8xf32>
    %44 = vector.shape_cast %43 : vector<1x8x8xf32> to vector<8x8xf32>
    %45 = vector.extract_strided_slice %38 {offsets = [3, 0, 0], sizes = [1, 8, 8], strides = [1, 1, 1]} : vector<4x8x8xf32> to vector<1x8x8xf32>
    %46 = vector.shape_cast %45 : vector<1x8x8xf32> to vector<8x8xf32>
    %47 = tpu.concatenate %40, %42, %44, %46 in 1 : vector<8x8xf32>, vector<8x8xf32>, vector<8x8xf32>, vector<8x8xf32> -> vector<8x32xf32>
    %48 = arith.truncf %47 : vector<8x32xf32> to vector<8x32xbf16>
    %c0_20 = arith.constant 0 : index
    %c0_21 = arith.constant 0 : index
    %49 = vector.load %arg10[%c0_20, %c0_21] : memref<32x32xbf16, #tpu.memory_space<vmem>>, vector<32x32xbf16>
    %cst_22 = arith.constant dense<0.000000e+00> : vector<8x32xf32>
    %50 = tpu.matmul %48, %49, %cst_22 {dimension_numbers = #tpu.dot_dimension_numbers<[1], [0], [0], [1], [0, 0, 1, 1], [], []>} : vector<8x32xbf16>, vector<32x32xbf16>, vector<8x32xf32> -> vector<8x32xf32>
    %c0_23 = arith.constant 0 : index
    %c0_24 = arith.constant 0 : index
    %51 = vector.load %arg11[%c0_23, %c0_24] : memref<1x32xf32, #tpu.memory_space<vmem>>, vector<1x32xf32>
    %52 = vector.broadcast %51 : vector<1x32xf32> to vector<8x32xf32>
    %53 = arith.addf %50, %52 : vector<8x32xf32>
    %54 = arith.addf %53, %4 : vector<8x32xf32>
    %cst_25 = arith.constant dense<0.000000e+00> : vector<8xf32>
    %55 = vector.multi_reduction <add>, %54, %cst_25 [1] : vector<8x32xf32> to vector<8xf32>
    %56 = vector.shape_cast %55 : vector<8xf32> to vector<8x1xf32>
    %cst_26 = arith.constant 3.200000e+01 : f32
    %57 = vector.broadcast %cst_26 : f32 to vector<8x1xf32>
    %58 = arith.divf %56, %57 : vector<8x1xf32>
    %59 = vector.broadcast %58 : vector<8x1xf32> to vector<8x32xf32>
    %60 = arith.subf %54, %59 : vector<8x32xf32>
    %61 = arith.mulf %60, %60 : vector<8x32xf32>
    %cst_27 = arith.constant dense<0.000000e+00> : vector<8xf32>
    %62 = vector.multi_reduction <add>, %61, %cst_27 [1] : vector<8x32xf32> to vector<8xf32>
    %63 = vector.shape_cast %62 : vector<8xf32> to vector<8x1xf32>
    %cst_28 = arith.constant 3.200000e+01 : f32
    %64 = vector.broadcast %cst_28 : f32 to vector<8x1xf32>
    %65 = arith.divf %63, %64 : vector<8x1xf32>
    %cst_29 = arith.constant 9.99999996E-13 : f32
    %66 = vector.broadcast %cst_29 : f32 to vector<8x1xf32>
    %67 = arith.addf %65, %66 : vector<8x1xf32>
    %68 = math.rsqrt %67 : vector<8x1xf32>
    %69 = vector.broadcast %68 : vector<8x1xf32> to vector<8x32xf32>
    %70 = arith.mulf %60, %69 : vector<8x32xf32>
    %c0_30 = arith.constant 0 : index
    %c0_31 = arith.constant 0 : index
    %71 = vector.load %arg12[%c0_30, %c0_31] : memref<1x32xf32, #tpu.memory_space<vmem>>, vector<1x32xf32>
    %72 = vector.broadcast %71 : vector<1x32xf32> to vector<8x32xf32>
    %73 = arith.mulf %70, %72 : vector<8x32xf32>
    %c0_32 = arith.constant 0 : index
    %c0_33 = arith.constant 0 : index
    %74 = vector.load %arg13[%c0_32, %c0_33] : memref<1x32xf32, #tpu.memory_space<vmem>>, vector<1x32xf32>
    %75 = vector.broadcast %74 : vector<1x32xf32> to vector<8x32xf32>
    %76 = arith.addf %73, %75 : vector<8x32xf32>
    %cst_34 = arith.constant 5.000000e-01 : f32
    %77 = vector.broadcast %cst_34 : f32 to vector<8x32xf32>
    %78 = arith.mulf %76, %77 : vector<8x32xf32>
    %cst_35 = arith.constant 1.41421354 : f32
    %79 = vector.broadcast %cst_35 : f32 to vector<8x32xf32>
    %80 = arith.divf %76, %79 : vector<8x32xf32>
    %81 = math.erf %80 : vector<8x32xf32>
    %cst_36 = arith.constant 1.000000e+00 : f32
    %82 = vector.broadcast %cst_36 : f32 to vector<8x32xf32>
    %83 = arith.addf %82, %81 : vector<8x32xf32>
    %84 = arith.mulf %78, %83 : vector<8x32xf32>
    %c0_37 = arith.constant 0 : index
    %c0_38 = arith.constant 0 : index
    %c0_39 = arith.constant 0 : index
    %85 = vector.load %arg14[%c0_37, %c0_38, %c0_39] : memref<1x8x32xf32, #tpu.memory_space<vmem>>, vector<1x8x32xf32>
    %86 = vector.shape_cast %85 : vector<1x8x32xf32> to vector<8x32xf32>
    %87 = vector.shape_cast %84 : vector<8x32xf32> to vector<1x8x32xf32>
    tpu.vector_store %arg14[%c0_37, %c0_38, %c0_39], %87 {strides = array<i32>} : memref<1x8x32xf32, #tpu.memory_space<vmem>>, vector<1x8x32xf32>,
    return
  }
  func.func @transform_0(%arg0: i32, %arg1: i32) -> (i32, i32, i32) {
    %c0_i32 = arith.constant 0 : i32
    %c0_i32_0 = arith.constant 0 : i32
    %c0_i32_1 = arith.constant 0 : i32
    return %arg0, %c0_i32, %c0_i32_0 : i32, i32, i32
  }
  func.func @transform_1(%arg0: i32, %arg1: i32) -> (i32, i32, i32) {
    %c0_i32 = arith.constant 0 : i32
    %c0_i32_0 = arith.constant 0 : i32
    %c0_i32_1 = arith.constant 0 : i32
    return %arg0, %c0_i32, %c0_i32_0 : i32, i32, i32
  }
  func.func @transform_2(%arg0: i32, %arg1: i32) -> (i32, i32) {
    %c0_i32 = arith.constant 0 : i32
    %c0_i32_0 = arith.constant 0 : i32
    %c0_i32_1 = arith.constant 0 : i32
    return %c0_i32, %c0_i32_0 : i32, i32
  }
  func.func @transform_3(%arg0: i32, %arg1: i32) -> (i32, i32) {
    %c0_i32 = arith.constant 0 : i32
    %c0_i32_0 = arith.constant 0 : i32
    %c0_i32_1 = arith.constant 0 : i32
    return %c0_i32, %c0_i32_0 : i32, i32
  }
  func.func @transform_4(%arg0: i32, %arg1: i32) -> (i32, i32) {
    %c0_i32 = arith.constant 0 : i32
    %c0_i32_0 = arith.constant 0 : i32
    %c0_i32_1 = arith.constant 0 : i32
    return %c0_i32, %c0_i32_0 : i32, i32
  }
  func.func @transform_5(%arg0: i32, %arg1: i32) -> (i32, i32) {
    %c0_i32 = arith.constant 0 : i32
    %c0_i32_0 = arith.constant 0 : i32
    %c0_i32_1 = arith.constant 0 : i32
    return %c0_i32, %c0_i32_0 : i32, i32
  }
  func.func @transform_6(%arg0: i32, %arg1: i32) -> (i32, i32) {
    %c0_i32 = arith.constant 0 : i32
    %c0_i32_0 = arith.constant 0 : i32
    %c0_i32_1 = arith.constant 0 : i32
    return %c0_i32, %c0_i32_0 : i32, i32
  }
  func.func @transform_7(%arg0: i32, %arg1: i32) -> (i32, i32) {
    %c0_i32 = arith.constant 0 : i32
    %c0_i32_0 = arith.constant 0 : i32
    %c0_i32_1 = arith.constant 0 : i32
    return %c0_i32, %c0_i32_0 : i32, i32
  }
  func.func @transform_8(%arg0: i32, %arg1: i32) -> (i32, i32) {
    %c0_i32 = arith.constant 0 : i32
    %c0_i32_0 = arith.constant 0 : i32
    %c0_i32_1 = arith.constant 0 : i32
    return %c0_i32, %c0_i32_0 : i32, i32
  }
  func.func @transform_9(%arg0: i32, %arg1: i32) -> (i32, i32) {
    %c0_i32 = arith.constant 0 : i32
    %c0_i32_0 = arith.constant 0 : i32
    %c0_i32_1 = arith.constant 0 : i32
    return %c0_i32, %c0_i32_0 : i32, i32
  }
  func.func @transform_10(%arg0: i32, %arg1: i32) -> (i32, i32) {
    %c0_i32 = arith.constant 0 : i32
    %c0_i32_0 = arith.constant 0 : i32
    %c0_i32_1 = arith.constant 0 : i32
    return %c0_i32, %c0_i32_0 : i32, i32
  }
  func.func @transform_11(%arg0: i32, %arg1: i32) -> (i32, i32) {
    %c0_i32 = arith.constant 0 : i32
    %c0_i32_0 = arith.constant 0 : i32
    %c0_i32_1 = arith.constant 0 : i32
    return %c0_i32, %c0_i32_0 : i32, i32
  }
  func.func @transform_12(%arg0: i32, %arg1: i32) -> (i32, i32, i32) {
    %c0_i32 = arith.constant 0 : i32
    %c0_i32_0 = arith.constant 0 : i32
    return %arg0, %arg1, %c0_i32 : i32, i32, i32
  }
}

module attributes {stable_mosaic.version = 11 : i64} {
  func.func @bert_selfatt_kernel(%arg0: i32, %arg1: i32, %arg2: memref<1x8x32xf32, #tpu.memory_space<vmem>>, %arg3: memref<1x1x8xf32, #tpu.memory_space<vmem>>, %arg4: memref<32x32xbf16, #tpu.memory_space<vmem>>, %arg5: memref<1x32xf32, #tpu.memory_space<vmem>>, %arg6: memref<32x32xbf16, #tpu.memory_space<vmem>>, %arg7: memref<1x32xf32, #tpu.memory_space<vmem>>, %arg8: memref<32x32xbf16, #tpu.memory_space<vmem>>, %arg9: memref<1x32xf32, #tpu.memory_space<vmem>>, %arg10: memref<32x32xbf16, #tpu.memory_space<vmem>>, %arg11: memref<1x32xf32, #tpu.memory_space<vmem>>, %arg12: memref<1x32xf32, #tpu.memory_space<vmem>>, %arg13: memref<1x32xf32, #tpu.memory_space<vmem>>, %arg14: memref<1x8x32xf32, #tpu.memory_space<vmem>>, %arg15: memref<4x8x8xbf16, #tpu.memory_space<vmem>>, %arg16: memref<4x8x8xbf16, #tpu.memory_space<vmem>>) attributes {dimension_semantics = [#tpu.dimension_semantics<parallel>, #tpu.dimension_semantics<arbitrary>], iteration_bounds = array<i64: 2, 1>, scalar_prefetch = 0 : i64, scratch_operands = 2 : i64, tpu.core_type = #tpu.core_type<tc>, window_params = [{transform_indices = @transform_0, window_bounds = array<i64: 1, 8, 32>}, {transform_indices = @transform_1, window_bounds = array<i64: 1, 1, 8>}, {pipeline_mode = #tpu.pipeline_mode<synchronous>, transform_indices = @transform_2, window_bounds = array<i64: 32, 32>}, {pipeline_mode = #tpu.pipeline_mode<synchronous>, transform_indices = @transform_3, window_bounds = array<i64: 1, 32>}, {pipeline_mode = #tpu.pipeline_mode<synchronous>, transform_indices = @transform_4, window_bounds = array<i64: 32, 32>}, {pipeline_mode = #tpu.pipeline_mode<synchronous>, transform_indices = @transform_5, window_bounds = array<i64: 1, 32>}, {pipeline_mode = #tpu.pipeline_mode<synchronous>, transform_indices = @transform_6, window_bounds = array<i64: 32, 32>}, {pipeline_mode = #tpu.pipeline_mode<synchronous>, transform_indices = @transform_7, window_bounds = array<i64: 1, 32>}, {pipeline_mode = #tpu.pipeline_mode<synchronous>, transform_indices = @transform_8, window_bounds = array<i64: 32, 32>}, {pipeline_mode = #tpu.pipeline_mode<synchronous>, transform_indices = @transform_9, window_bounds = array<i64: 1, 32>}, {pipeline_mode = #tpu.pipeline_mode<synchronous>, transform_indices = @transform_10, window_bounds = array<i64: 1, 32>}, {pipeline_mode = #tpu.pipeline_mode<synchronous>, transform_indices = @transform_11, window_bounds = array<i64: 1, 32>}, {transform_indices = @transform_12, window_bounds = array<i64: 1, 8, 32>}]} {
    %c0_i32 = arith.constant 0 : i32
    %0 = arith.cmpi eq, %arg1, %c0_i32 : i32
    %1 = arith.extui %0 : i1 to i32
    %c0_i32_0 = arith.constant 0 : i32
    %2 = arith.cmpi ne, %1, %c0_i32_0 : i32
    scf.if %2 {
      %c0_40 = arith.constant 0 : index
      %c0_41 = arith.constant 0 : index
      %c0_42 = arith.constant 0 : index
      %88 = vector.load %arg2[%c0_40, %c0_41, %c0_42] : memref<1x8x32xf32, #tpu.memory_space<vmem>>, vector<1x8x32xf32>
      %89 = vector.shape_cast %88 : vector<1x8x32xf32> to vector<8x32xf32>
      %90 = arith.truncf %89 : vector<8x32xf32> to vector<8x32xbf16>
      %c0_43 = arith.constant 0 : index
      %c0_44 = arith.constant 0 : index
      %91 = vector.load %arg6[%c0_43, %c0_44] : memref<32x32xbf16, #tpu.memory_space<vmem>>, vector<32x32xbf16>
      %cst_45 = arith.constant dense<0.000000e+00> : vector<8x32xf32>
      %92 = tpu.matmul %90, %91, %cst_45 {dimension_numbers = #tpu.dot_dimension_numbers<[1], [0], [0], [1], [0, 0, 1, 1], [], []>} : vector<8x32xbf16>, vector<32x32xbf16>, vector<8x32xf32> -> vector<8x32xf32>
      %c0_46 = arith.constant 0 : index
      %c0_47 = arith.constant 0 : index
      %93 = vector.load %arg7[%c0_46, %c0_47] : memref<1x32xf32, #tpu.memory_space<vmem>>, vector<1x32xf32>
      %94 = vector.broadcast %93 : vector<1x32xf32> to vector<8x32xf32>
      %95 = arith.addf %92, %94 : vector<8x32xf32>
      %c0_48 = arith.constant 0 : index
      %c0_49 = arith.constant 0 : index
      %96 = vector.load %arg8[%c0_48, %c0_49] : memref<32x32xbf16, #tpu.memory_space<vmem>>, vector<32x32xbf16>
      %cst_50 = arith.constant dense<0.000000e+00> : vector<8x32xf32>
      %97 = tpu.matmul %90, %96, %cst_50 {dimension_numbers = #tpu.dot_dimension_numbers<[1], [0], [0], [1], [0, 0, 1, 1], [], []>} : vector<8x32xbf16>, vector<32x32xbf16>, vector<8x32xf32> -> vector<8x32xf32>
      %c0_51 = arith.constant 0 : index
      %c0_52 = arith.constant 0 : index
      %98 = vector.load %arg9[%c0_51, %c0_52] : memref<1x32xf32, #tpu.memory_space<vmem>>, vector<1x32xf32>
      %99 = vector.broadcast %98 : vector<1x32xf32> to vector<8x32xf32>
      %100 = arith.addf %97, %99 : vector<8x32xf32>
      %101 = arith.truncf %95 : vector<8x32xf32> to vector<8x32xbf16>
      %102 = arith.truncf %100 : vector<8x32xf32> to vector<8x32xbf16>
      %103 = vector.extract_strided_slice %101 {offsets = [0, 0], sizes = [8, 8], strides = [1, 1]} : vector<8x32xbf16> to vector<8x8xbf16>
      %c0_53 = arith.constant 0 : index
      %c0_54 = arith.constant 0 : index
      %c0_55 = arith.constant 0 : index
      %104 = vector.load %arg15[%c0_53, %c0_54, %c0_55] : memref<4x8x8xbf16, #tpu.memory_space<vmem>>, vector<1x8x8xbf16>
      %105 = vector.shape_cast %104 : vector<1x8x8xbf16> to vector<8x8xbf16>
      %106 = vector.shape_cast %103 : vector<8x8xbf16> to vector<1x8x8xbf16>
      tpu.vector_store %arg15[%c0_53, %c0_54, %c0_55], %106 {strides = array<i32>} : memref<4x8x8xbf16, #tpu.memory_space<vmem>>, vector<1x8x8xbf16>,
      %107 = vector.extract_strided_slice %102 {offsets = [0, 0], sizes = [8, 8], strides = [1, 1]} : vector<8x32xbf16> to vector<8x8xbf16>
      %c0_56 = arith.constant 0 : index
      %c0_57 = arith.constant 0 : index
      %c0_58 = arith.constant 0 : index
      %108 = vector.load %arg16[%c0_56, %c0_57, %c0_58] : memref<4x8x8xbf16, #tpu.memory_space<vmem>>, vector<1x8x8xbf16>
      %109 = vector.shape_cast %108 : vector<1x8x8xbf16> to vector<8x8xbf16>
      %110 = vector.shape_cast %107 : vector<8x8xbf16> to vector<1x8x8xbf16>
      tpu.vector_store %arg16[%c0_56, %c0_57, %c0_58], %110 {strides = array<i32>} : memref<4x8x8xbf16, #tpu.memory_space<vmem>>, vector<1x8x8xbf16>,
      %111 = vector.extract_strided_slice %101 {offsets = [0, 8], sizes = [8, 8], strides = [1, 1]} : vector<8x32xbf16> to vector<8x8xbf16>
      %c1 = arith.constant 1 : index
      %c0_59 = arith.constant 0 : index
      %c0_60 = arith.constant 0 : index
      %112 = vector.load %arg15[%c1, %c0_59, %c0_60] : memref<4x8x8xbf16, #tpu.memory_space<vmem>>, vector<1x8x8xbf16>
      %113 = vector.shape_cast %112 : vector<1x8x8xbf16> to vector<8x8xbf16>
      %114 = vector.shape_cast %111 : vector<8x8xbf16> to vector<1x8x8xbf16>
      tpu.vector_store %arg15[%c1, %c0_59, %c0_60], %114 {strides = array<i32>} : memref<4x8x8xbf16, #tpu.memory_space<vmem>>, vector<1x8x8xbf16>,
      %115 = vector.extract_strided_slice %102 {offsets = [0, 8], sizes = [8, 8], strides = [1, 1]} : vector<8x32xbf16> to vector<8x8xbf16>
      %c1_61 = arith.constant 1 : index
      %c0_62 = arith.constant 0 : index
      %c0_63 = arith.constant 0 : index
      %116 = vector.load %arg16[%c1_61, %c0_62, %c0_63] : memref<4x8x8xbf16, #tpu.memory_space<vmem>>, vector<1x8x8xbf16>
      %117 = vector.shape_cast %116 : vector<1x8x8xbf16> to vector<8x8xbf16>
      %118 = vector.shape_cast %115 : vector<8x8xbf16> to vector<1x8x8xbf16>
      tpu.vector_store %arg16[%c1_61, %c0_62, %c0_63], %118 {strides = array<i32>} : memref<4x8x8xbf16, #tpu.memory_space<vmem>>, vector<1x8x8xbf16>,
      %119 = vector.extract_strided_slice %101 {offsets = [0, 16], sizes = [8, 8], strides = [1, 1]} : vector<8x32xbf16> to vector<8x8xbf16>
      %c2 = arith.constant 2 : index
      %c0_64 = arith.constant 0 : index
      %c0_65 = arith.constant 0 : index
      %120 = vector.load %arg15[%c2, %c0_64, %c0_65] : memref<4x8x8xbf16, #tpu.memory_space<vmem>>, vector<1x8x8xbf16>
      %121 = vector.shape_cast %120 : vector<1x8x8xbf16> to vector<8x8xbf16>
      %122 = vector.shape_cast %119 : vector<8x8xbf16> to vector<1x8x8xbf16>
      tpu.vector_store %arg15[%c2, %c0_64, %c0_65], %122 {strides = array<i32>} : memref<4x8x8xbf16, #tpu.memory_space<vmem>>, vector<1x8x8xbf16>,
      %123 = vector.extract_strided_slice %102 {offsets = [0, 16], sizes = [8, 8], strides = [1, 1]} : vector<8x32xbf16> to vector<8x8xbf16>
      %c2_66 = arith.constant 2 : index
      %c0_67 = arith.constant 0 : index
      %c0_68 = arith.constant 0 : index
      %124 = vector.load %arg16[%c2_66, %c0_67, %c0_68] : memref<4x8x8xbf16, #tpu.memory_space<vmem>>, vector<1x8x8xbf16>
      %125 = vector.shape_cast %124 : vector<1x8x8xbf16> to vector<8x8xbf16>
      %126 = vector.shape_cast %123 : vector<8x8xbf16> to vector<1x8x8xbf16>
      tpu.vector_store %arg16[%c2_66, %c0_67, %c0_68], %126 {strides = array<i32>} : memref<4x8x8xbf16, #tpu.memory_space<vmem>>, vector<1x8x8xbf16>,
      %127 = vector.extract_strided_slice %101 {offsets = [0, 24], sizes = [8, 8], strides = [1, 1]} : vector<8x32xbf16> to vector<8x8xbf16>
      %c3 = arith.constant 3 : index
      %c0_69 = arith.constant 0 : index
      %c0_70 = arith.constant 0 : index
      %128 = vector.load %arg15[%c3, %c0_69, %c0_70] : memref<4x8x8xbf16, #tpu.memory_space<vmem>>, vector<1x8x8xbf16>
      %129 = vector.shape_cast %128 : vector<1x8x8xbf16> to vector<8x8xbf16>
      %130 = vector.shape_cast %127 : vector<8x8xbf16> to vector<1x8x8xbf16>
      tpu.vector_store %arg15[%c3, %c0_69, %c0_70], %130 {strides = array<i32>} : memref<4x8x8xbf16, #tpu.memory_space<vmem>>, vector<1x8x8xbf16>,
      %131 = vector.extract_strided_slice %102 {offsets = [0, 24], sizes = [8, 8], strides = [1, 1]} : vector<8x32xbf16> to vector<8x8xbf16>
      %c3_71 = arith.constant 3 : index
      %c0_72 = arith.constant 0 : index
      %c0_73 = arith.constant 0 : index
      %132 = vector.load %arg16[%c3_71, %c0_72, %c0_73] : memref<4x8x8xbf16, #tpu.memory_space<vmem>>, vector<1x8x8xbf16>
      %133 = vector.shape_cast %132 : vector<1x8x8xbf16> to vector<8x8xbf16>
      %134 = vector.shape_cast %131 : vector<8x8xbf16> to vector<1x8x8xbf16>
      tpu.vector_store %arg16[%c3_71, %c0_72, %c0_73], %134 {strides = array<i32>} : memref<4x8x8xbf16, #tpu.memory_space<vmem>>, vector<1x8x8xbf16>,
    } else {
    }
    %c0 = arith.constant 0 : index
    %c0_1 = arith.constant 0 : index
    %c0_2 = arith.constant 0 : index
    %3 = vector.load %arg2[%c0, %c0_1, %c0_2] : memref<1x8x32xf32, #tpu.memory_space<vmem>>, vector<1x8x32xf32>
    %4 = vector.shape_cast %3 : vector<1x8x32xf32> to vector<8x32xf32>
    %5 = arith.truncf %4 : vector<8x32xf32> to vector<8x32xbf16>
    %c0_3 = arith.constant 0 : index
    %c0_4 = arith.constant 0 : index
    %6 = vector.load %arg4[%c0_3, %c0_4] : memref<32x32xbf16, #tpu.memory_space<vmem>>, vector<32x32xbf16>
    %cst = arith.constant dense<0.000000e+00> : vector<8x32xf32>
    %7 = tpu.matmul %5, %6, %cst {dimension_numbers = #tpu.dot_dimension_numbers<[1], [0], [0], [1], [0, 0, 1, 1], [], []>} : vector<8x32xbf16>, vector<32x32xbf16>, vector<8x32xf32> -> vector<8x32xf32>
    %c0_5 = arith.constant 0 : index
    %c0_6 = arith.constant 0 : index
    %8 = vector.load %arg5[%c0_5, %c0_6] : memref<1x32xf32, #tpu.memory_space<vmem>>, vector<1x32xf32>
    %9 = vector.broadcast %8 : vector<1x32xf32> to vector<8x32xf32>
    %10 = arith.addf %7, %9 : vector<8x32xf32>
    %11 = arith.truncf %10 : vector<8x32xf32> to vector<8x32xbf16>
    %12 = vector.extract_strided_slice %11 {offsets = [0, 0], sizes = [8, 8], strides = [1, 1]} : vector<8x32xbf16> to vector<8x8xbf16>
    %13 = vector.extract_strided_slice %11 {offsets = [0, 8], sizes = [8, 8], strides = [1, 1]} : vector<8x32xbf16> to vector<8x8xbf16>
    %14 = vector.extract_strided_slice %11 {offsets = [0, 16], sizes = [8, 8], strides = [1, 1]} : vector<8x32xbf16> to vector<8x8xbf16>
    %15 = vector.extract_strided_slice %11 {offsets = [0, 24], sizes = [8, 8], strides = [1, 1]} : vector<8x32xbf16> to vector<8x8xbf16>
    %16 = vector.shape_cast %12 : vector<8x8xbf16> to vector<1x8x8xbf16>
    %17 = vector.shape_cast %13 : vector<8x8xbf16> to vector<1x8x8xbf16>
    %18 = vector.shape_cast %14 : vector<8x8xbf16> to vector<1x8x8xbf16>
    %19 = vector.shape_cast %15 : vector<8x8xbf16> to vector<1x8x8xbf16>
    %20 = tpu.concatenate %16, %17, %18, %19 in 0 : vector<1x8x8xbf16>, vector<1x8x8xbf16>, vector<1x8x8xbf16>, vector<1x8x8xbf16> -> vector<4x8x8xbf16>
    %c0_7 = arith.constant 0 : index
    %c0_8 = arith.constant 0 : index
    %c0_9 = arith.constant 0 : index
    %21 = vector.load %arg15[%c0_7, %c0_8, %c0_9] : memref<4x8x8xbf16, #tpu.memory_space<vmem>>, vector<4x8x8xbf16>
    %c0_10 = arith.constant 0 : index
    %c0_11 = arith.constant 0 : index
    %c0_12 = arith.constant 0 : index
    %22 = vector.load %arg16[%c0_10, %c0_11, %c0_12] : memref<4x8x8xbf16, #tpu.memory_space<vmem>>, vector<4x8x8xbf16>
    "tpu.trace_start"() <{level = 10 : i32, message = "hqd,hkd->hqk"}> : () -> ()
    %cst_13 = arith.constant dense<0.000000e+00> : vector<4x8x8xf32>
    %23 = tpu.matmul %20, %21, %cst_13 {dimension_numbers = #tpu.dot_dimension_numbers<[2], [2], [1], [1], [0, 0, 0, 1, 1, 1], [0], [0]>} : vector<4x8x8xbf16>, vector<4x8x8xbf16>, vector<4x8x8xf32> -> vector<4x8x8xf32>
    "tpu.trace_stop"() : () -> ()
    %c0_14 = arith.constant 0 : index
    %c0_15 = arith.constant 0 : index
    %c0_16 = arith.constant 0 : index
    %24 = vector.load %arg3[%c0_14, %c0_15, %c0_16] : memref<1x1x8xf32, #tpu.memory_space<vmem>>, vector<1x1x8xf32>
    %25 = vector.broadcast %24 : vector<1x1x8xf32> to vector<4x8x8xf32>
    %26 = arith.addf %23, %25 : vector<4x8x8xf32>
    %cst_17 = arith.constant dense<0xFF800000> : vector<4x8xf32>
    %27 = vector.multi_reduction <maximumf>, %26, %cst_17 [2] : vector<4x8x8xf32> to vector<4x8xf32>
    %28 = vector.shape_cast %27 : vector<4x8xf32> to vector<4x8x1xf32>
    %29 = vector.broadcast %28 : vector<4x8x1xf32> to vector<4x8x8xf32>
    %30 = arith.subf %26, %29 : vector<4x8x8xf32>
    %31 = math.exp %30 : vector<4x8x8xf32>
    %cst_18 = arith.constant dense<0.000000e+00> : vector<4x8xf32>
    %32 = vector.multi_reduction <add>, %31, %cst_18 [2] : vector<4x8x8xf32> to vector<4x8xf32>
    %33 = vector.shape_cast %32 : vector<4x8xf32> to vector<4x8x1xf32>
    %34 = tpu.reciprocal %33 {approx = true} : vector<4x8x1xf32> -> vector<4x8x1xf32>
    %35 = vector.broadcast %34 : vector<4x8x1xf32> to vector<4x8x8xf32>
    %36 = arith.mulf %31, %35 : vector<4x8x8xf32>
    %37 = arith.truncf %36 : vector<4x8x8xf32> to vector<4x8x8xbf16>
    "tpu.trace_start"() <{level = 10 : i32, message = "hqk,hkd->hqd"}> : () -> ()
    %cst_19 = arith.constant dense<0.000000e+00> : vector<4x8x8xf32>
    %38 = tpu.matmul %37, %22, %cst_19 {dimension_numbers = #tpu.dot_dimension_numbers<[2], [1], [1], [2], [0, 0, 0, 1, 1, 2], [0], [0]>} : vector<4x8x8xbf16>, vector<4x8x8xbf16>, vector<4x8x8xf32> -> vector<4x8x8xf32>
    "tpu.trace_stop"() : () -> ()
    %39 = vector.extract_strided_slice %38 {offsets = [0, 0, 0], sizes = [1, 8, 8], strides = [1, 1, 1]} : vector<4x8x8xf32> to vector<1x8x8xf32>
    %40 = vector.shape_cast %39 : vector<1x8x8xf32> to vector<8x8xf32>
    %41 = vector.extract_strided_slice %38 {offsets = [1, 0, 0], sizes = [1, 8, 8], strides = [1, 1, 1]} : vector<4x8x8xf32> to vector<1x8x8xf32>
    %42 = vector.shape_cast %41 : vector<1x8x8xf32> to vector<8x8xf32>
    %43 = vector.extract_strided_slice %38 {offsets = [2, 0, 0], sizes = [1, 8, 8], strides = [1, 1, 1]} : vector<4x8x8xf32> to vector<1x8x8xf32>
    %44 = vector.shape_cast %43 : vector<1x8x8xf32> to vector<8x8xf32>
    %45 = vector.extract_strided_slice %38 {offsets = [3, 0, 0], sizes = [1, 8, 8], strides = [1, 1, 1]} : vector<4x8x8xf32> to vector<1x8x8xf32>
    %46 = vector.shape_cast %45 : vector<1x8x8xf32> to vector<8x8xf32>
    %47 = tpu.concatenate %40, %42, %44, %46 in 1 : vector<8x8xf32>, vector<8x8xf32>, vector<8x8xf32>, vector<8x8xf32> -> vector<8x32xf32>
    %48 = arith.truncf %47 : vector<8x32xf32> to vector<8x32xbf16>
    %c0_20 = arith.constant 0 : index
    %c0_21 = arith.constant 0 : index
    %49 = vector.load %arg10[%c0_20, %c0_21] : memref<32x32xbf16, #tpu.memory_space<vmem>>, vector<32x32xbf16>
    %cst_22 = arith.constant dense<0.000000e+00> : vector<8x32xf32>
    %50 = tpu.matmul %48, %49, %cst_22 {dimension_numbers = #tpu.dot_dimension_numbers<[1], [0], [0], [1], [0, 0, 1, 1], [], []>} : vector<8x32xbf16>, vector<32x32xbf16>, vector<8x32xf32> -> vector<8x32xf32>
    %c0_23 = arith.constant 0 : index
    %c0_24 = arith.constant 0 : index
    %51 = vector.load %arg11[%c0_23, %c0_24] : memref<1x32xf32, #tpu.memory_space<vmem>>, vector<1x32xf32>
    %52 = vector.broadcast %51 : vector<1x32xf32> to vector<8x32xf32>
    %53 = arith.addf %50, %52 : vector<8x32xf32>
    %54 = arith.addf %53, %4 : vector<8x32xf32>
    %cst_25 = arith.constant dense<0.000000e+00> : vector<8xf32>
    %55 = vector.multi_reduction <add>, %54, %cst_25 [1] : vector<8x32xf32> to vector<8xf32>
    %56 = vector.shape_cast %55 : vector<8xf32> to vector<8x1xf32>
    %cst_26 = arith.constant 3.200000e+01 : f32
    %57 = vector.broadcast %cst_26 : f32 to vector<8x1xf32>
    %58 = arith.divf %56, %57 : vector<8x1xf32>
    %59 = vector.broadcast %58 : vector<8x1xf32> to vector<8x32xf32>
    %60 = arith.subf %54, %59 : vector<8x32xf32>
    %61 = arith.mulf %60, %60 : vector<8x32xf32>
    %cst_27 = arith.constant dense<0.000000e+00> : vector<8xf32>
    %62 = vector.multi_reduction <add>, %61, %cst_27 [1] : vector<8x32xf32> to vector<8xf32>
    %63 = vector.shape_cast %62 : vector<8xf32> to vector<8x1xf32>
    %cst_28 = arith.constant 3.200000e+01 : f32
    %64 = vector.broadcast %cst_28 : f32 to vector<8x1xf32>
    %65 = arith.divf %63, %64 : vector<8x1xf32>
    %cst_29 = arith.constant 9.99999996E-13 : f32
    %66 = vector.broadcast %cst_29 : f32 to vector<8x1xf32>
    %67 = arith.addf %65, %66 : vector<8x1xf32>
    %68 = math.rsqrt %67 : vector<8x1xf32>
    %69 = vector.broadcast %68 : vector<8x1xf32> to vector<8x32xf32>
    %70 = arith.mulf %60, %69 : vector<8x32xf32>
    %c0_30 = arith.constant 0 : index
    %c0_31 = arith.constant 0 : index
    %71 = vector.load %arg12[%c0_30, %c0_31] : memref<1x32xf32, #tpu.memory_space<vmem>>, vector<1x32xf32>
    %72 = vector.broadcast %71 : vector<1x32xf32> to vector<8x32xf32>
    %73 = arith.mulf %70, %72 : vector<8x32xf32>
    %c0_32 = arith.constant 0 : index
    %c0_33 = arith.constant 0 : index
    %74 = vector.load %arg13[%c0_32, %c0_33] : memref<1x32xf32, #tpu.memory_space<vmem>>, vector<1x32xf32>
    %75 = vector.broadcast %74 : vector<1x32xf32> to vector<8x32xf32>
    %76 = arith.addf %73, %75 : vector<8x32xf32>
    %cst_34 = arith.constant 5.000000e-01 : f32
    %77 = vector.broadcast %cst_34 : f32 to vector<8x32xf32>
    %78 = arith.mulf %76, %77 : vector<8x32xf32>
    %cst_35 = arith.constant 1.41421354 : f32
    %79 = vector.broadcast %cst_35 : f32 to vector<8x32xf32>
    %80 = arith.divf %76, %79 : vector<8x32xf32>
    %81 = math.erf %80 : vector<8x32xf32>
    %cst_36 = arith.constant 1.000000e+00 : f32
    %82 = vector.broadcast %cst_36 : f32 to vector<8x32xf32>
    %83 = arith.addf %82, %81 : vector<8x32xf32>
    %84 = arith.mulf %78, %83 : vector<8x32xf32>
    %c0_37 = arith.constant 0 : index
    %c0_38 = arith.constant 0 : index
    %c0_39 = arith.constant 0 : index
    %85 = vector.load %arg14[%c0_37, %c0_38, %c0_39] : memref<1x8x32xf32, #tpu.memory_space<vmem>>, vector<1x8x32xf32>
    %86 = vector.shape_cast %85 : vector<1x8x32xf32> to vector<8x32xf32>
    %87 = vector.shape_cast %84 : vector<8x32xf32> to vector<1x8x32xf32>
    tpu.vector_store %arg14[%c0_37, %c0_38, %c0_39], %87 {strides = array<i32>} : memref<1x8x32xf32, #tpu.memory_space<vmem>>, vector<1x8x32xf32>,
    return
  }
  func.func @transform_0(%arg0: i32, %arg1: i32) -> (i32, i32, i32) {
    %c0_i32 = arith.constant 0 : i32
    %c0_i32_0 = arith.constant 0 : i32
    %c0_i32_1 = arith.constant 0 : i32
    return %arg0, %c0_i32, %c0_i32_0 : i32, i32, i32
  }
  func.func @transform_1(%arg0: i32, %arg1: i32) -> (i32, i32, i32) {
    %c0_i32 = arith.constant 0 : i32
    %c0_i32_0 = arith.constant 0 : i32
    %c0_i32_1 = arith.constant 0 : i32
    return %arg0, %c0_i32, %c0_i32_0 : i32, i32, i32
  }
  func.func @transform_2(%arg0: i32, %arg1: i32) -> (i32, i32) {
    %c0_i32 = arith.constant 0 : i32
    %c0_i32_0 = arith.constant 0 : i32
    %c0_i32_1 = arith.constant 0 : i32
    return %c0_i32, %c0_i32_0 : i32, i32
  }
  func.func @transform_3(%arg0: i32, %arg1: i32) -> (i32, i32) {
    %c0_i32 = arith.constant 0 : i32
    %c0_i32_0 = arith.constant 0 : i32
    %c0_i32_1 = arith.constant 0 : i32
    return %c0_i32, %c0_i32_0 : i32, i32
  }
  func.func @transform_4(%arg0: i32, %arg1: i32) -> (i32, i32) {
    %c0_i32 = arith.constant 0 : i32
    %c0_i32_0 = arith.constant 0 : i32
    %c0_i32_1 = arith.constant 0 : i32
    return %c0_i32, %c0_i32_0 : i32, i32
  }
  func.func @transform_5(%arg0: i32, %arg1: i32) -> (i32, i32) {
    %c0_i32 = arith.constant 0 : i32
    %c0_i32_0 = arith.constant 0 : i32
    %c0_i32_1 = arith.constant 0 : i32
    return %c0_i32, %c0_i32_0 : i32, i32
  }
  func.func @transform_6(%arg0: i32, %arg1: i32) -> (i32, i32) {
    %c0_i32 = arith.constant 0 : i32
    %c0_i32_0 = arith.constant 0 : i32
    %c0_i32_1 = arith.constant 0 : i32
    return %c0_i32, %c0_i32_0 : i32, i32
  }
  func.func @transform_7(%arg0: i32, %arg1: i32) -> (i32, i32) {
    %c0_i32 = arith.constant 0 : i32
    %c0_i32_0 = arith.constant 0 : i32
    %c0_i32_1 = arith.constant 0 : i32
    return %c0_i32, %c0_i32_0 : i32, i32
  }
  func.func @transform_8(%arg0: i32, %arg1: i32) -> (i32, i32) {
    %c0_i32 = arith.constant 0 : i32
    %c0_i32_0 = arith.constant 0 : i32
    %c0_i32_1 = arith.constant 0 : i32
    return %c0_i32, %c0_i32_0 : i32, i32
  }
  func.func @transform_9(%arg0: i32, %arg1: i32) -> (i32, i32) {
    %c0_i32 = arith.constant 0 : i32
    %c0_i32_0 = arith.constant 0 : i32
    %c0_i32_1 = arith.constant 0 : i32
    return %c0_i32, %c0_i32_0 : i32, i32
  }
  func.func @transform_10(%arg0: i32, %arg1: i32) -> (i32, i32) {
    %c0_i32 = arith.constant 0 : i32
    %c0_i32_0 = arith.constant 0 : i32
    %c0_i32_1 = arith.constant 0 : i32
    return %c0_i32, %c0_i32_0 : i32, i32
  }
  func.func @transform_11(%arg0: i32, %arg1: i32) -> (i32, i32) {
    %c0_i32 = arith.constant 0 : i32
    %c0_i32_0 = arith.constant 0 : i32
    %c0_i32_1 = arith.constant 0 : i32
    return %c0_i32, %c0_i32_0 : i32, i32
  }
  func.func @transform_12(%arg0: i32, %arg1: i32) -> (i32, i32, i32) {
    %c0_i32 = arith.constant 0 : i32
    %c0_i32_0 = arith.constant 0 : i32
    return %arg0, %arg1, %c0_i32 : i32, i32, i32
  }
}

</mosaic_0001>

<llo_original>
// kernel: tpu_custom_call.1
$region0: #{tpu_custom_call.1}
  #allocation0 [shape = 'u32[]', space=smem, size = 0x4, offset = 0x4, fixed_abs, tag = 'smem constant byte address 0x4 - core index']
  #allocation1 [shape = 'u32[144,128]{1,0:T(1,128)}', space=vmem, size = 0x12000, scoped, tag = 'internal scratch']
  #allocation2 [shape = 'bf16[4,8,8]{2,1,0:T(8,128)(2,1)}', space=vmem, size = 0x2000, scoped, tag = 'scratch operand']
  #allocation3 [shape = 'bf16[4,8,8]{2,1,0:T(8,128)(2,1)}', space=vmem, size = 0x2000, scoped, tag = 'scratch operand']
  %s0 = inlined_call_operand.hbm [shape: f32[2,8,32], index: 0, kind: input, shape index: {}]
  %s1 = inlined_call_operand.hbm [shape: f32[2,1,8], index: 1, kind: input, shape index: {}]
  %s2 = inlined_call_operand.hbm [shape: bf16[32,32], index: 2, kind: input, shape index: {}]
  %s3 = inlined_call_operand.hbm [shape: f32[1,32], index: 3, kind: input, shape index: {}]
  %s4 = inlined_call_operand.hbm [shape: bf16[32,32], index: 4, kind: input, shape index: {}]
  %s5 = inlined_call_operand.hbm [shape: f32[1,32], index: 5, kind: input, shape index: {}]
  %s6 = inlined_call_operand.hbm [shape: bf16[32,32], index: 6, kind: input, shape index: {}]
  %s7 = inlined_call_operand.hbm [shape: f32[1,32], index: 7, kind: input, shape index: {}]
  %s8 = inlined_call_operand.hbm [shape: bf16[32,32], index: 8, kind: input, shape index: {}]
  %s9 = inlined_call_operand.hbm [shape: f32[1,32], index: 9, kind: input, shape index: {}]
  %s10 = inlined_call_operand.hbm [shape: f32[1,32], index: 10, kind: input, shape index: {}]
  %s11 = inlined_call_operand.hbm [shape: f32[1,32], index: 11, kind: input, shape index: {}]
  %s12 = inlined_call_operand.hbm [shape: f32[2,8,32], index: 12, kind: output, shape index: {}]
  %s13 = sld [smem:[#allocation0]]
  $region133: #{tpu_custom_call.1} parent=0
    _
  %s15 = ssub.s32 1, %s13
  %s16 = scalar_select 0, %s15, %s13
  $region1: #{tpu_custom_call.1} parent=0
    #allocation4 [shape = 'u8[8192]{0}', space=vmem, size = 0x2000, scoped, tag = 'input window, operand 0']
    #allocation5 [shape = 's32[2]{0}', space=sflag, size = 0x8, scoped, tag = 'scoped memory for tpu_custom_call.1']
    #allocation6 [shape = 's32[2]{0}', space=sflag, size = 0x8, scoped, tag = 'scoped memory for tpu_custom_call.1']
    #allocation7 [shape = 'u8[1024]{0}', space=vmem, size = 0x400, scoped, tag = 'input window, operand 1']
    #allocation8 [shape = 's32[2]{0}', space=sflag, size = 0x8, scoped, tag = 'scoped memory for tpu_custom_call.1']
    #allocation9 [shape = 'u8[8192]{0}', space=vmem, size = 0x2000, scoped, tag = 'input window, operand 2, single buffered']
    #allocation10 [shape = 'u8[512]{0}', space=vmem, size = 0x400, scoped, tag = 'input window, operand 3, single buffered']
    #allocation11 [shape = 's32[1]{0}', space=sflag, size = 0x4, scoped, tag = 'scoped memory for tpu_custom_call.1']
    #allocation12 [shape = 'u8[8192]{0}', space=vmem, size = 0x2000, scoped, tag = 'input window, operand 4, single buffered']
    #allocation13 [shape = 'u8[512]{0}', space=vmem, size = 0x400, scoped, tag = 'input window, operand 5, single buffered']
    #allocation14 [shape = 's32[1]{0}', space=sflag, size = 0x4, scoped, tag = 'scoped memory for tpu_custom_call.1']
    #allocation15 [shape = 'u8[8192]{0}', space=vmem, size = 0x2000, scoped, tag = 'input window, operand 6, single buffered']
    #allocation16 [shape = 'u8[512]{0}', space=vmem, size = 0x400, scoped, tag = 'input window, operand 7, single buffered']
    #allocation17 [shape = 's32[1]{0}', space=sflag, size = 0x4, scoped, tag = 'scoped memory for tpu_custom_call.1']
    #allocation18 [shape = 'u8[8192]{0}', space=vmem, size = 0x2000, scoped, tag = 'input window, operand 8, single buffered']
    #allocation19 [shape = 'u8[512]{0}', space=vmem, size = 0x400, scoped, tag = 'input window, operand 9, single buffered']
    #allocation20 [shape = 's32[1]{0}', space=sflag, size = 0x4, scoped, tag = 'scoped memory for tpu_custom_call.1']
    #allocation21 [shape = 'u8[512]{0}', space=vmem, size = 0x400, scoped, tag = 'input window, operand 10, single buffered']
    #allocation22 [shape = 'u8[512]{0}', space=vmem, size = 0x400, scoped, tag = 'input window, operand 11, single buffered']
    #allocation23 [shape = 's32[1]{0}', space=sflag, size = 0x4, scoped, tag = 'scoped memory for tpu_custom_call.1']
    #allocation24 [shape = 'u8[8192]{0}', space=vmem, size = 0x2000, scoped, tag = 'output window, operand 0']
    %17 = vsyncpa [#allocation5], 0
    %s18 = scalar_lea.sflag [#allocation5], 1
    %19 = vsyncpa %s18, 0
    %20 = vsyncpa [#allocation8], 0
    %s21 = scalar_lea.sflag [#allocation8], 1
    %22 = vsyncpa %s21, 0
    %23 = vsyncpa [#allocation11], 0
    %24 = vsyncpa [#allocation14], 0
    %25 = vsyncpa [#allocation17], 0
    %26 = vsyncpa [#allocation20], 0
    %27 = vsyncpa [#allocation23], 0
    %28 = vsyncpa [#allocation6], 0
    %s29 = scalar_lea.sflag [#allocation6], 1
    %30 = vsyncpa %s29, 0
    loop: start=0, step=1, limit=4
    $region2: #{tpu_custom_call.1} parent=1 // loop_pre_header
      _
    $region3: #{tpu_custom_call.1} parent=1 // loop_header
      %s32 = sphi 0, %s36
      %p33 = scmp.ge.s32.totalorder %s32, 4
      %s39 = sphi 0, %s51
      %s40 = sphi 0, %s47
      %s41 = sphi 0, %s39
      %s42 = sphi 0, %s40
      %s43 = sphi 0, %s41
      %s44 = sphi 0, %s42
      %s54 = sphi 0, %s56
      %s57 = sphi 0, %s54
      %s58 = sphi 0, %s57
      %s74 = sphi 0, %s58
      %s80 = sphi 0, %s82
      %s83 = sphi 0, %s80
      %s84 = sphi 0, %s83
      %s100 = sphi 0, %s84
      %s104 = sphi 0, %s104
      %s106 = sphi 0, %s104
      %s107 = sphi 0, %s106
      %s121 = sphi 0, %s107
      %s125 = sphi 0, %s125
      %s127 = sphi 0, %s125
      %s128 = sphi 0, %s127
      %s142 = sphi 0, %s128
      %s146 = sphi 0, %s146
      %s148 = sphi 0, %s146
      %s149 = sphi 0, %s148
      %s163 = sphi 0, %s149
      %s167 = sphi 0, %s167
      %s169 = sphi 0, %s167
      %s170 = sphi 0, %s169
      %s184 = sphi 0, %s170
      %s188 = sphi 0, %s188
      %s190 = sphi 0, %s188
      %s191 = sphi 0, %s190
      %s205 = sphi 0, %s191
      %s209 = sphi 0, %s209
      %s211 = sphi 0, %s209
      %s212 = sphi 0, %s211
      %s226 = sphi 0, %s212
      %s230 = sphi 0, %s230
      %s232 = sphi 0, %s230
      %s233 = sphi 0, %s232
      %s247 = sphi 0, %s233
      %s251 = sphi 0, %s251
      %s253 = sphi 0, %s251
      %s254 = sphi 0, %s253
      %s268 = sphi 0, %s254
      %s272 = sphi 0, %s272
      %s274 = sphi 0, %s272
      %s275 = sphi 0, %s274
      %s289 = sphi 0, %s275
      %s293 = sphi 0, %s293
      %s295 = sphi 0, %s293
      %s296 = sphi 0, %s295
      %s310 = sphi 0, %s296
      %s318 = sphi 0, %s320
      %s321 = sphi 0, %s318
      %s322 = sphi 0, %s321
      %s338 = sphi 0, %s322
    $region4: #{tpu_custom_call.1} parent=1 // loop_header_branch
      %35 = sbr.rel (%p33) target = $region8
    $region5: #{tpu_custom_call.1} parent=1 // loop_body
      %s37 = ssub.s32 %s32, 1
      %s38 = ssub.s32 %s32, 2
      %s45 = sadd.s32 1, %s40
      %p46 = scmp.ge.s32.totalorder %s45, 1
      %s47 = scalar_select %p46, 0, %s45
      %s48 = sadd.s32 1, %s39
      %s49 = scalar_select %p46, %s48, %s39
      %p50 = scmp.ge.s32.totalorder %s49, 2
      %s51 = scalar_select %p50, 0, %s49
      %s52 = ssub.s32 %s39, %s51
      %p53 = scmp.eq.s32.totalorder %s52, 0
      %s55 = sadd.s32 %s54, 1
      %s56 = scalar_select %p53, %s54, %s55
      %p59 = pneg %p53
      %p60 = scmp.eq.s32.totalorder %s32, 1
      %p61 = por %p59, %p60
      %p62 = scmp.ne.s32.totalorder %s54, %s57
      %p63 = scmp.eq.s32.totalorder %s32, 0
      %p64 = por %p62, %p63
      %p65 = scmp.ne.s32.totalorder %s54, %s57
      %p66 = scmp.eq.s32.totalorder %s37, 1
      %p67 = por %p65, %p66
      %p68 = scmp.ne.s32.totalorder %s57, %s58
      %p69 = scmp.eq.s32.totalorder %s37, 0
      %p70 = por %p68, %p69
      %p71 = scmp.ne.s32.totalorder %s57, %s58
      %p72 = scmp.eq.s32.totalorder %s38, 1
      %p73 = por %p71, %p72
      %p75 = scmp.ne.s32.totalorder %s58, %s74
      %p76 = scmp.eq.s32.totalorder %s38, 0
      %p77 = por %p75, %p76
      %s78 = ssub.s32 %s39, %s51
      %p79 = scmp.eq.s32.totalorder %s78, 0
      %s81 = sadd.s32 %s80, 1
      %s82 = scalar_select %p79, %s80, %s81
      %p85 = pneg %p79
      %p86 = scmp.eq.s32.totalorder %s32, 1
      %p87 = por %p85, %p86
      %p88 = scmp.ne.s32.totalorder %s80, %s83
      %p89 = scmp.eq.s32.totalorder %s32, 0
      %p90 = por %p88, %p89
      %p91 = scmp.ne.s32.totalorder %s80, %s83
      %p92 = scmp.eq.s32.totalorder %s37, 1
      %p93 = por %p91, %p92
      %p94 = scmp.ne.s32.totalorder %s83, %s84
      %p95 = scmp.eq.s32.totalorder %s37, 0
      %p96 = por %p94, %p95
      %p97 = scmp.ne.s32.totalorder %s83, %s84
      %p98 = scmp.eq.s32.totalorder %s38, 1
      %p99 = por %p97, %p98
      %p101 = scmp.ne.s32.totalorder %s84, %s100
      %p102 = scmp.eq.s32.totalorder %s38, 0
      %p103 = por %p101, %p102
      %s105 = sadd.s32 %s104, 1
      %p108 = scmp.eq.s32.totalorder %s32, 1
      %p109 = scmp.ne.s32.totalorder %s104, %s106
      %p110 = scmp.eq.s32.totalorder %s32, 0
      %p111 = por %p109, %p110
      %p112 = scmp.ne.s32.totalorder %s104, %s106
      %p113 = scmp.eq.s32.totalorder %s37, 1
      %p114 = por %p112, %p113
      %p115 = scmp.ne.s32.totalorder %s106, %s107
      %p116 = scmp.eq.s32.totalorder %s37, 0
      %p117 = por %p115, %p116
      %p118 = scmp.ne.s32.totalorder %s106, %s107
      %p119 = scmp.eq.s32.totalorder %s38, 1
      %p120 = por %p118, %p119
      %p122 = scmp.ne.s32.totalorder %s107, %s121
      %p123 = scmp.eq.s32.totalorder %s38, 0
      %p124 = por %p122, %p123
      %s126 = sadd.s32 %s125, 1
      %p129 = scmp.eq.s32.totalorder %s32, 1
      %p130 = scmp.ne.s32.totalorder %s125, %s127
      %p131 = scmp.eq.s32.totalorder %s32, 0
      %p132 = por %p130, %p131
      %p133 = scmp.ne.s32.totalorder %s125, %s127
      %p134 = scmp.eq.s32.totalorder %s37, 1
      %p135 = por %p133, %p134
      %p136 = scmp.ne.s32.totalorder %s127, %s128
      %p137 = scmp.eq.s32.totalorder %s37, 0
      %p138 = por %p136, %p137
      %p139 = scmp.ne.s32.totalorder %s127, %s128
      %p140 = scmp.eq.s32.totalorder %s38, 1
      %p141 = por %p139, %p140
      %p143 = scmp.ne.s32.totalorder %s128, %s142
      %p144 = scmp.eq.s32.totalorder %s38, 0
      %p145 = por %p143, %p144
      %s147 = sadd.s32 %s146, 1
      %p150 = scmp.eq.s32.totalorder %s32, 1
      %p151 = scmp.ne.s32.totalorder %s146, %s148
      %p152 = scmp.eq.s32.totalorder %s32, 0
      %p153 = por %p151, %p152
      %p154 = scmp.ne.s32.totalorder %s146, %s148
      %p155 = scmp.eq.s32.totalorder %s37, 1
      %p156 = por %p154, %p155
      %p157 = scmp.ne.s32.totalorder %s148, %s149
      %p158 = scmp.eq.s32.totalorder %s37, 0
      %p159 = por %p157, %p158
      %p160 = scmp.ne.s32.totalorder %s148, %s149
      %p161 = scmp.eq.s32.totalorder %s38, 1
      %p162 = por %p160, %p161
      %p164 = scmp.ne.s32.totalorder %s149, %s163
      %p165 = scmp.eq.s32.totalorder %s38, 0
      %p166 = por %p164, %p165
      %s168 = sadd.s32 %s167, 1
      %p171 = scmp.eq.s32.totalorder %s32, 1
      %p172 = scmp.ne.s32.totalorder %s167, %s169
      %p173 = scmp.eq.s32.totalorder %s32, 0
      %p174 = por %p172, %p173
      %p175 = scmp.ne.s32.totalorder %s167, %s169
      %p176 = scmp.eq.s32.totalorder %s37, 1
      %p177 = por %p175, %p176
      %p178 = scmp.ne.s32.totalorder %s169, %s170
      %p179 = scmp.eq.s32.totalorder %s37, 0
      %p180 = por %p178, %p179
      %p181 = scmp.ne.s32.totalorder %s169, %s170
      %p182 = scmp.eq.s32.totalorder %s38, 1
      %p183 = por %p181, %p182
      %p185 = scmp.ne.s32.totalorder %s170, %s184
      %p186 = scmp.eq.s32.totalorder %s38, 0
      %p187 = por %p185, %p186
      %s189 = sadd.s32 %s188, 1
      %p192 = scmp.eq.s32.totalorder %s32, 1
      %p193 = scmp.ne.s32.totalorder %s188, %s190
      %p194 = scmp.eq.s32.totalorder %s32, 0
      %p195 = por %p193, %p194
      %p196 = scmp.ne.s32.totalorder %s188, %s190
      %p197 = scmp.eq.s32.totalorder %s37, 1
      %p198 = por %p196, %p197
      %p199 = scmp.ne.s32.totalorder %s190, %s191
      %p200 = scmp.eq.s32.totalorder %s37, 0
      %p201 = por %p199, %p200
      %p202 = scmp.ne.s32.totalorder %s190, %s191
      %p203 = scmp.eq.s32.totalorder %s38, 1
      %p204 = por %p202, %p203
      %p206 = scmp.ne.s32.totalorder %s191, %s205
      %p207 = scmp.eq.s32.totalorder %s38, 0
      %p208 = por %p206, %p207
      %s210 = sadd.s32 %s209, 1
      %p213 = scmp.eq.s32.totalorder %s32, 1
      %p214 = scmp.ne.s32.totalorder %s209, %s211
      %p215 = scmp.eq.s32.totalorder %s32, 0
      %p216 = por %p214, %p215
      %p217 = scmp.ne.s32.totalorder %s209, %s211
      %p218 = scmp.eq.s32.totalorder %s37, 1
      %p219 = por %p217, %p218
      %p220 = scmp.ne.s32.totalorder %s211, %s212
      %p221 = scmp.eq.s32.totalorder %s37, 0
      %p222 = por %p220, %p221
      %p223 = scmp.ne.s32.totalorder %s211, %s212
      %p224 = scmp.eq.s32.totalorder %s38, 1
      %p225 = por %p223, %p224
      %p227 = scmp.ne.s32.totalorder %s212, %s226
      %p228 = scmp.eq.s32.totalorder %s38, 0
      %p229 = por %p227, %p228
      %s231 = sadd.s32 %s230, 1
      %p234 = scmp.eq.s32.totalorder %s32, 1
      %p235 = scmp.ne.s32.totalorder %s230, %s232
      %p236 = scmp.eq.s32.totalorder %s32, 0
      %p237 = por %p235, %p236
      %p238 = scmp.ne.s32.totalorder %s230, %s232
      %p239 = scmp.eq.s32.totalorder %s37, 1
      %p240 = por %p238, %p239
      %p241 = scmp.ne.s32.totalorder %s232, %s233
      %p242 = scmp.eq.s32.totalorder %s37, 0
      %p243 = por %p241, %p242
      %p244 = scmp.ne.s32.totalorder %s232, %s233
      %p245 = scmp.eq.s32.totalorder %s38, 1
      %p246 = por %p244, %p245
      %p248 = scmp.ne.s32.totalorder %s233, %s247
      %p249 = scmp.eq.s32.totalorder %s38, 0
      %p250 = por %p248, %p249
      %s252 = sadd.s32 %s251, 1
      %p255 = scmp.eq.s32.totalorder %s32, 1
      %p256 = scmp.ne.s32.totalorder %s251, %s253
      %p257 = scmp.eq.s32.totalorder %s32, 0
      %p258 = por %p256, %p257
      %p259 = scmp.ne.s32.totalorder %s251, %s253
      %p260 = scmp.eq.s32.totalorder %s37, 1
      %p261 = por %p259, %p260
      %p262 = scmp.ne.s32.totalorder %s253, %s254
      %p263 = scmp.eq.s32.totalorder %s37, 0
      %p264 = por %p262, %p263
      %p265 = scmp.ne.s32.totalorder %s253, %s254
      %p266 = scmp.eq.s32.totalorder %s38, 1
      %p267 = por %p265, %p266
      %p269 = scmp.ne.s32.totalorder %s254, %s268
      %p270 = scmp.eq.s32.totalorder %s38, 0
      %p271 = por %p269, %p270
      %s273 = sadd.s32 %s272, 1
      %p276 = scmp.eq.s32.totalorder %s32, 1
      %p277 = scmp.ne.s32.totalorder %s272, %s274
      %p278 = scmp.eq.s32.totalorder %s32, 0
      %p279 = por %p277, %p278
      %p280 = scmp.ne.s32.totalorder %s272, %s274
      %p281 = scmp.eq.s32.totalorder %s37, 1
      %p282 = por %p280, %p281
      %p283 = scmp.ne.s32.totalorder %s274, %s275
      %p284 = scmp.eq.s32.totalorder %s37, 0
      %p285 = por %p283, %p284
      %p286 = scmp.ne.s32.totalorder %s274, %s275
      %p287 = scmp.eq.s32.totalorder %s38, 1
      %p288 = por %p286, %p287
      %p290 = scmp.ne.s32.totalorder %s275, %s289
      %p291 = scmp.eq.s32.totalorder %s38, 0
      %p292 = por %p290, %p291
      %s294 = sadd.s32 %s293, 1
      %p297 = scmp.eq.s32.totalorder %s32, 1
      %p298 = scmp.ne.s32.totalorder %s293, %s295
      %p299 = scmp.eq.s32.totalorder %s32, 0
      %p300 = por %p298, %p299
      %p301 = scmp.ne.s32.totalorder %s293, %s295
      %p302 = scmp.eq.s32.totalorder %s37, 1
      %p303 = por %p301, %p302
      %p304 = scmp.ne.s32.totalorder %s295, %s296
      %p305 = scmp.eq.s32.totalorder %s37, 0
      %p306 = por %p304, %p305
      %p307 = scmp.ne.s32.totalorder %s295, %s296
      %p308 = scmp.eq.s32.totalorder %s38, 1
      %p309 = por %p307, %p308
      %p311 = scmp.ne.s32.totalorder %s296, %s310
      %p312 = scmp.eq.s32.totalorder %s38, 0
      %p313 = por %p311, %p312
      %s314 = ssub.s32 %s39, %s51
      %s315 = ssub.s32 %s40, %s47
      %s316 = sor.u32 %s314, %s315
      %p317 = scmp.eq.s32.totalorder %s316, 0
      %s319 = sadd.s32 %s318, 1
      %s320 = scalar_select %p317, %s318, %s319
      %p323 = pneg %p317
      %p324 = scmp.eq.s32.totalorder %s32, 1
      %p325 = por %p323, %p324
      %p326 = scmp.ne.s32.totalorder %s318, %s321
      %p327 = scmp.eq.s32.totalorder %s32, 0
      %p328 = por %p326, %p327
      %p329 = scmp.ne.s32.totalorder %s318, %s321
      %p330 = scmp.eq.s32.totalorder %s37, 1
      %p331 = por %p329, %p330
      %p332 = scmp.ne.s32.totalorder %s321, %s322
      %p333 = scmp.eq.s32.totalorder %s37, 0
      %p334 = por %p332, %p333
      %p335 = scmp.ne.s32.totalorder %s321, %s322
      %p336 = scmp.eq.s32.totalorder %s38, 1
      %p337 = por %p335, %p336
      %p339 = scmp.ne.s32.totalorder %s322, %s338
      %p340 = scmp.eq.s32.totalorder %s38, 0
      %p341 = por %p339, %p340
      %p342 = scmp.le.s32.totalorder 1, %s32
      %p343 = scmp.lt.s32.totalorder %s32, 3
      %p344 = pnand %p342, %p343
      %p345 = pneg %p344
      // Predicated region
      $region9: #{tpu_custom_call.1} parent=5 // pred_check
        _
      $region10: #{tpu_custom_call.1} parent=5 // pred_check_branch
        %347 = sbr.rel (%p344) target = $region12
      $region11: #{tpu_custom_call.1} parent=5 // pred_region
        %s348 = ssub.s32 %s32, 1
        // Predicated region
        $region13: #{tpu_custom_call.1} parent=11 // pred_check
          %p349 = pneg %p117
        $region14: #{tpu_custom_call.1} parent=11 // pred_check_branch
          %351 = sbr.rel (%p349) target = $region16
        $region15: #{tpu_custom_call.1} parent=11 // pred_region
          %s353 = ssub.s32 256, 256
          %354 = vsyncadd [#allocation8], %s353
          %s355 = sshll.u32 [#allocation9], 4
          %s356 = int_to_ptr.vmem [resolvable:$true] %s355
          %361 = dma.hbm_to_vmem [thread:$0]  %s2, 256, %s356, [#allocation8], 64, 64, 4
        $region16: #{tpu_custom_call.1} parent=11 // pred_fallthru
          _
        // Predicated region
        $region17: #{tpu_custom_call.1} parent=11 // pred_check
          %p362 = pneg %p138
        $region18: #{tpu_custom_call.1} parent=11 // pred_check_branch
          %364 = sbr.rel (%p362) target = $region20
        $region19: #{tpu_custom_call.1} parent=11 // pred_region
          %s366 = ssub.s32 16, 16
          %367 = vsyncadd [#allocation11], %s366
          %s369 = sshll.u32 [#allocation10], 4
          %s370 = int_to_ptr.vmem [resolvable:$true] %s369
          %372 = dma.hbm_to_vmem [thread:$0]  %s3, 16, %s370, [#allocation11]
        $region20: #{tpu_custom_call.1} parent=11 // pred_fallthru
          _
        // Predicated region
        $region21: #{tpu_custom_call.1} parent=11 // pred_check
          %p373 = pneg %p159
        $region22: #{tpu_custom_call.1} parent=11 // pred_check_branch
          %375 = sbr.rel (%p373) target = $region24
        $region23: #{tpu_custom_call.1} parent=11 // pred_region
          %s377 = ssub.s32 256, 256
          %378 = vsyncadd [#allocation11], %s377
          %s379 = sshll.u32 [#allocation12], 4
          %s380 = int_to_ptr.vmem [resolvable:$true] %s379
          %385 = dma.hbm_to_vmem [thread:$0]  %s4, 256, %s380, [#allocation11], 64, 64, 4
        $region24: #{tpu_custom_call.1} parent=11 // pred_fallthru
          _
        // Predicated region
        $region25: #{tpu_custom_call.1} parent=11 // pred_check
          %p386 = pneg %p180
        $region26: #{tpu_custom_call.1} parent=11 // pred_check_branch
          %388 = sbr.rel (%p386) target = $region28
        $region27: #{tpu_custom_call.1} parent=11 // pred_region
          %s390 = ssub.s32 16, 16
          %391 = vsyncadd [#allocation14], %s390
          %s393 = sshll.u32 [#allocation13], 4
          %s394 = int_to_ptr.vmem [resolvable:$true] %s393
          %396 = dma.hbm_to_vmem [thread:$0]  %s5, 16, %s394, [#allocation14]
        $region28: #{tpu_custom_call.1} parent=11 // pred_fallthru
          _
        // Predicated region
        $region29: #{tpu_custom_call.1} parent=11 // pred_check
          %p397 = pneg %p201
        $region30: #{tpu_custom_call.1} parent=11 // pred_check_branch
          %399 = sbr.rel (%p397) target = $region32
        $region31: #{tpu_custom_call.1} parent=11 // pred_region
          %s401 = ssub.s32 256, 256
          %402 = vsyncadd [#allocation14], %s401
          %s403 = sshll.u32 [#allocation15], 4
          %s404 = int_to_ptr.vmem [resolvable:$true] %s403
          %409 = dma.hbm_to_vmem [thread:$0]  %s6, 256, %s404, [#allocation14], 64, 64, 4
        $region32: #{tpu_custom_call.1} parent=11 // pred_fallthru
          _
        // Predicated region
        $region33: #{tpu_custom_call.1} parent=11 // pred_check
          %p410 = pneg %p222
        $region34: #{tpu_custom_call.1} parent=11 // pred_check_branch
          %412 = sbr.rel (%p410) target = $region36
        $region35: #{tpu_custom_call.1} parent=11 // pred_region
          %s414 = ssub.s32 16, 16
          %415 = vsyncadd [#allocation17], %s414
          %s417 = sshll.u32 [#allocation16], 4
          %s418 = int_to_ptr.vmem [resolvable:$true] %s417
          %420 = dma.hbm_to_vmem [thread:$0]  %s7, 16, %s418, [#allocation17]
        $region36: #{tpu_custom_call.1} parent=11 // pred_fallthru
          _
        // Predicated region
        $region37: #{tpu_custom_call.1} parent=11 // pred_check
          %p421 = pneg %p243
        $region38: #{tpu_custom_call.1} parent=11 // pred_check_branch
          %423 = sbr.rel (%p421) target = $region40
        $region39: #{tpu_custom_call.1} parent=11 // pred_region
          %s425 = ssub.s32 256, 256
          %426 = vsyncadd [#allocation17], %s425
          %s427 = sshll.u32 [#allocation18], 4
          %s428 = int_to_ptr.vmem [resolvable:$true] %s427
          %433 = dma.hbm_to_vmem [thread:$0]  %s8, 256, %s428, [#allocation17], 64, 64, 4
        $region40: #{tpu_custom_call.1} parent=11 // pred_fallthru
          _
        // Predicated region
        $region41: #{tpu_custom_call.1} parent=11 // pred_check
          %p434 = pneg %p264
        $region42: #{tpu_custom_call.1} parent=11 // pred_check_branch
          %436 = sbr.rel (%p434) target = $region44
        $region43: #{tpu_custom_call.1} parent=11 // pred_region
          %s438 = ssub.s32 16, 16
          %439 = vsyncadd [#allocation20], %s438
          %s441 = sshll.u32 [#allocation19], 4
          %s442 = int_to_ptr.vmem [resolvable:$true] %s441
          %444 = dma.hbm_to_vmem [thread:$0]  %s9, 16, %s442, [#allocation20]
        $region44: #{tpu_custom_call.1} parent=11 // pred_fallthru
          _
        // Predicated region
        $region45: #{tpu_custom_call.1} parent=11 // pred_check
          %p445 = pneg %p285
        $region46: #{tpu_custom_call.1} parent=11 // pred_check_branch
          %447 = sbr.rel (%p445) target = $region48
        $region47: #{tpu_custom_call.1} parent=11 // pred_region
          %s449 = ssub.s32 16, 16
          %450 = vsyncadd [#allocation20], %s449
          %s452 = sshll.u32 [#allocation21], 4
          %s453 = int_to_ptr.vmem [resolvable:$true] %s452
          %455 = dma.hbm_to_vmem [thread:$0]  %s10, 16, %s453, [#allocation20]
        $region48: #{tpu_custom_call.1} parent=11 // pred_fallthru
          _
        // Predicated region
        $region49: #{tpu_custom_call.1} parent=11 // pred_check
          %p456 = pneg %p306
        $region50: #{tpu_custom_call.1} parent=11 // pred_check_branch
          %458 = sbr.rel (%p456) target = $region52
        $region51: #{tpu_custom_call.1} parent=11 // pred_region
          %s460 = ssub.s32 16, 16
          %461 = vsyncadd [#allocation23], %s460
          %s463 = sshll.u32 [#allocation22], 4
          %s464 = int_to_ptr.vmem [resolvable:$true] %s463
          %466 = dma.hbm_to_vmem [thread:$0]  %s11, 16, %s464, [#allocation23]
        $region52: #{tpu_custom_call.1} parent=11 // pred_fallthru
          _
      $region12: #{tpu_custom_call.1} parent=5 // pred_fallthru
        _
      %p467 = scmp.lt.s32.totalorder %s32, 2
      // Predicated region
      $region53: #{tpu_custom_call.1} parent=5 // pred_check
        %p468 = pneg %p467
      $region54: #{tpu_custom_call.1} parent=5 // pred_check_branch
        %470 = sbr.rel (%p468) target = $region56
      $region55: #{tpu_custom_call.1} parent=5 // pred_region
        // Predicated region
        $region57: #{tpu_custom_call.1} parent=55 // pred_check
          %p471 = pneg %p64
        $region58: #{tpu_custom_call.1} parent=55 // pred_check_branch
          %473 = sbr.rel (%p471) target = $region60
        $region59: #{tpu_custom_call.1} parent=55 // pred_region
          %s474 = sand.u32 %s54, 1
          %s475 = scalar_lea.sflag [#allocation5], %s474
          %s476 = sand.u32 %s54, 1
          %s477 = smul.addr %s476, 8
          %s478 = scalar_lea.vmem [#allocation4], %s477
          %s480 = ssub.s32 128, 128
          %481 = vsyncadd %s475, %s480
          %s482 = smul.addr %s39, 128
          %s483 = scalar_lea.hbm %s0, %s482
          %s485 = sshll.u32 %s478, 4
          %s486 = int_to_ptr.vmem [resolvable:$true] %s485
          %488 = dma.hbm_to_vmem [thread:$0]  %s483, 128, %s486, %s475
        $region60: #{tpu_custom_call.1} parent=55 // pred_fallthru
          _
        // Predicated region
        $region61: #{tpu_custom_call.1} parent=55 // pred_check
          %p489 = pneg %p90
        $region62: #{tpu_custom_call.1} parent=55 // pred_check_branch
          %491 = sbr.rel (%p489) target = $region64
        $region63: #{tpu_custom_call.1} parent=55 // pred_region
          %s492 = sand.u32 %s32, 1
          %s493 = scalar_lea.sflag [#allocation8], %s492
          %s494 = sand.u32 %s80, 1
          %s495 = scalar_lea.vmem [#allocation7], %s494
          %s497 = ssub.s32 16, 16
          %498 = vsyncadd %s493, %s497
          %s499 = smul.addr %s39, 16
          %s500 = scalar_lea.hbm %s1, %s499
          %s502 = sshll.u32 %s495, 4
          %s503 = int_to_ptr.vmem [resolvable:$true] %s502
          %505 = dma.hbm_to_vmem [thread:$0]  %s500, 16, %s503, %s493
        $region64: #{tpu_custom_call.1} parent=55 // pred_fallthru
          _
      $region56: #{tpu_custom_call.1} parent=5 // pred_fallthru
        _
      %p506 = scmp.le.s32.totalorder 1, %s32
      %p507 = scmp.lt.s32.totalorder %s32, 3
      %p508 = pnand %p506, %p507
      %p509 = pneg %p508
      // Predicated region
      $region65: #{tpu_custom_call.1} parent=5 // pred_check
        _
      $region66: #{tpu_custom_call.1} parent=5 // pred_check_branch
        %511 = sbr.rel (%p508) target = $region68
      $region67: #{tpu_custom_call.1} parent=5 // pred_region
        %s512 = ssub.s32 %s32, 1
        %s513 = sand.u32 %s57, 1
        %s514 = scalar_lea.sflag [#allocation5], %s513
        %s515 = sand.u32 %s57, 1
        %s516 = smul.addr %s515, 8
        %s517 = scalar_lea.vmem [#allocation4], %s516
        // Predicated region
        $region69: #{tpu_custom_call.1} parent=67 // pred_check
          %p518 = pneg %p70
        $region70: #{tpu_custom_call.1} parent=67 // pred_check_branch
          %520 = sbr.rel (%p518) target = $region72
        $region71: #{tpu_custom_call.1} parent=67 // pred_region
          %521 = dma.done %s514, 128
        $region72: #{tpu_custom_call.1} parent=67 // pred_fallthru
          _
        %s522 = sand.u32 %s37, 1
        %s523 = scalar_lea.sflag [#allocation8], %s522
        %s524 = sand.u32 %s83, 1
        %s525 = scalar_lea.vmem [#allocation7], %s524
        // Predicated region
        $region73: #{tpu_custom_call.1} parent=67 // pred_check
          %p526 = pneg %p96
        $region74: #{tpu_custom_call.1} parent=67 // pred_check_branch
          %528 = sbr.rel (%p526) target = $region76
        $region75: #{tpu_custom_call.1} parent=67 // pred_region
          %529 = dma.done %s523, 16
        $region76: #{tpu_custom_call.1} parent=67 // pred_fallthru
          _
        // Predicated region
        $region77: #{tpu_custom_call.1} parent=67 // pred_check
          %p530 = pneg %p117
        $region78: #{tpu_custom_call.1} parent=67 // pred_check_branch
          %532 = sbr.rel (%p530) target = $region80
        $region79: #{tpu_custom_call.1} parent=67 // pred_region
          %533 = dma.done [#allocation8], 256
        $region80: #{tpu_custom_call.1} parent=67 // pred_fallthru
          _
        // Predicated region
        $region81: #{tpu_custom_call.1} parent=67 // pred_check
          %p534 = pneg %p138
        $region82: #{tpu_custom_call.1} parent=67 // pred_check_branch
          %536 = sbr.rel (%p534) target = $region84
        $region83: #{tpu_custom_call.1} parent=67 // pred_region
          %537 = dma.done [#allocation11], 16
        $region84: #{tpu_custom_call.1} parent=67 // pred_fallthru
          _
        // Predicated region
        $region85: #{tpu_custom_call.1} parent=67 // pred_check
          %p538 = pneg %p159
        $region86: #{tpu_custom_call.1} parent=67 // pred_check_branch
          %540 = sbr.rel (%p538) target = $region88
        $region87: #{tpu_custom_call.1} parent=67 // pred_region
          %541 = dma.done [#allocation11], 256
        $region88: #{tpu_custom_call.1} parent=67 // pred_fallthru
          _
        // Predicated region
        $region89: #{tpu_custom_call.1} parent=67 // pred_check
          %p542 = pneg %p180
        $region90: #{tpu_custom_call.1} parent=67 // pred_check_branch
          %544 = sbr.rel (%p542) target = $region92
        $region91: #{tpu_custom_call.1} parent=67 // pred_region
          %545 = dma.done [#allocation14], 16
        $region92: #{tpu_custom_call.1} parent=67 // pred_fallthru
          _
        // Predicated region
        $region93: #{tpu_custom_call.1} parent=67 // pred_check
          %p546 = pneg %p201
        $region94: #{tpu_custom_call.1} parent=67 // pred_check_branch
          %548 = sbr.rel (%p546) target = $region96
        $region95: #{tpu_custom_call.1} parent=67 // pred_region
          %549 = dma.done [#allocation14], 256
        $region96: #{tpu_custom_call.1} parent=67 // pred_fallthru
          _
        // Predicated region
        $region97: #{tpu_custom_call.1} parent=67 // pred_check
          %p550 = pneg %p222
        $region98: #{tpu_custom_call.1} parent=67 // pred_check_branch
          %552 = sbr.rel (%p550) target = $region100
        $region99: #{tpu_custom_call.1} parent=67 // pred_region
          %553 = dma.done [#allocation17], 16
        $region100: #{tpu_custom_call.1} parent=67 // pred_fallthru
          _
        // Predicated region
        $region101: #{tpu_custom_call.1} parent=67 // pred_check
          %p554 = pneg %p243
        $region102: #{tpu_custom_call.1} parent=67 // pred_check_branch
          %556 = sbr.rel (%p554) target = $region104
        $region103: #{tpu_custom_call.1} parent=67 // pred_region
          %557 = dma.done [#allocation17], 256
        $region104: #{tpu_custom_call.1} parent=67 // pred_fallthru
          _
        // Predicated region
        $region105: #{tpu_custom_call.1} parent=67 // pred_check
          %p558 = pneg %p264
        $region106: #{tpu_custom_call.1} parent=67 // pred_check_branch
          %560 = sbr.rel (%p558) target = $region108
        $region107: #{tpu_custom_call.1} parent=67 // pred_region
          %561 = dma.done [#allocation20], 16
        $region108: #{tpu_custom_call.1} parent=67 // pred_fallthru
          _
        // Predicated region
        $region109: #{tpu_custom_call.1} parent=67 // pred_check
          %p562 = pneg %p285
        $region110: #{tpu_custom_call.1} parent=67 // pred_check_branch
          %564 = sbr.rel (%p562) target = $region112
        $region111: #{tpu_custom_call.1} parent=67 // pred_region
          %565 = dma.done [#allocation20], 16
        $region112: #{tpu_custom_call.1} parent=67 // pred_fallthru
          _
        // Predicated region
        $region113: #{tpu_custom_call.1} parent=67 // pred_check
          %p566 = pneg %p306
        $region114: #{tpu_custom_call.1} parent=67 // pred_check_branch
          %568 = sbr.rel (%p566) target = $region116
        $region115: #{tpu_custom_call.1} parent=67 // pred_region
          %569 = dma.done [#allocation23], 16
        $region116: #{tpu_custom_call.1} parent=67 // pred_fallthru
          _
        %s570 = sand.u32 %s57, 1
        %s571 = scalar_lea.sflag [#allocation5], %s570
        %s572 = sand.u32 %s57, 1
        %s573 = smul.addr %s572, 8
        %s574 = scalar_lea.vmem [#allocation4], %s573
        %p575 = pneg %p70
        %p576 = pneg %p67
        %s577 = sand.u32 %s37, 1
        %s578 = scalar_lea.sflag [#allocation8], %s577
        %s579 = sand.u32 %s83, 1
        %s580 = scalar_lea.vmem [#allocation7], %s579
        %p581 = pneg %p96
        %p582 = pneg %p93
        %p583 = pneg %p117
        %p584 = pneg %p114
        %p585 = pneg %p138
        %p586 = pneg %p135
        %p587 = pneg %p159
        %p588 = pneg %p156
        %p589 = pneg %p180
        %p590 = pneg %p177
        %p591 = pneg %p201
        %p592 = pneg %p198
        %p593 = pneg %p222
        %p594 = pneg %p219
        %p595 = pneg %p243
        %p596 = pneg %p240
        %p597 = pneg %p264
        %p598 = pneg %p261
        %p599 = pneg %p285
        %p600 = pneg %p282
        %p601 = pneg %p306
        %p602 = pneg %p303
        %p603 = pneg %p334
        %p604 = pneg %p331
        %s605 = sand.u32 %s321, 1
        %s606 = scalar_lea.sflag [#allocation6], %s605
        %s607 = sand.u32 %s321, 1
        %s608 = smul.addr %s607, 8
        %s609 = scalar_lea.vmem [#allocation24], %s608
        %p611 = scmp.eq.s32.totalorder %s42, 0
        // Predicated region
        $region117: #{tpu_custom_call.1} parent=67 // pred_check
          %p612 = pneg %p611
        $region118: #{tpu_custom_call.1} parent=67 // pred_check_branch
          %614 = sbr.rel (%p612) target = $region120
        $region119: #{tpu_custom_call.1} parent=67 // pred_region
          %v615 = vld [vmem:[%s517] sm:$0xff]
          %v616 = vpack.c.bf16 %v615, %v615
          %v617 = vld [vmem:[#allocation12] sm:$0xf]
          %v618 = vld [vmem:[#allocation12 + $0x4] sm:$0xf]
          %v619 = vld [vmem:[#allocation12 + $0x8] sm:$0xf]
          %v620 = vld [vmem:[#allocation12 + $0xc] sm:$0xf]
          %v621 = vld [vmem:[#allocation13] sm:$0x1]
          %v623 = vlaneseq
          %v624 = vshrl.u32 %v623, 7
          %v625 = vsub.s32 0, %v624
          %v626 = vrot.slane %v621, %v625
          %v632 = vunpack.c.l.b16 %v617
          %v633 = vunpack.c.l.b16 %v618
          %v634 = vunpack.c.l.b16 %v619
          %v635 = vunpack.c.l.b16 %v620
          %v636 = vpack.c.b16 %v633, %v632
          %v637 = vpack.c.b16 %v635, %v634
          %vm640 = vcmask 261120
          %v642 = vsel %vm640, %v616, 0
          %644 = vmatprep.subr.bf16.mxu0 0
          %645 = vmatpush1.bf16.msra.mxu0 %v636
          %646 = vmatprep.subr.bf16.mxu0 0
          %647 = vmatpush1.bf16.msra.mxu0 %v637
          %648 = vmatprep.subr.bf16.mxu0 0
          %649 = vmatpush1.bf16.msra.mxu0 0
          %650 = vmatprep.subr.bf16.mxu0 0
          %651 = vmatpush1.bf16.msra.mxu0 0
          %652 = vmatprep.subr.bf16.mxu0 0
          %653 = vmatpush1.bf16.msra.mxu0 0
          %654 = vmatprep.subr.bf16.mxu0 0
          %655 = vmatpush1.bf16.msra.mxu0 0
          %656 = vmatprep.subr.bf16.mxu0 0
          %657 = vmatpush1.bf16.msra.mxu0 0
          %658 = vmatprep.subr.bf16.mxu0 0
          %659 = vmatpush1.bf16.msra.mxu0 0
          %660 = vmatprep.subr.bf16.mxu0 0
          %661 = vmatpush1.bf16.msra.mxu0 0
          %662 = vmatprep.subr.bf16.mxu0 0
          %663 = vmatpush1.bf16.msra.mxu0 0
          %664 = vmatprep.subr.bf16.mxu0 0
          %665 = vmatpush1.bf16.msra.mxu0 0
          %666 = vmatprep.subr.bf16.mxu0 0
          %667 = vmatpush1.bf16.msra.mxu0 0
          %668 = vmatprep.subr.bf16.mxu0 0
          %669 = vmatpush1.bf16.msra.mxu0 0
          %670 = vmatprep.subr.bf16.mxu0 0
          %671 = vmatpush1.bf16.msra.mxu0 0
          %672 = vmatprep.subr.bf16.mxu0 0
          %673 = vmatpush1.bf16.msra.mxu0 0
          %674 = vmatprep.subr.bf16.mxu0 0
          %675 = vmatpush1.bf16.msra.mxu0 0
          %676 = vmatprep.mubr.bf16.mxu0 0
          %677 = vmatmul.mubr.bf16.gmra.mrb[0].mxu0 %v642
          %v678 = vpop.f32.mrb[0].mxu0
          %v679 = vadd.f32 %v626, %v678
          %v680 = vpop.f32.mrb[0].mxu0
          %v681 = vpop.f32.mrb[0].mxu0
          %v682 = vpop.f32.mrb[0].mxu0
          %683 = vdwg.mxu0
          %v684 = vld [vmem:[#allocation15] sm:$0xf]
          %v685 = vld [vmem:[#allocation15 + $0x4] sm:$0xf]
          %v686 = vld [vmem:[#allocation15 + $0x8] sm:$0xf]
          %v687 = vld [vmem:[#allocation15 + $0xc] sm:$0xf]
          %v688 = vld [vmem:[#allocation16] sm:$0x1]
          %v690 = vlaneseq
          %v691 = vshrl.u32 %v690, 7
          %v692 = vsub.s32 0, %v691
          %v693 = vrot.slane %v688, %v692
          %v699 = vunpack.c.l.b16 %v684
          %v700 = vunpack.c.l.b16 %v685
          %v701 = vunpack.c.l.b16 %v686
          %v702 = vunpack.c.l.b16 %v687
          %v703 = vpack.c.b16 %v700, %v699
          %v704 = vpack.c.b16 %v702, %v701
          %707 = vmatprep.subr.bf16.mxu0 0
          %708 = vmatpush1.bf16.msra.mxu0 %v703
          %709 = vmatprep.subr.bf16.mxu0 0
          %710 = vmatpush1.bf16.msra.mxu0 %v704
          %711 = vmatprep.subr.bf16.mxu0 0
          %712 = vmatpush1.bf16.msra.mxu0 0
          %713 = vmatprep.subr.bf16.mxu0 0
          %714 = vmatpush1.bf16.msra.mxu0 0
          %715 = vmatprep.subr.bf16.mxu0 0
          %716 = vmatpush1.bf16.msra.mxu0 0
          %717 = vmatprep.subr.bf16.mxu0 0
          %718 = vmatpush1.bf16.msra.mxu0 0
          %719 = vmatprep.subr.bf16.mxu0 0
          %720 = vmatpush1.bf16.msra.mxu0 0
          %721 = vmatprep.subr.bf16.mxu0 0
          %722 = vmatpush1.bf16.msra.mxu0 0
          %723 = vmatprep.subr.bf16.mxu0 0
          %724 = vmatpush1.bf16.msra.mxu0 0
          %725 = vmatprep.subr.bf16.mxu0 0
          %726 = vmatpush1.bf16.msra.mxu0 0
          %727 = vmatprep.subr.bf16.mxu0 0
          %728 = vmatpush1.bf16.msra.mxu0 0
          %729 = vmatprep.subr.bf16.mxu0 0
          %730 = vmatpush1.bf16.msra.mxu0 0
          %731 = vmatprep.subr.bf16.mxu0 0
          %732 = vmatpush1.bf16.msra.mxu0 0
          %733 = vmatprep.subr.bf16.mxu0 0
          %734 = vmatpush1.bf16.msra.mxu0 0
          %735 = vmatprep.subr.bf16.mxu0 0
          %736 = vmatpush1.bf16.msra.mxu0 0
          %737 = vmatprep.subr.bf16.mxu0 0
          %738 = vmatpush1.bf16.msra.mxu0 0
          %739 = vmatprep.mubr.bf16.mxu0 0
          %740 = vmatmul.mubr.bf16.gmra.mrb[0].mxu0 %v642
          %v741 = vpop.f32.mrb[0].mxu0
          %v742 = vadd.f32 %v693, %v741
          %v743 = vpop.f32.mrb[0].mxu0
          %v744 = vpop.f32.mrb[0].mxu0
          %v745 = vpop.f32.mrb[0].mxu0
          %746 = vdwg.mxu0
          %v747 = vpack.c.bf16 %v679, %v679
          %v748 = vpack.c.bf16 %v742, %v742
          %vm749 = vcmask 60416
          %750 = vst.msk [vmem:[#allocation2] sm:$0xf] %vm749, %v747
          %751 = vst.msk [vmem:[#allocation3] sm:$0xf] %vm749, %v748
          %v753 = vunpack.c.l.b16 %v747
          %v754 = vpack.c.b16 %v753, %v753
          %755 = vrot.lane.b32.xlu0 %v754, 120
          %v756 = vpop.permute.xlu0 %755
          %s758 = scalar_lea.vmem [#allocation2], 4
          %759 = vst.msk [vmem:[%s758] sm:$0xf] %vm749, %v756
          %v761 = vunpack.c.l.b16 %v748
          %v762 = vpack.c.b16 %v761, %v761
          %763 = vrot.lane.b32.xlu0 %v762, 120
          %v764 = vpop.permute.xlu0 %763
          %s766 = scalar_lea.vmem [#allocation3], 4
          %767 = vst.msk [vmem:[%s766] sm:$0xf] %vm749, %v764
          %768 = vrot.lane.b32.xlu0 %v754, 112
          %v769 = vpop.permute.xlu0 %768
          %s771 = scalar_lea.vmem [#allocation2], 8
          %772 = vst.msk [vmem:[%s771] sm:$0xf] %vm749, %v769
          %773 = vrot.lane.b32.xlu0 %v762, 112
          %v774 = vpop.permute.xlu0 %773
          %s776 = scalar_lea.vmem [#allocation3], 8
          %777 = vst.msk [vmem:[%s776] sm:$0xf] %vm749, %v774
          %778 = vrot.lane.b32.xlu0 %v754, 104
          %v779 = vpop.permute.xlu0 %778
          %s781 = scalar_lea.vmem [#allocation2], 12
          %782 = vst.msk [vmem:[%s781] sm:$0xf] %vm749, %v779
          %783 = vrot.lane.b32.xlu0 %v762, 104
          %v784 = vpop.permute.xlu0 %783
          %s786 = scalar_lea.vmem [#allocation3], 12
          %787 = vst.msk [vmem:[%s786] sm:$0xf] %vm749, %v784
        $region120: #{tpu_custom_call.1} parent=67 // pred_fallthru
          _
        %v788 = vld [vmem:[%s517] sm:$0xff]
        %v789 = vpack.c.bf16 %v788, %v788
        %v790 = vld [vmem:[#allocation9] sm:$0xf]
        %v791 = vld [vmem:[#allocation9 + $0x4] sm:$0xf]
        %v792 = vld [vmem:[#allocation9 + $0x8] sm:$0xf]
        %v793 = vld [vmem:[#allocation9 + $0xc] sm:$0xf]
        %v794 = vld [vmem:[#allocation10] sm:$0x1]
        %v796 = vlaneseq
        %v797 = vshrl.u32 %v796, 7
        %v798 = vsub.s32 0, %v797
        %v799 = vrot.slane %v794, %v798
        %v805 = vunpack.c.l.b16 %v790
        %v806 = vunpack.c.l.b16 %v791
        %v807 = vunpack.c.l.b16 %v792
        %v808 = vunpack.c.l.b16 %v793
        %v809 = vpack.c.b16 %v806, %v805
        %v810 = vpack.c.b16 %v808, %v807
        %vm813 = vcmask 261120
        %v815 = vsel %vm813, %v789, 0
        %817 = vmatprep.subr.bf16.mxu0 0
        %818 = vmatpush1.bf16.msra.mxu0 %v809
        %819 = vmatprep.subr.bf16.mxu0 0
        %820 = vmatpush1.bf16.msra.mxu0 %v810
        %821 = vmatprep.subr.bf16.mxu0 0
        %822 = vmatpush1.bf16.msra.mxu0 0
        %823 = vmatprep.subr.bf16.mxu0 0
        %824 = vmatpush1.bf16.msra.mxu0 0
        %825 = vmatprep.subr.bf16.mxu0 0
        %826 = vmatpush1.bf16.msra.mxu0 0
        %827 = vmatprep.subr.bf16.mxu0 0
        %828 = vmatpush1.bf16.msra.mxu0 0
        %829 = vmatprep.subr.bf16.mxu0 0
        %830 = vmatpush1.bf16.msra.mxu0 0
        %831 = vmatprep.subr.bf16.mxu0 0
        %832 = vmatpush1.bf16.msra.mxu0 0
        %833 = vmatprep.subr.bf16.mxu0 0
        %834 = vmatpush1.bf16.msra.mxu0 0
        %835 = vmatprep.subr.bf16.mxu0 0
        %836 = vmatpush1.bf16.msra.mxu0 0
        %837 = vmatprep.subr.bf16.mxu0 0
        %838 = vmatpush1.bf16.msra.mxu0 0
        %839 = vmatprep.subr.bf16.mxu0 0
        %840 = vmatpush1.bf16.msra.mxu0 0
        %841 = vmatprep.subr.bf16.mxu0 0
        %842 = vmatpush1.bf16.msra.mxu0 0
        %843 = vmatprep.subr.bf16.mxu0 0
        %844 = vmatpush1.bf16.msra.mxu0 0
        %845 = vmatprep.subr.bf16.mxu0 0
        %846 = vmatpush1.bf16.msra.mxu0 0
        %847 = vmatprep.subr.bf16.mxu0 0
        %848 = vmatpush1.bf16.msra.mxu0 0
        %849 = vmatprep.mubr.bf16.mxu0 0
        %850 = vmatmul.mubr.bf16.gmra.mrb[0].mxu0 %v815
        %v851 = vpop.f32.mrb[0].mxu0
        %v852 = vadd.f32 %v799, %v851
        %v853 = vpop.f32.mrb[0].mxu0
        %v854 = vpop.f32.mrb[0].mxu0
        %v855 = vpop.f32.mrb[0].mxu0
        %856 = vdwg.mxu0
        %v857 = vpack.c.bf16 %v852, %v852
        %859 = vrot.lane.b32.xlu0 %v857, 120
        %v860 = vpop.permute.xlu0 %859
        %861 = vrot.lane.b32.xlu0 %v857, 112
        %v862 = vpop.permute.xlu0 %861
        %863 = vrot.lane.b32.xlu0 %v857, 104
        %v864 = vpop.permute.xlu0 %863
        %v865 = vld [vmem:[#allocation2] sm:$0xf]
        %v866 = vld [vmem:[#allocation2 + $0x4] sm:$0xf]
        %v867 = vld [vmem:[#allocation2 + $0x8] sm:$0xf]
        %v868 = vld [vmem:[#allocation2 + $0xc] sm:$0xf]
        %v869 = vld [vmem:[#allocation3] sm:$0xf]
        %v870 = vld [vmem:[#allocation3 + $0x4] sm:$0xf]
        %v871 = vld [vmem:[#allocation3 + $0x8] sm:$0xf]
        %v872 = vld [vmem:[#allocation3 + $0xc] sm:$0xf]
        %v873 = vld [vmem:[%s525] sm:$0x1]
        %v875 = vlaneseq
        %v876 = vshrl.u32 %v875, 7
        %v877 = vsub.s32 0, %v876
        %v878 = vrot.slane %v873, %v877
        %vm880 = vcmask 64512
        %v882 = vsel %vm880, %v857, 0
        %v885 = vsel %vm880, %v865, 0
        %887 = vmatprep.subr.bf16.mxu0 0
        %888 = vmatpush1.bf16.xpose.msra.mxu0 %v885
        %889 = vmatprep.subr.bf16.mxu0 0
        %890 = vmatpush1.bf16.xpose.msra.mxu0 0
        %891 = vmatprep.subr.bf16.mxu0 0
        %892 = vmatpush1.bf16.xpose.msra.mxu0 0
        %893 = vmatprep.subr.bf16.mxu0 0
        %894 = vmatpush1.bf16.xpose.msra.mxu0 0
        %895 = vmatprep.subr.bf16.mxu0 0
        %896 = vmatpush1.bf16.xpose.msra.mxu0 0
        %897 = vmatprep.subr.bf16.mxu0 0
        %898 = vmatpush1.bf16.xpose.msra.mxu0 0
        %899 = vmatprep.subr.bf16.mxu0 0
        %900 = vmatpush1.bf16.xpose.msra.mxu0 0
        %901 = vmatprep.subr.bf16.mxu0 0
        %902 = vmatpush1.bf16.xpose.msra.mxu0 0
        %903 = vmatprep.subr.bf16.mxu0 0
        %904 = vmatpush1.bf16.xpose.msra.mxu0 0
        %905 = vmatprep.subr.bf16.mxu0 0
        %906 = vmatpush1.bf16.xpose.msra.mxu0 0
        %907 = vmatprep.subr.bf16.mxu0 0
        %908 = vmatpush1.bf16.xpose.msra.mxu0 0
        %909 = vmatprep.subr.bf16.mxu0 0
        %910 = vmatpush1.bf16.xpose.msra.mxu0 0
        %911 = vmatprep.subr.bf16.mxu0 0
        %912 = vmatpush1.bf16.xpose.msra.mxu0 0
        %913 = vmatprep.subr.bf16.mxu0 0
        %914 = vmatpush1.bf16.xpose.msra.mxu0 0
        %915 = vmatprep.subr.bf16.mxu0 0
        %916 = vmatpush1.bf16.xpose.msra.mxu0 0
        %917 = vmatprep.subr.bf16.mxu0 0
        %918 = vmatpush1.bf16.xpose.msra.mxu0 0
        %919 = vmatprep.mubr.bf16.mxu0 0
        %920 = vmatmul.mubr.bf16.gmra.mrb[0].mxu0 %v882
        %v921 = vpop.f32.mrb[0].mxu0
        %v922 = vadd.f32 %v878, %v921
        %v923 = vpop.f32.mrb[0].mxu0
        %v924 = vpop.f32.mrb[0].mxu0
        %v925 = vpop.f32.mrb[0].mxu0
        %926 = vdwg.mxu0
        %v928 = vsel %vm880, %v860, 0
        %v931 = vsel %vm880, %v866, 0
        %933 = vmatprep.subr.bf16.mxu0 0
        %934 = vmatpush1.bf16.xpose.msra.mxu0 %v931
        %935 = vmatprep.subr.bf16.mxu0 0
        %936 = vmatpush1.bf16.xpose.msra.mxu0 0
        %937 = vmatprep.subr.bf16.mxu0 0
        %938 = vmatpush1.bf16.xpose.msra.mxu0 0
        %939 = vmatprep.subr.bf16.mxu0 0
        %940 = vmatpush1.bf16.xpose.msra.mxu0 0
        %941 = vmatprep.subr.bf16.mxu0 0
        %942 = vmatpush1.bf16.xpose.msra.mxu0 0
        %943 = vmatprep.subr.bf16.mxu0 0
        %944 = vmatpush1.bf16.xpose.msra.mxu0 0
        %945 = vmatprep.subr.bf16.mxu0 0
        %946 = vmatpush1.bf16.xpose.msra.mxu0 0
        %947 = vmatprep.subr.bf16.mxu0 0
        %948 = vmatpush1.bf16.xpose.msra.mxu0 0
        %949 = vmatprep.subr.bf16.mxu0 0
        %950 = vmatpush1.bf16.xpose.msra.mxu0 0
        %951 = vmatprep.subr.bf16.mxu0 0
        %952 = vmatpush1.bf16.xpose.msra.mxu0 0
        %953 = vmatprep.subr.bf16.mxu0 0
        %954 = vmatpush1.bf16.xpose.msra.mxu0 0
        %955 = vmatprep.subr.bf16.mxu0 0
        %956 = vmatpush1.bf16.xpose.msra.mxu0 0
        %957 = vmatprep.subr.bf16.mxu0 0
        %958 = vmatpush1.bf16.xpose.msra.mxu0 0
        %959 = vmatprep.subr.bf16.mxu0 0
        %960 = vmatpush1.bf16.xpose.msra.mxu0 0
        %961 = vmatprep.subr.bf16.mxu0 0
        %962 = vmatpush1.bf16.xpose.msra.mxu0 0
        %963 = vmatprep.subr.bf16.mxu0 0
        %964 = vmatpush1.bf16.xpose.msra.mxu0 0
        %965 = vmatprep.mubr.bf16.mxu0 0
        %966 = vmatmul.mubr.bf16.gmra.mrb[0].mxu0 %v928
        %v967 = vpop.f32.mrb[0].mxu0
        %v968 = vadd.f32 %v878, %v967
        %v969 = vpop.f32.mrb[0].mxu0
        %v970 = vpop.f32.mrb[0].mxu0
        %v971 = vpop.f32.mrb[0].mxu0
        %972 = vdwg.mxu0
        %v974 = vsel %vm880, %v862, 0
        %v977 = vsel %vm880, %v867, 0
        %979 = vmatprep.subr.bf16.mxu0 0
        %980 = vmatpush1.bf16.xpose.msra.mxu0 %v977
        %981 = vmatprep.subr.bf16.mxu0 0
        %982 = vmatpush1.bf16.xpose.msra.mxu0 0
        %983 = vmatprep.subr.bf16.mxu0 0
        %984 = vmatpush1.bf16.xpose.msra.mxu0 0
        %985 = vmatprep.subr.bf16.mxu0 0
        %986 = vmatpush1.bf16.xpose.msra.mxu0 0
        %987 = vmatprep.subr.bf16.mxu0 0
        %988 = vmatpush1.bf16.xpose.msra.mxu0 0
        %989 = vmatprep.subr.bf16.mxu0 0
        %990 = vmatpush1.bf16.xpose.msra.mxu0 0
        %991 = vmatprep.subr.bf16.mxu0 0
        %992 = vmatpush1.bf16.xpose.msra.mxu0 0
        %993 = vmatprep.subr.bf16.mxu0 0
        %994 = vmatpush1.bf16.xpose.msra.mxu0 0
        %995 = vmatprep.subr.bf16.mxu0 0
        %996 = vmatpush1.bf16.xpose.msra.mxu0 0
        %997 = vmatprep.subr.bf16.mxu0 0
        %998 = vmatpush1.bf16.xpose.msra.mxu0 0
        %999 = vmatprep.subr.bf16.mxu0 0
        %1000 = vmatpush1.bf16.xpose.msra.mxu0 0
        %1001 = vmatprep.subr.bf16.mxu0 0
        %1002 = vmatpush1.bf16.xpose.msra.mxu0 0
        %1003 = vmatprep.subr.bf16.mxu0 0
        %1004 = vmatpush1.bf16.xpose.msra.mxu0 0
        %1005 = vmatprep.subr.bf16.mxu0 0
        %1006 = vmatpush1.bf16.xpose.msra.mxu0 0
        %1007 = vmatprep.subr.bf16.mxu0 0
        %1008 = vmatpush1.bf16.xpose.msra.mxu0 0
        %1009 = vmatprep.subr.bf16.mxu0 0
        %1010 = vmatpush1.bf16.xpose.msra.mxu0 0
        %1011 = vmatprep.mubr.bf16.mxu0 0
        %1012 = vmatmul.mubr.bf16.gmra.mrb[0].mxu0 %v974
        %v1013 = vpop.f32.mrb[0].mxu0
        %v1014 = vadd.f32 %v878, %v1013
        %v1015 = vpop.f32.mrb[0].mxu0
        %v1016 = vpop.f32.mrb[0].mxu0
        %v1017 = vpop.f32.mrb[0].mxu0
        %1018 = vdwg.mxu0
        %v1020 = vsel %vm880, %v864, 0
        %v1023 = vsel %vm880, %v868, 0
        %1025 = vmatprep.subr.bf16.mxu0 0
        %1026 = vmatpush1.bf16.xpose.msra.mxu0 %v1023
        %1027 = vmatprep.subr.bf16.mxu0 0
        %1028 = vmatpush1.bf16.xpose.msra.mxu0 0
        %1029 = vmatprep.subr.bf16.mxu0 0
        %1030 = vmatpush1.bf16.xpose.msra.mxu0 0
        %1031 = vmatprep.subr.bf16.mxu0 0
        %1032 = vmatpush1.bf16.xpose.msra.mxu0 0
        %1033 = vmatprep.subr.bf16.mxu0 0
        %1034 = vmatpush1.bf16.xpose.msra.mxu0 0
        %1035 = vmatprep.subr.bf16.mxu0 0
        %1036 = vmatpush1.bf16.xpose.msra.mxu0 0
        %1037 = vmatprep.subr.bf16.mxu0 0
        %1038 = vmatpush1.bf16.xpose.msra.mxu0 0
        %1039 = vmatprep.subr.bf16.mxu0 0
        %1040 = vmatpush1.bf16.xpose.msra.mxu0 0
        %1041 = vmatprep.subr.bf16.mxu0 0
        %1042 = vmatpush1.bf16.xpose.msra.mxu0 0
        %1043 = vmatprep.subr.bf16.mxu0 0
        %1044 = vmatpush1.bf16.xpose.msra.mxu0 0
        %1045 = vmatprep.subr.bf16.mxu0 0
        %1046 = vmatpush1.bf16.xpose.msra.mxu0 0
        %1047 = vmatprep.subr.bf16.mxu0 0
        %1048 = vmatpush1.bf16.xpose.msra.mxu0 0
        %1049 = vmatprep.subr.bf16.mxu0 0
        %1050 = vmatpush1.bf16.xpose.msra.mxu0 0
        %1051 = vmatprep.subr.bf16.mxu0 0
        %1052 = vmatpush1.bf16.xpose.msra.mxu0 0
        %1053 = vmatprep.subr.bf16.mxu0 0
        %1054 = vmatpush1.bf16.xpose.msra.mxu0 0
        %1055 = vmatprep.subr.bf16.mxu0 0
        %1056 = vmatpush1.bf16.xpose.msra.mxu0 0
        %1057 = vmatprep.mubr.bf16.mxu0 0
        %1058 = vmatmul.mubr.bf16.gmra.mrb[0].mxu0 %v1020
        %v1059 = vpop.f32.mrb[0].mxu0
        %v1060 = vadd.f32 %v878, %v1059
        %v1061 = vpop.f32.mrb[0].mxu0
        %v1062 = vpop.f32.mrb[0].mxu0
        %v1063 = vpop.f32.mrb[0].mxu0
        %1064 = vdwg.mxu0
        %v1065 = vsel %vm880, %v922, -inf
        %1066 = vmax.xlane.f32.xlu0 %v1065
        %v1067 = vpop.xlane.xlu0 %1066
        %v1068 = vsel %vm880, %v968, -inf
        %1069 = vmax.xlane.f32.xlu0 %v1068
        %v1070 = vpop.xlane.xlu0 %1069
        %v1071 = vsel %vm880, %v1014, -inf
        %1072 = vmax.xlane.f32.xlu0 %v1071
        %v1073 = vpop.xlane.xlu0 %1072
        %v1074 = vsel %vm880, %v1060, -inf
        %1075 = vmax.xlane.f32.xlu0 %v1074
        %v1076 = vpop.xlane.xlu0 %1075
        %v1077 = vsub.f32 %v922, %v1067
        %v1078 = vsub.f32 %v968, %v1070
        %v1079 = vsub.f32 %v1014, %v1073
        %v1080 = vsub.f32 %v1060, %v1076
        %v1081 = vmul.f32 %v1077, 1.442695
        %v1082 = vpow.pop %v1081
        %v1083 = vmul.f32 %v1078, 1.442695
        %v1084 = vpow.pop %v1083
        %v1085 = vmul.f32 %v1079, 1.442695
        %v1086 = vpow.pop %v1085
        %v1087 = vmul.f32 %v1080, 1.442695
        %v1088 = vpow.pop %v1087
        %v1089 = vsel %vm880, %v1082, 0.0
        %1090 = vadd.xlane.f32.xlu0 %v1089
        %v1091 = vpop.xlane.xlu0 %1090
        %v1092 = vsel %vm880, %v1084, 0.0
        %1093 = vadd.xlane.f32.xlu0 %v1092
        %v1094 = vpop.xlane.xlu0 %1093
        %v1095 = vsel %vm880, %v1086, 0.0
        %1096 = vadd.xlane.f32.xlu0 %v1095
        %v1097 = vpop.xlane.xlu0 %1096
        %v1098 = vsel %vm880, %v1088, 0.0
        %1099 = vadd.xlane.f32.xlu0 %v1098
        %v1100 = vpop.xlane.xlu0 %1099
        %v1101 = vrcp.pop %v1091
        %v1102 = vrcp.pop %v1094
        %v1103 = vrcp.pop %v1097
        %v1104 = vrcp.pop %v1100
        %v1105 = vmul.f32 %v1082, %v1101
        %v1106 = vmul.f32 %v1084, %v1102
        %v1107 = vmul.f32 %v1086, %v1103
        %v1108 = vmul.f32 %v1088, %v1104
        %v1109 = vpack.c.bf16 %v1105, %v1105
        %v1110 = vpack.c.bf16 %v1106, %v1106
        %v1111 = vpack.c.bf16 %v1107, %v1107
        %v1112 = vpack.c.bf16 %v1108, %v1108
        %v1114 = vsel %vm880, %v1109, 0
        %vm1116 = vcmask 1043456
        %v1118 = vsel %vm1116, %v869, 0
        %1120 = vmatprep.subr.bf16.mxu0 0
        %1121 = vmatpush1.bf16.msra.mxu0 %v1118
        %1122 = vmatprep.subr.bf16.mxu0 0
        %1123 = vmatpush1.bf16.msra.mxu0 0
        %1124 = vmatprep.subr.bf16.mxu0 0
        %1125 = vmatpush1.bf16.msra.mxu0 0
        %1126 = vmatprep.subr.bf16.mxu0 0
        %1127 = vmatpush1.bf16.msra.mxu0 0
        %1128 = vmatprep.subr.bf16.mxu0 0
        %1129 = vmatpush1.bf16.msra.mxu0 0
        %1130 = vmatprep.subr.bf16.mxu0 0
        %1131 = vmatpush1.bf16.msra.mxu0 0
        %1132 = vmatprep.subr.bf16.mxu0 0
        %1133 = vmatpush1.bf16.msra.mxu0 0
        %1134 = vmatprep.subr.bf16.mxu0 0
        %1135 = vmatpush1.bf16.msra.mxu0 0
        %1136 = vmatprep.subr.bf16.mxu0 0
        %1137 = vmatpush1.bf16.msra.mxu0 0
        %1138 = vmatprep.subr.bf16.mxu0 0
        %1139 = vmatpush1.bf16.msra.mxu0 0
        %1140 = vmatprep.subr.bf16.mxu0 0
        %1141 = vmatpush1.bf16.msra.mxu0 0
        %1142 = vmatprep.subr.bf16.mxu0 0
        %1143 = vmatpush1.bf16.msra.mxu0 0
        %1144 = vmatprep.subr.bf16.mxu0 0
        %1145 = vmatpush1.bf16.msra.mxu0 0
        %1146 = vmatprep.subr.bf16.mxu0 0
        %1147 = vmatpush1.bf16.msra.mxu0 0
        %1148 = vmatprep.subr.bf16.mxu0 0
        %1149 = vmatpush1.bf16.msra.mxu0 0
        %1150 = vmatprep.subr.bf16.mxu0 0
        %1151 = vmatpush1.bf16.msra.mxu0 0
        %1152 = vmatprep.mubr.bf16.mxu0 0
        %1153 = vmatmul.mubr.bf16.gmra.mrb[0].mxu0 %v1114
        %v1154 = vpop.f32.mrb[0].mxu0
        %v1155 = vadd.f32 0.0, %v1154
        %v1156 = vpop.f32.mrb[0].mxu0
        %v1157 = vpop.f32.mrb[0].mxu0
        %v1158 = vpop.f32.mrb[0].mxu0
        %1159 = vdwg.mxu0
        %v1161 = vsel %vm880, %v1110, 0
        %v1164 = vsel %vm1116, %v870, 0
        %1166 = vmatprep.subr.bf16.mxu0 0
        %1167 = vmatpush1.bf16.msra.mxu0 %v1164
        %1168 = vmatprep.subr.bf16.mxu0 0
        %1169 = vmatpush1.bf16.msra.mxu0 0
        %1170 = vmatprep.subr.bf16.mxu0 0
        %1171 = vmatpush1.bf16.msra.mxu0 0
        %1172 = vmatprep.subr.bf16.mxu0 0
        %1173 = vmatpush1.bf16.msra.mxu0 0
        %1174 = vmatprep.subr.bf16.mxu0 0
        %1175 = vmatpush1.bf16.msra.mxu0 0
        %1176 = vmatprep.subr.bf16.mxu0 0
        %1177 = vmatpush1.bf16.msra.mxu0 0
        %1178 = vmatprep.subr.bf16.mxu0 0
        %1179 = vmatpush1.bf16.msra.mxu0 0
        %1180 = vmatprep.subr.bf16.mxu0 0
        %1181 = vmatpush1.bf16.msra.mxu0 0
        %1182 = vmatprep.subr.bf16.mxu0 0
        %1183 = vmatpush1.bf16.msra.mxu0 0
        %1184 = vmatprep.subr.bf16.mxu0 0
        %1185 = vmatpush1.bf16.msra.mxu0 0
        %1186 = vmatprep.subr.bf16.mxu0 0
        %1187 = vmatpush1.bf16.msra.mxu0 0
        %1188 = vmatprep.subr.bf16.mxu0 0
        %1189 = vmatpush1.bf16.msra.mxu0 0
        %1190 = vmatprep.subr.bf16.mxu0 0
        %1191 = vmatpush1.bf16.msra.mxu0 0
        %1192 = vmatprep.subr.bf16.mxu0 0
        %1193 = vmatpush1.bf16.msra.mxu0 0
        %1194 = vmatprep.subr.bf16.mxu0 0
        %1195 = vmatpush1.bf16.msra.mxu0 0
        %1196 = vmatprep.subr.bf16.mxu0 0
        %1197 = vmatpush1.bf16.msra.mxu0 0
        %1198 = vmatprep.mubr.bf16.mxu0 0
        %1199 = vmatmul.mubr.bf16.gmra.mrb[0].mxu0 %v1161
        %v1200 = vpop.f32.mrb[0].mxu0
        %v1201 = vadd.f32 0.0, %v1200
        %v1202 = vpop.f32.mrb[0].mxu0
        %v1203 = vpop.f32.mrb[0].mxu0
        %v1204 = vpop.f32.mrb[0].mxu0
        %1205 = vdwg.mxu0
        %v1207 = vsel %vm880, %v1111, 0
        %v1210 = vsel %vm1116, %v871, 0
        %1212 = vmatprep.subr.bf16.mxu0 0
        %1213 = vmatpush1.bf16.msra.mxu0 %v1210
        %1214 = vmatprep.subr.bf16.mxu0 0
        %1215 = vmatpush1.bf16.msra.mxu0 0
        %1216 = vmatprep.subr.bf16.mxu0 0
        %1217 = vmatpush1.bf16.msra.mxu0 0
        %1218 = vmatprep.subr.bf16.mxu0 0
        %1219 = vmatpush1.bf16.msra.mxu0 0
        %1220 = vmatprep.subr.bf16.mxu0 0
        %1221 = vmatpush1.bf16.msra.mxu0 0
        %1222 = vmatprep.subr.bf16.mxu0 0
        %1223 = vmatpush1.bf16.msra.mxu0 0
        %1224 = vmatprep.subr.bf16.mxu0 0
        %1225 = vmatpush1.bf16.msra.mxu0 0
        %1226 = vmatprep.subr.bf16.mxu0 0
        %1227 = vmatpush1.bf16.msra.mxu0 0
        %1228 = vmatprep.subr.bf16.mxu0 0
        %1229 = vmatpush1.bf16.msra.mxu0 0
        %1230 = vmatprep.subr.bf16.mxu0 0
        %1231 = vmatpush1.bf16.msra.mxu0 0
        %1232 = vmatprep.subr.bf16.mxu0 0
        %1233 = vmatpush1.bf16.msra.mxu0 0
        %1234 = vmatprep.subr.bf16.mxu0 0
        %1235 = vmatpush1.bf16.msra.mxu0 0
        %1236 = vmatprep.subr.bf16.mxu0 0
        %1237 = vmatpush1.bf16.msra.mxu0 0
        %1238 = vmatprep.subr.bf16.mxu0 0
        %1239 = vmatpush1.bf16.msra.mxu0 0
        %1240 = vmatprep.subr.bf16.mxu0 0
        %1241 = vmatpush1.bf16.msra.mxu0 0
        %1242 = vmatprep.subr.bf16.mxu0 0
        %1243 = vmatpush1.bf16.msra.mxu0 0
        %1244 = vmatprep.mubr.bf16.mxu0 0
        %1245 = vmatmul.mubr.bf16.gmra.mrb[0].mxu0 %v1207
        %v1246 = vpop.f32.mrb[0].mxu0
        %v1247 = vadd.f32 0.0, %v1246
        %v1248 = vpop.f32.mrb[0].mxu0
        %v1249 = vpop.f32.mrb[0].mxu0
        %v1250 = vpop.f32.mrb[0].mxu0
        %1251 = vdwg.mxu0
        %v1253 = vsel %vm880, %v1112, 0
        %v1256 = vsel %vm1116, %v872, 0
        %1258 = vmatprep.subr.bf16.mxu0 0
        %1259 = vmatpush1.bf16.msra.mxu0 %v1256
        %1260 = vmatprep.subr.bf16.mxu0 0
        %1261 = vmatpush1.bf16.msra.mxu0 0
        %1262 = vmatprep.subr.bf16.mxu0 0
        %1263 = vmatpush1.bf16.msra.mxu0 0
        %1264 = vmatprep.subr.bf16.mxu0 0
        %1265 = vmatpush1.bf16.msra.mxu0 0
        %1266 = vmatprep.subr.bf16.mxu0 0
        %1267 = vmatpush1.bf16.msra.mxu0 0
        %1268 = vmatprep.subr.bf16.mxu0 0
        %1269 = vmatpush1.bf16.msra.mxu0 0
        %1270 = vmatprep.subr.bf16.mxu0 0
        %1271 = vmatpush1.bf16.msra.mxu0 0
        %1272 = vmatprep.subr.bf16.mxu0 0
        %1273 = vmatpush1.bf16.msra.mxu0 0
        %1274 = vmatprep.subr.bf16.mxu0 0
        %1275 = vmatpush1.bf16.msra.mxu0 0
        %1276 = vmatprep.subr.bf16.mxu0 0
        %1277 = vmatpush1.bf16.msra.mxu0 0
        %1278 = vmatprep.subr.bf16.mxu0 0
        %1279 = vmatpush1.bf16.msra.mxu0 0
        %1280 = vmatprep.subr.bf16.mxu0 0
        %1281 = vmatpush1.bf16.msra.mxu0 0
        %1282 = vmatprep.subr.bf16.mxu0 0
        %1283 = vmatpush1.bf16.msra.mxu0 0
        %1284 = vmatprep.subr.bf16.mxu0 0
        %1285 = vmatpush1.bf16.msra.mxu0 0
        %1286 = vmatprep.subr.bf16.mxu0 0
        %1287 = vmatpush1.bf16.msra.mxu0 0
        %1288 = vmatprep.subr.bf16.mxu0 0
        %1289 = vmatpush1.bf16.msra.mxu0 0
        %1290 = vmatprep.mubr.bf16.mxu0 0
        %1291 = vmatmul.mubr.bf16.gmra.mrb[0].mxu0 %v1253
        %v1292 = vpop.f32.mrb[0].mxu0
        %v1293 = vadd.f32 0.0, %v1292
        %v1294 = vpop.f32.mrb[0].mxu0
        %v1295 = vpop.f32.mrb[0].mxu0
        %v1296 = vpop.f32.mrb[0].mxu0
        %1297 = vdwg.mxu0
        %1299 = vrot.lane.b32.xlu0 %v1201, 8
        %v1300 = vpop.permute.xlu0 %1299
        %1303 = vrot.lane.b32.xlu0 %v1247, 16
        %v1304 = vpop.permute.xlu0 %1303
        %1307 = vrot.lane.b32.xlu0 %v1293, 24
        %v1308 = vpop.permute.xlu0 %1307
        %v1310 = vsel %vm880, %v1155, %v1300
        %vm1311 = vcmask 130048
        %v1312 = vsel %vm1311, %v1310, %v1304
        %vm1313 = vcmask 195584
        %v1314 = vsel %vm1313, %v1312, %v1308
        %v1315 = vpack.c.bf16 %v1314, %v1314
        %v1316 = vld [vmem:[#allocation18] sm:$0xf]
        %v1317 = vld [vmem:[#allocation18 + $0x4] sm:$0xf]
        %v1318 = vld [vmem:[#allocation18 + $0x8] sm:$0xf]
        %v1319 = vld [vmem:[#allocation18 + $0xc] sm:$0xf]
        %v1320 = vld [vmem:[#allocation19] sm:$0x1]
        %v1322 = vlaneseq
        %v1323 = vshrl.u32 %v1322, 7
        %v1324 = vsub.s32 0, %v1323
        %v1325 = vrot.slane %v1320, %v1324
        %v1331 = vunpack.c.l.b16 %v1316
        %v1332 = vunpack.c.l.b16 %v1317
        %v1333 = vunpack.c.l.b16 %v1318
        %v1334 = vunpack.c.l.b16 %v1319
        %v1335 = vpack.c.b16 %v1332, %v1331
        %v1336 = vpack.c.b16 %v1334, %v1333
        %v1340 = vsel %vm813, %v1315, 0
        %1342 = vmatprep.subr.bf16.mxu0 0
        %1343 = vmatpush1.bf16.msra.mxu0 %v1335
        %1344 = vmatprep.subr.bf16.mxu0 0
        %1345 = vmatpush1.bf16.msra.mxu0 %v1336
        %1346 = vmatprep.subr.bf16.mxu0 0
        %1347 = vmatpush1.bf16.msra.mxu0 0
        %1348 = vmatprep.subr.bf16.mxu0 0
        %1349 = vmatpush1.bf16.msra.mxu0 0
        %1350 = vmatprep.subr.bf16.mxu0 0
        %1351 = vmatpush1.bf16.msra.mxu0 0
        %1352 = vmatprep.subr.bf16.mxu0 0
        %1353 = vmatpush1.bf16.msra.mxu0 0
        %1354 = vmatprep.subr.bf16.mxu0 0
        %1355 = vmatpush1.bf16.msra.mxu0 0
        %1356 = vmatprep.subr.bf16.mxu0 0
        %1357 = vmatpush1.bf16.msra.mxu0 0
        %1358 = vmatprep.subr.bf16.mxu0 0
        %1359 = vmatpush1.bf16.msra.mxu0 0
        %1360 = vmatprep.subr.bf16.mxu0 0
        %1361 = vmatpush1.bf16.msra.mxu0 0
        %1362 = vmatprep.subr.bf16.mxu0 0
        %1363 = vmatpush1.bf16.msra.mxu0 0
        %1364 = vmatprep.subr.bf16.mxu0 0
        %1365 = vmatpush1.bf16.msra.mxu0 0
        %1366 = vmatprep.subr.bf16.mxu0 0
        %1367 = vmatpush1.bf16.msra.mxu0 0
        %1368 = vmatprep.subr.bf16.mxu0 0
        %1369 = vmatpush1.bf16.msra.mxu0 0
        %1370 = vmatprep.subr.bf16.mxu0 0
        %1371 = vmatpush1.bf16.msra.mxu0 0
        %1372 = vmatprep.subr.bf16.mxu0 0
        %1373 = vmatpush1.bf16.msra.mxu0 0
        %1374 = vmatprep.mubr.bf16.mxu0 0
        %1375 = vmatmul.mubr.bf16.gmra.mrb[0].mxu0 %v1340
        %v1376 = vpop.f32.mrb[0].mxu0
        %v1377 = vadd.f32 %v1325, %v1376
        %v1378 = vpop.f32.mrb[0].mxu0
        %v1379 = vpop.f32.mrb[0].mxu0
        %v1380 = vpop.f32.mrb[0].mxu0
        %1381 = vdwg.mxu0
        %v1382 = vadd.f32 %v1377, %v788
        %v1383 = vsel %vm813, %v1382, 0.0
        %1384 = vadd.xlane.f32.xlu0 %v1383
        %v1385 = vpop.xlane.xlu0 %1384
        %v1386 = vrcp.pop 32.0
        %v1387 = vmul.f32 %v1385, %v1386
        %v1388 = vsub.f32 %v1382, %v1387
        %v1389 = vmul.f32 %v1388, %v1388
        %v1390 = vsel %vm813, %v1389, 0.0
        %1391 = vadd.xlane.f32.xlu0 %v1390
        %v1392 = vpop.xlane.xlu0 %1391
        %v1393 = vmul.f32 %v1392, %v1386
        %v1394 = vadd.f32 %v1393, 1e-12
        %v1395 = vrsqrt.pop %v1394
        %v1396 = vmul.f32 %v1388, %v1395
        %v1397 = vld [vmem:[#allocation21] sm:$0x1]
        %v1399 = vlaneseq
        %v1400 = vshrl.u32 %v1399, 7
        %v1401 = vsub.s32 0, %v1400
        %v1402 = vrot.slane %v1397, %v1401
        %v1404 = vmul.f32 %v1396, %v1402
        %v1405 = vld [vmem:[#allocation22] sm:$0x1]
        %v1407 = vlaneseq
        %v1408 = vshrl.u32 %v1407, 7
        %v1409 = vsub.s32 0, %v1408
        %v1410 = vrot.slane %v1405, %v1409
        %v1412 = vadd.f32 %v1404, %v1410
        %v1413 = vmul.f32 %v1412, 0.5
        %v1414 = vrcp.pop 1.4142135
        %v1415 = vmul.f32 %v1412, %v1414
        %v1416 = verf.f32.pop %v1415
        %v1417 = vadd.f32 %v1416, 1.0
        %v1418 = vmul.f32 %v1413, %v1417
        %1419 = vst.msk [vmem:[%s609] sm:$0xff] %vm813, %v1418
        %s1420 = sand.u32 %s321, 1
        %s1421 = scalar_lea.sflag [#allocation6], %s1420
        %s1422 = sand.u32 %s321, 1
        %s1423 = smul.addr %s1422, 8
        %s1424 = scalar_lea.vmem [#allocation24], %s1423
        // Predicated region
        $region121: #{tpu_custom_call.1} parent=67 // pred_check
          %p1425 = pneg %p331
        $region122: #{tpu_custom_call.1} parent=67 // pred_check_branch
          %1427 = sbr.rel (%p1425) target = $region124
        $region123: #{tpu_custom_call.1} parent=67 // pred_region
          %s1429 = ssub.s32 128, 128
          %1430 = vsyncadd %s1421, %s1429
          %s1431 = sadd.s32 %s42, %s41
          %s1432 = smul.addr %s1431, 128
          %s1433 = scalar_lea.hbm %s12, %s1432
          %s1435 = sshll.u32 %s1424, 4
          %s1436 = int_to_ptr.vmem [resolvable:$true] %s1435
          %1438 = dma.vmem_to_hbm [thread:$0]  %s1436, 128, %s1433, %s1421
        $region124: #{tpu_custom_call.1} parent=67 // pred_fallthru
          _
      $region68: #{tpu_custom_call.1} parent=5 // pred_fallthru
        _
      %p1439 = scmp.le.s32.totalorder 2, %s32
      // Predicated region
      $region125: #{tpu_custom_call.1} parent=5 // pred_check
        %p1440 = pneg %p1439
      $region126: #{tpu_custom_call.1} parent=5 // pred_check_branch
        %1442 = sbr.rel (%p1440) target = $region128
      $region127: #{tpu_custom_call.1} parent=5 // pred_region
        %s1443 = ssub.s32 %s32, 2
        // Predicated region
        $region129: #{tpu_custom_call.1} parent=127 // pred_check
          %p1444 = pneg %p337
        $region130: #{tpu_custom_call.1} parent=127 // pred_check_branch
          %1446 = sbr.rel (%p1444) target = $region132
        $region131: #{tpu_custom_call.1} parent=127 // pred_region
          %s1447 = sand.u32 %s322, 1
          %s1448 = scalar_lea.sflag [#allocation6], %s1447
          %s1449 = sand.u32 %s322, 1
          %s1450 = smul.addr %s1449, 8
          %s1451 = scalar_lea.vmem [#allocation24], %s1450
          %1452 = dma.done %s1448, 128
        $region132: #{tpu_custom_call.1} parent=127 // pred_fallthru
          _
      $region128: #{tpu_custom_call.1} parent=5 // pred_fallthru
        _
    $region6: #{tpu_custom_call.1} parent=1 // loop_footer
      %s36 = sadd.s32 1, %s32
    $region7: #{tpu_custom_call.1} parent=1 // loop_footer_branch
      %31 = sbr.rel target = $region3
    $region8: #{tpu_custom_call.1} parent=1 // loop_exit
      _
    %1453 = vsyncpa [#allocation5], 1
    %s1454 = scalar_lea.sflag [#allocation5], 1
    %1455 = vsyncpa %s1454, 1
    %1456 = vsyncpa [#allocation8], 1
    %s1457 = scalar_lea.sflag [#allocation8], 1
    %1458 = vsyncpa %s1457, 1
    %1459 = vsyncpa [#allocation11], 1
    %1460 = vsyncpa [#allocation14], 1
    %1461 = vsyncpa [#allocation17], 1
    %1462 = vsyncpa [#allocation20], 1
    %1463 = vsyncpa [#allocation23], 1
    %1464 = vsyncpa [#allocation6], 1
    %s1465 = scalar_lea.sflag [#allocation6], 1
    %1466 = vsyncpa %s1465, 1

// kernel: tpu_custom_call.1
$region0: #{tpu_custom_call.1}
  #allocation0 [shape = 'u32[]', space=smem, size = 0x4, offset = 0x4, fixed_abs, tag = 'smem constant byte address 0x4 - core index']
  #allocation1 [shape = 'u32[144,128]{1,0:T(1,128)}', space=vmem, size = 0x12000, scoped, tag = 'internal scratch']
  #allocation2 [shape = 'bf16[4,8,8]{2,1,0:T(8,128)(2,1)}', space=vmem, size = 0x2000, scoped, tag = 'scratch operand']
  #allocation3 [shape = 'bf16[4,8,8]{2,1,0:T(8,128)(2,1)}', space=vmem, size = 0x2000, scoped, tag = 'scratch operand']
  %s0 = inlined_call_operand.hbm [shape: f32[2,8,32], index: 0, kind: input, shape index: {}]
  %s1 = inlined_call_operand.hbm [shape: f32[2,1,8], index: 1, kind: input, shape index: {}]
  %s2 = inlined_call_operand.hbm [shape: bf16[32,32], index: 2, kind: input, shape index: {}]
  %s3 = inlined_call_operand.hbm [shape: f32[1,32], index: 3, kind: input, shape index: {}]
  %s4 = inlined_call_operand.hbm [shape: bf16[32,32], index: 4, kind: input, shape index: {}]
  %s5 = inlined_call_operand.hbm [shape: f32[1,32], index: 5, kind: input, shape index: {}]
  %s6 = inlined_call_operand.hbm [shape: bf16[32,32], index: 6, kind: input, shape index: {}]
  %s7 = inlined_call_operand.hbm [shape: f32[1,32], index: 7, kind: input, shape index: {}]
  %s8 = inlined_call_operand.hbm [shape: bf16[32,32], index: 8, kind: input, shape index: {}]
  %s9 = inlined_call_operand.hbm [shape: f32[1,32], index: 9, kind: input, shape index: {}]
  %s10 = inlined_call_operand.hbm [shape: f32[1,32], index: 10, kind: input, shape index: {}]
  %s11 = inlined_call_operand.hbm [shape: f32[1,32], index: 11, kind: input, shape index: {}]
  %s12 = inlined_call_operand.hbm [shape: f32[2,8,32], index: 12, kind: output, shape index: {}]
  %s13 = sld [smem:[#allocation0]]
  $region133: #{tpu_custom_call.1} parent=0
    _
  %s15 = ssub.s32 1, %s13
  %s16 = scalar_select 0, %s15, %s13
  $region1: #{tpu_custom_call.1} parent=0
    #allocation4 [shape = 'u8[8192]{0}', space=vmem, size = 0x2000, scoped, tag = 'input window, operand 0']
    #allocation5 [shape = 's32[2]{0}', space=sflag, size = 0x8, scoped, tag = 'scoped memory for tpu_custom_call.1']
    #allocation6 [shape = 's32[2]{0}', space=sflag, size = 0x8, scoped, tag = 'scoped memory for tpu_custom_call.1']
    #allocation7 [shape = 'u8[1024]{0}', space=vmem, size = 0x400, scoped, tag = 'input window, operand 1']
    #allocation8 [shape = 's32[2]{0}', space=sflag, size = 0x8, scoped, tag = 'scoped memory for tpu_custom_call.1']
    #allocation9 [shape = 'u8[8192]{0}', space=vmem, size = 0x2000, scoped, tag = 'input window, operand 2, single buffered']
    #allocation10 [shape = 'u8[512]{0}', space=vmem, size = 0x400, scoped, tag = 'input window, operand 3, single buffered']
    #allocation11 [shape = 's32[1]{0}', space=sflag, size = 0x4, scoped, tag = 'scoped memory for tpu_custom_call.1']
    #allocation12 [shape = 'u8[8192]{0}', space=vmem, size = 0x2000, scoped, tag = 'input window, operand 4, single buffered']
    #allocation13 [shape = 'u8[512]{0}', space=vmem, size = 0x400, scoped, tag = 'input window, operand 5, single buffered']
    #allocation14 [shape = 's32[1]{0}', space=sflag, size = 0x4, scoped, tag = 'scoped memory for tpu_custom_call.1']
    #allocation15 [shape = 'u8[8192]{0}', space=vmem, size = 0x2000, scoped, tag = 'input window, operand 6, single buffered']
    #allocation16 [shape = 'u8[512]{0}', space=vmem, size = 0x400, scoped, tag = 'input window, operand 7, single buffered']
    #allocation17 [shape = 's32[1]{0}', space=sflag, size = 0x4, scoped, tag = 'scoped memory for tpu_custom_call.1']
    #allocation18 [shape = 'u8[8192]{0}', space=vmem, size = 0x2000, scoped, tag = 'input window, operand 8, single buffered']
    #allocation19 [shape = 'u8[512]{0}', space=vmem, size = 0x400, scoped, tag = 'input window, operand 9, single buffered']
    #allocation20 [shape = 's32[1]{0}', space=sflag, size = 0x4, scoped, tag = 'scoped memory for tpu_custom_call.1']
    #allocation21 [shape = 'u8[512]{0}', space=vmem, size = 0x400, scoped, tag = 'input window, operand 10, single buffered']
    #allocation22 [shape = 'u8[512]{0}', space=vmem, size = 0x400, scoped, tag = 'input window, operand 11, single buffered']
    #allocation23 [shape = 's32[1]{0}', space=sflag, size = 0x4, scoped, tag = 'scoped memory for tpu_custom_call.1']
    #allocation24 [shape = 'u8[8192]{0}', space=vmem, size = 0x2000, scoped, tag = 'output window, operand 0']
    %17 = vsyncpa [#allocation5], 0
    %s18 = scalar_lea.sflag [#allocation5], 1
    %19 = vsyncpa %s18, 0
    %20 = vsyncpa [#allocation8], 0
    %s21 = scalar_lea.sflag [#allocation8], 1
    %22 = vsyncpa %s21, 0
    %23 = vsyncpa [#allocation11], 0
    %24 = vsyncpa [#allocation14], 0
    %25 = vsyncpa [#allocation17], 0
    %26 = vsyncpa [#allocation20], 0
    %27 = vsyncpa [#allocation23], 0
    %28 = vsyncpa [#allocation6], 0
    %s29 = scalar_lea.sflag [#allocation6], 1
    %30 = vsyncpa %s29, 0
    loop: start=0, step=1, limit=4
    $region2: #{tpu_custom_call.1} parent=1 // loop_pre_header
      _
    $region3: #{tpu_custom_call.1} parent=1 // loop_header
      %s32 = sphi 0, %s36
      %p33 = scmp.ge.s32.totalorder %s32, 4
      %s39 = sphi 0, %s51
      %s40 = sphi 0, %s47
      %s41 = sphi 0, %s39
      %s42 = sphi 0, %s40
      %s43 = sphi 0, %s41
      %s44 = sphi 0, %s42
      %s54 = sphi 0, %s56
      %s57 = sphi 0, %s54
      %s58 = sphi 0, %s57
      %s74 = sphi 0, %s58
      %s80 = sphi 0, %s82
      %s83 = sphi 0, %s80
      %s84 = sphi 0, %s83
      %s100 = sphi 0, %s84
      %s104 = sphi 0, %s104
      %s106 = sphi 0, %s104
      %s107 = sphi 0, %s106
      %s121 = sphi 0, %s107
      %s125 = sphi 0, %s125
      %s127 = sphi 0, %s125
      %s128 = sphi 0, %s127
      %s142 = sphi 0, %s128
      %s146 = sphi 0, %s146
      %s148 = sphi 0, %s146
      %s149 = sphi 0, %s148
      %s163 = sphi 0, %s149
      %s167 = sphi 0, %s167
      %s169 = sphi 0, %s167
      %s170 = sphi 0, %s169
      %s184 = sphi 0, %s170
      %s188 = sphi 0, %s188
      %s190 = sphi 0, %s188
      %s191 = sphi 0, %s190
      %s205 = sphi 0, %s191
      %s209 = sphi 0, %s209
      %s211 = sphi 0, %s209
      %s212 = sphi 0, %s211
      %s226 = sphi 0, %s212
      %s230 = sphi 0, %s230
      %s232 = sphi 0, %s230
      %s233 = sphi 0, %s232
      %s247 = sphi 0, %s233
      %s251 = sphi 0, %s251
      %s253 = sphi 0, %s251
      %s254 = sphi 0, %s253
      %s268 = sphi 0, %s254
      %s272 = sphi 0, %s272
      %s274 = sphi 0, %s272
      %s275 = sphi 0, %s274
      %s289 = sphi 0, %s275
      %s293 = sphi 0, %s293
      %s295 = sphi 0, %s293
      %s296 = sphi 0, %s295
      %s310 = sphi 0, %s296
      %s318 = sphi 0, %s320
      %s321 = sphi 0, %s318
      %s322 = sphi 0, %s321
      %s338 = sphi 0, %s322
    $region4: #{tpu_custom_call.1} parent=1 // loop_header_branch
      %35 = sbr.rel (%p33) target = $region8
    $region5: #{tpu_custom_call.1} parent=1 // loop_body
      %s37 = ssub.s32 %s32, 1
      %s38 = ssub.s32 %s32, 2
      %s45 = sadd.s32 1, %s40
      %p46 = scmp.ge.s32.totalorder %s45, 1
      %s47 = scalar_select %p46, 0, %s45
      %s48 = sadd.s32 1, %s39
      %s49 = scalar_select %p46, %s48, %s39
      %p50 = scmp.ge.s32.totalorder %s49, 2
      %s51 = scalar_select %p50, 0, %s49
      %s52 = ssub.s32 %s39, %s51
      %p53 = scmp.eq.s32.totalorder %s52, 0
      %s55 = sadd.s32 %s54, 1
      %s56 = scalar_select %p53, %s54, %s55
      %p59 = pneg %p53
      %p60 = scmp.eq.s32.totalorder %s32, 1
      %p61 = por %p59, %p60
      %p62 = scmp.ne.s32.totalorder %s54, %s57
      %p63 = scmp.eq.s32.totalorder %s32, 0
      %p64 = por %p62, %p63
      %p65 = scmp.ne.s32.totalorder %s54, %s57
      %p66 = scmp.eq.s32.totalorder %s37, 1
      %p67 = por %p65, %p66
      %p68 = scmp.ne.s32.totalorder %s57, %s58
      %p69 = scmp.eq.s32.totalorder %s37, 0
      %p70 = por %p68, %p69
      %p71 = scmp.ne.s32.totalorder %s57, %s58
      %p72 = scmp.eq.s32.totalorder %s38, 1
      %p73 = por %p71, %p72
      %p75 = scmp.ne.s32.totalorder %s58, %s74
      %p76 = scmp.eq.s32.totalorder %s38, 0
      %p77 = por %p75, %p76
      %s78 = ssub.s32 %s39, %s51
      %p79 = scmp.eq.s32.totalorder %s78, 0
      %s81 = sadd.s32 %s80, 1
      %s82 = scalar_select %p79, %s80, %s81
      %p85 = pneg %p79
      %p86 = scmp.eq.s32.totalorder %s32, 1
      %p87 = por %p85, %p86
      %p88 = scmp.ne.s32.totalorder %s80, %s83
      %p89 = scmp.eq.s32.totalorder %s32, 0
      %p90 = por %p88, %p89
      %p91 = scmp.ne.s32.totalorder %s80, %s83
      %p92 = scmp.eq.s32.totalorder %s37, 1
      %p93 = por %p91, %p92
      %p94 = scmp.ne.s32.totalorder %s83, %s84
      %p95 = scmp.eq.s32.totalorder %s37, 0
      %p96 = por %p94, %p95
      %p97 = scmp.ne.s32.totalorder %s83, %s84
      %p98 = scmp.eq.s32.totalorder %s38, 1
      %p99 = por %p97, %p98
      %p101 = scmp.ne.s32.totalorder %s84, %s100
      %p102 = scmp.eq.s32.totalorder %s38, 0
      %p103 = por %p101, %p102
      %s105 = sadd.s32 %s104, 1
      %p108 = scmp.eq.s32.totalorder %s32, 1
      %p109 = scmp.ne.s32.totalorder %s104, %s106
      %p110 = scmp.eq.s32.totalorder %s32, 0
      %p111 = por %p109, %p110
      %p112 = scmp.ne.s32.totalorder %s104, %s106
      %p113 = scmp.eq.s32.totalorder %s37, 1
      %p114 = por %p112, %p113
      %p115 = scmp.ne.s32.totalorder %s106, %s107
      %p116 = scmp.eq.s32.totalorder %s37, 0
      %p117 = por %p115, %p116
      %p118 = scmp.ne.s32.totalorder %s106, %s107
      %p119 = scmp.eq.s32.totalorder %s38, 1
      %p120 = por %p118, %p119
      %p122 = scmp.ne.s32.totalorder %s107, %s121
      %p123 = scmp.eq.s32.totalorder %s38, 0
      %p124 = por %p122, %p123
      %s126 = sadd.s32 %s125, 1
      %p129 = scmp.eq.s32.totalorder %s32, 1
      %p130 = scmp.ne.s32.totalorder %s125, %s127
      %p131 = scmp.eq.s32.totalorder %s32, 0
      %p132 = por %p130, %p131
      %p133 = scmp.ne.s32.totalorder %s125, %s127
      %p134 = scmp.eq.s32.totalorder %s37, 1
      %p135 = por %p133, %p134
      %p136 = scmp.ne.s32.totalorder %s127, %s128
      %p137 = scmp.eq.s32.totalorder %s37, 0
      %p138 = por %p136, %p137
      %p139 = scmp.ne.s32.totalorder %s127, %s128
      %p140 = scmp.eq.s32.totalorder %s38, 1
      %p141 = por %p139, %p140
      %p143 = scmp.ne.s32.totalorder %s128, %s142
      %p144 = scmp.eq.s32.totalorder %s38, 0
      %p145 = por %p143, %p144
      %s147 = sadd.s32 %s146, 1
      %p150 = scmp.eq.s32.totalorder %s32, 1
      %p151 = scmp.ne.s32.totalorder %s146, %s148
      %p152 = scmp.eq.s32.totalorder %s32, 0
      %p153 = por %p151, %p152
      %p154 = scmp.ne.s32.totalorder %s146, %s148
      %p155 = scmp.eq.s32.totalorder %s37, 1
      %p156 = por %p154, %p155
      %p157 = scmp.ne.s32.totalorder %s148, %s149
      %p158 = scmp.eq.s32.totalorder %s37, 0
      %p159 = por %p157, %p158
      %p160 = scmp.ne.s32.totalorder %s148, %s149
      %p161 = scmp.eq.s32.totalorder %s38, 1
      %p162 = por %p160, %p161
      %p164 = scmp.ne.s32.totalorder %s149, %s163
      %p165 = scmp.eq.s32.totalorder %s38, 0
      %p166 = por %p164, %p165
      %s168 = sadd.s32 %s167, 1
      %p171 = scmp.eq.s32.totalorder %s32, 1
      %p172 = scmp.ne.s32.totalorder %s167, %s169
      %p173 = scmp.eq.s32.totalorder %s32, 0
      %p174 = por %p172, %p173
      %p175 = scmp.ne.s32.totalorder %s167, %s169
      %p176 = scmp.eq.s32.totalorder %s37, 1
      %p177 = por %p175, %p176
      %p178 = scmp.ne.s32.totalorder %s169, %s170
      %p179 = scmp.eq.s32.totalorder %s37, 0
      %p180 = por %p178, %p179
      %p181 = scmp.ne.s32.totalorder %s169, %s170
      %p182 = scmp.eq.s32.totalorder %s38, 1
      %p183 = por %p181, %p182
      %p185 = scmp.ne.s32.totalorder %s170, %s184
      %p186 = scmp.eq.s32.totalorder %s38, 0
      %p187 = por %p185, %p186
      %s189 = sadd.s32 %s188, 1
      %p192 = scmp.eq.s32.totalorder %s32, 1
      %p193 = scmp.ne.s32.totalorder %s188, %s190
      %p194 = scmp.eq.s32.totalorder %s32, 0
      %p195 = por %p193, %p194
      %p196 = scmp.ne.s32.totalorder %s188, %s190
      %p197 = scmp.eq.s32.totalorder %s37, 1
      %p198 = por %p196, %p197
      %p199 = scmp.ne.s32.totalorder %s190, %s191
      %p200 = scmp.eq.s32.totalorder %s37, 0
      %p201 = por %p199, %p200
      %p202 = scmp.ne.s32.totalorder %s190, %s191
      %p203 = scmp.eq.s32.totalorder %s38, 1
      %p204 = por %p202, %p203
      %p206 = scmp.ne.s32.totalorder %s191, %s205
      %p207 = scmp.eq.s32.totalorder %s38, 0
      %p208 = por %p206, %p207
      %s210 = sadd.s32 %s209, 1
      %p213 = scmp.eq.s32.totalorder %s32, 1
      %p214 = scmp.ne.s32.totalorder %s209, %s211
      %p215 = scmp.eq.s32.totalorder %s32, 0
      %p216 = por %p214, %p215
      %p217 = scmp.ne.s32.totalorder %s209, %s211
      %p218 = scmp.eq.s32.totalorder %s37, 1
      %p219 = por %p217, %p218
      %p220 = scmp.ne.s32.totalorder %s211, %s212
      %p221 = scmp.eq.s32.totalorder %s37, 0
      %p222 = por %p220, %p221
      %p223 = scmp.ne.s32.totalorder %s211, %s212
      %p224 = scmp.eq.s32.totalorder %s38, 1
      %p225 = por %p223, %p224
      %p227 = scmp.ne.s32.totalorder %s212, %s226
      %p228 = scmp.eq.s32.totalorder %s38, 0
      %p229 = por %p227, %p228
      %s231 = sadd.s32 %s230, 1
      %p234 = scmp.eq.s32.totalorder %s32, 1
      %p235 = scmp.ne.s32.totalorder %s230, %s232
      %p236 = scmp.eq.s32.totalorder %s32, 0
      %p237 = por %p235, %p236
      %p238 = scmp.ne.s32.totalorder %s230, %s232
      %p239 = scmp.eq.s32.totalorder %s37, 1
      %p240 = por %p238, %p239
      %p241 = scmp.ne.s32.totalorder %s232, %s233
      %p242 = scmp.eq.s32.totalorder %s37, 0
      %p243 = por %p241, %p242
      %p244 = scmp.ne.s32.totalorder %s232, %s233
      %p245 = scmp.eq.s32.totalorder %s38, 1
      %p246 = por %p244, %p245
      %p248 = scmp.ne.s32.totalorder %s233, %s247
      %p249 = scmp.eq.s32.totalorder %s38, 0
      %p250 = por %p248, %p249
      %s252 = sadd.s32 %s251, 1
      %p255 = scmp.eq.s32.totalorder %s32, 1
      %p256 = scmp.ne.s32.totalorder %s251, %s253
      %p257 = scmp.eq.s32.totalorder %s32, 0
      %p258 = por %p256, %p257
      %p259 = scmp.ne.s32.totalorder %s251, %s253
      %p260 = scmp.eq.s32.totalorder %s37, 1
      %p261 = por %p259, %p260
      %p262 = scmp.ne.s32.totalorder %s253, %s254
      %p263 = scmp.eq.s32.totalorder %s37, 0
      %p264 = por %p262, %p263
      %p265 = scmp.ne.s32.totalorder %s253, %s254
      %p266 = scmp.eq.s32.totalorder %s38, 1
      %p267 = por %p265, %p266
      %p269 = scmp.ne.s32.totalorder %s254, %s268
      %p270 = scmp.eq.s32.totalorder %s38, 0
      %p271 = por %p269, %p270
      %s273 = sadd.s32 %s272, 1
      %p276 = scmp.eq.s32.totalorder %s32, 1
      %p277 = scmp.ne.s32.totalorder %s272, %s274
      %p278 = scmp.eq.s32.totalorder %s32, 0
      %p279 = por %p277, %p278
      %p280 = scmp.ne.s32.totalorder %s272, %s274
      %p281 = scmp.eq.s32.totalorder %s37, 1
      %p282 = por %p280, %p281
      %p283 = scmp.ne.s32.totalorder %s274, %s275
      %p284 = scmp.eq.s32.totalorder %s37, 0
      %p285 = por %p283, %p284
      %p286 = scmp.ne.s32.totalorder %s274, %s275
      %p287 = scmp.eq.s32.totalorder %s38, 1
      %p288 = por %p286, %p287
      %p290 = scmp.ne.s32.totalorder %s275, %s289
      %p291 = scmp.eq.s32.totalorder %s38, 0
      %p292 = por %p290, %p291
      %s294 = sadd.s32 %s293, 1
      %p297 = scmp.eq.s32.totalorder %s32, 1
      %p298 = scmp.ne.s32.totalorder %s293, %s295
      %p299 = scmp.eq.s32.totalorder %s32, 0
      %p300 = por %p298, %p299
      %p301 = scmp.ne.s32.totalorder %s293, %s295
      %p302 = scmp.eq.s32.totalorder %s37, 1
      %p303 = por %p301, %p302
      %p304 = scmp.ne.s32.totalorder %s295, %s296
      %p305 = scmp.eq.s32.totalorder %s37, 0
      %p306 = por %p304, %p305
      %p307 = scmp.ne.s32.totalorder %s295, %s296
      %p308 = scmp.eq.s32.totalorder %s38, 1
      %p309 = por %p307, %p308
      %p311 = scmp.ne.s32.totalorder %s296, %s310
      %p312 = scmp.eq.s32.totalorder %s38, 0
      %p313 = por %p311, %p312
      %s314 = ssub.s32 %s39, %s51
      %s315 = ssub.s32 %s40, %s47
      %s316 = sor.u32 %s314, %s315
      %p317 = scmp.eq.s32.totalorder %s316, 0
      %s319 = sadd.s32 %s318, 1
      %s320 = scalar_select %p317, %s318, %s319
      %p323 = pneg %p317
      %p324 = scmp.eq.s32.totalorder %s32, 1
      %p325 = por %p323, %p324
      %p326 = scmp.ne.s32.totalorder %s318, %s321
      %p327 = scmp.eq.s32.totalorder %s32, 0
      %p328 = por %p326, %p327
      %p329 = scmp.ne.s32.totalorder %s318, %s321
      %p330 = scmp.eq.s32.totalorder %s37, 1
      %p331 = por %p329, %p330
      %p332 = scmp.ne.s32.totalorder %s321, %s322
      %p333 = scmp.eq.s32.totalorder %s37, 0
      %p334 = por %p332, %p333
      %p335 = scmp.ne.s32.totalorder %s321, %s322
      %p336 = scmp.eq.s32.totalorder %s38, 1
      %p337 = por %p335, %p336
      %p339 = scmp.ne.s32.totalorder %s322, %s338
      %p340 = scmp.eq.s32.totalorder %s38, 0
      %p341 = por %p339, %p340
      %p342 = scmp.le.s32.totalorder 1, %s32
      %p343 = scmp.lt.s32.totalorder %s32, 3
      %p344 = pnand %p342, %p343
      %p345 = pneg %p344
      // Predicated region
      $region9: #{tpu_custom_call.1} parent=5 // pred_check
        _
      $region10: #{tpu_custom_call.1} parent=5 // pred_check_branch
        %347 = sbr.rel (%p344) target = $region12
      $region11: #{tpu_custom_call.1} parent=5 // pred_region
        %s348 = ssub.s32 %s32, 1
        // Predicated region
        $region13: #{tpu_custom_call.1} parent=11 // pred_check
          %p349 = pneg %p117
        $region14: #{tpu_custom_call.1} parent=11 // pred_check_branch
          %351 = sbr.rel (%p349) target = $region16
        $region15: #{tpu_custom_call.1} parent=11 // pred_region
          %s353 = ssub.s32 256, 256
          %354 = vsyncadd [#allocation8], %s353
          %s355 = sshll.u32 [#allocation9], 4
          %s356 = int_to_ptr.vmem [resolvable:$true] %s355
          %361 = dma.hbm_to_vmem [thread:$0]  %s2, 256, %s356, [#allocation8], 64, 64, 4
        $region16: #{tpu_custom_call.1} parent=11 // pred_fallthru
          _
        // Predicated region
        $region17: #{tpu_custom_call.1} parent=11 // pred_check
          %p362 = pneg %p138
        $region18: #{tpu_custom_call.1} parent=11 // pred_check_branch
          %364 = sbr.rel (%p362) target = $region20
        $region19: #{tpu_custom_call.1} parent=11 // pred_region
          %s366 = ssub.s32 16, 16
          %367 = vsyncadd [#allocation11], %s366
          %s369 = sshll.u32 [#allocation10], 4
          %s370 = int_to_ptr.vmem [resolvable:$true] %s369
          %372 = dma.hbm_to_vmem [thread:$0]  %s3, 16, %s370, [#allocation11]
        $region20: #{tpu_custom_call.1} parent=11 // pred_fallthru
          _
        // Predicated region
        $region21: #{tpu_custom_call.1} parent=11 // pred_check
          %p373 = pneg %p159
        $region22: #{tpu_custom_call.1} parent=11 // pred_check_branch
          %375 = sbr.rel (%p373) target = $region24
        $region23: #{tpu_custom_call.1} parent=11 // pred_region
          %s377 = ssub.s32 256, 256
          %378 = vsyncadd [#allocation11], %s377
          %s379 = sshll.u32 [#allocation12], 4
          %s380 = int_to_ptr.vmem [resolvable:$true] %s379
          %385 = dma.hbm_to_vmem [thread:$0]  %s4, 256, %s380, [#allocation11], 64, 64, 4
        $region24: #{tpu_custom_call.1} parent=11 // pred_fallthru
          _
        // Predicated region
        $region25: #{tpu_custom_call.1} parent=11 // pred_check
          %p386 = pneg %p180
        $region26: #{tpu_custom_call.1} parent=11 // pred_check_branch
          %388 = sbr.rel (%p386) target = $region28
        $region27: #{tpu_custom_call.1} parent=11 // pred_region
          %s390 = ssub.s32 16, 16
          %391 = vsyncadd [#allocation14], %s390
          %s393 = sshll.u32 [#allocation13], 4
          %s394 = int_to_ptr.vmem [resolvable:$true] %s393
          %396 = dma.hbm_to_vmem [thread:$0]  %s5, 16, %s394, [#allocation14]
        $region28: #{tpu_custom_call.1} parent=11 // pred_fallthru
          _
        // Predicated region
        $region29: #{tpu_custom_call.1} parent=11 // pred_check
          %p397 = pneg %p201
        $region30: #{tpu_custom_call.1} parent=11 // pred_check_branch
          %399 = sbr.rel (%p397) target = $region32
        $region31: #{tpu_custom_call.1} parent=11 // pred_region
          %s401 = ssub.s32 256, 256
          %402 = vsyncadd [#allocation14], %s401
          %s403 = sshll.u32 [#allocation15], 4
          %s404 = int_to_ptr.vmem [resolvable:$true] %s403
          %409 = dma.hbm_to_vmem [thread:$0]  %s6, 256, %s404, [#allocation14], 64, 64, 4
        $region32: #{tpu_custom_call.1} parent=11 // pred_fallthru
          _
        // Predicated region
        $region33: #{tpu_custom_call.1} parent=11 // pred_check
          %p410 = pneg %p222
        $region34: #{tpu_custom_call.1} parent=11 // pred_check_branch
          %412 = sbr.rel (%p410) target = $region36
        $region35: #{tpu_custom_call.1} parent=11 // pred_region
          %s414 = ssub.s32 16, 16
          %415 = vsyncadd [#allocation17], %s414
          %s417 = sshll.u32 [#allocation16], 4
          %s418 = int_to_ptr.vmem [resolvable:$true] %s417
          %420 = dma.hbm_to_vmem [thread:$0]  %s7, 16, %s418, [#allocation17]
        $region36: #{tpu_custom_call.1} parent=11 // pred_fallthru
          _
        // Predicated region
        $region37: #{tpu_custom_call.1} parent=11 // pred_check
          %p421 = pneg %p243
        $region38: #{tpu_custom_call.1} parent=11 // pred_check_branch
          %423 = sbr.rel (%p421) target = $region40
        $region39: #{tpu_custom_call.1} parent=11 // pred_region
          %s425 = ssub.s32 256, 256
          %426 = vsyncadd [#allocation17], %s425
          %s427 = sshll.u32 [#allocation18], 4
          %s428 = int_to_ptr.vmem [resolvable:$true] %s427
          %433 = dma.hbm_to_vmem [thread:$0]  %s8, 256, %s428, [#allocation17], 64, 64, 4
        $region40: #{tpu_custom_call.1} parent=11 // pred_fallthru
          _
        // Predicated region
        $region41: #{tpu_custom_call.1} parent=11 // pred_check
          %p434 = pneg %p264
        $region42: #{tpu_custom_call.1} parent=11 // pred_check_branch
          %436 = sbr.rel (%p434) target = $region44
        $region43: #{tpu_custom_call.1} parent=11 // pred_region
          %s438 = ssub.s32 16, 16
          %439 = vsyncadd [#allocation20], %s438
          %s441 = sshll.u32 [#allocation19], 4
          %s442 = int_to_ptr.vmem [resolvable:$true] %s441
          %444 = dma.hbm_to_vmem [thread:$0]  %s9, 16, %s442, [#allocation20]
        $region44: #{tpu_custom_call.1} parent=11 // pred_fallthru
          _
        // Predicated region
        $region45: #{tpu_custom_call.1} parent=11 // pred_check
          %p445 = pneg %p285
        $region46: #{tpu_custom_call.1} parent=11 // pred_check_branch
          %447 = sbr.rel (%p445) target = $region48
        $region47: #{tpu_custom_call.1} parent=11 // pred_region
          %s449 = ssub.s32 16, 16
          %450 = vsyncadd [#allocation20], %s449
          %s452 = sshll.u32 [#allocation21], 4
          %s453 = int_to_ptr.vmem [resolvable:$true] %s452
          %455 = dma.hbm_to_vmem [thread:$0]  %s10, 16, %s453, [#allocation20]
        $region48: #{tpu_custom_call.1} parent=11 // pred_fallthru
          _
        // Predicated region
        $region49: #{tpu_custom_call.1} parent=11 // pred_check
          %p456 = pneg %p306
        $region50: #{tpu_custom_call.1} parent=11 // pred_check_branch
          %458 = sbr.rel (%p456) target = $region52
        $region51: #{tpu_custom_call.1} parent=11 // pred_region
          %s460 = ssub.s32 16, 16
          %461 = vsyncadd [#allocation23], %s460
          %s463 = sshll.u32 [#allocation22], 4
          %s464 = int_to_ptr.vmem [resolvable:$true] %s463
          %466 = dma.hbm_to_vmem [thread:$0]  %s11, 16, %s464, [#allocation23]
        $region52: #{tpu_custom_call.1} parent=11 // pred_fallthru
          _
      $region12: #{tpu_custom_call.1} parent=5 // pred_fallthru
        _
      %p467 = scmp.lt.s32.totalorder %s32, 2
      // Predicated region
      $region53: #{tpu_custom_call.1} parent=5 // pred_check
        %p468 = pneg %p467
      $region54: #{tpu_custom_call.1} parent=5 // pred_check_branch
        %470 = sbr.rel (%p468) target = $region56
      $region55: #{tpu_custom_call.1} parent=5 // pred_region
        // Predicated region
        $region57: #{tpu_custom_call.1} parent=55 // pred_check
          %p471 = pneg %p64
        $region58: #{tpu_custom_call.1} parent=55 // pred_check_branch
          %473 = sbr.rel (%p471) target = $region60
        $region59: #{tpu_custom_call.1} parent=55 // pred_region
          %s474 = sand.u32 %s54, 1
          %s475 = scalar_lea.sflag [#allocation5], %s474
          %s476 = sand.u32 %s54, 1
          %s477 = smul.addr %s476, 8
          %s478 = scalar_lea.vmem [#allocation4], %s477
          %s480 = ssub.s32 128, 128
          %481 = vsyncadd %s475, %s480
          %s482 = smul.addr %s39, 128
          %s483 = scalar_lea.hbm %s0, %s482
          %s485 = sshll.u32 %s478, 4
          %s486 = int_to_ptr.vmem [resolvable:$true] %s485
          %488 = dma.hbm_to_vmem [thread:$0]  %s483, 128, %s486, %s475
        $region60: #{tpu_custom_call.1} parent=55 // pred_fallthru
          _
        // Predicated region
        $region61: #{tpu_custom_call.1} parent=55 // pred_check
          %p489 = pneg %p90
        $region62: #{tpu_custom_call.1} parent=55 // pred_check_branch
          %491 = sbr.rel (%p489) target = $region64
        $region63: #{tpu_custom_call.1} parent=55 // pred_region
          %s492 = sand.u32 %s32, 1
          %s493 = scalar_lea.sflag [#allocation8], %s492
          %s494 = sand.u32 %s80, 1
          %s495 = scalar_lea.vmem [#allocation7], %s494
          %s497 = ssub.s32 16, 16
          %498 = vsyncadd %s493, %s497
          %s499 = smul.addr %s39, 16
          %s500 = scalar_lea.hbm %s1, %s499
          %s502 = sshll.u32 %s495, 4
          %s503 = int_to_ptr.vmem [resolvable:$true] %s502
          %505 = dma.hbm_to_vmem [thread:$0]  %s500, 16, %s503, %s493
        $region64: #{tpu_custom_call.1} parent=55 // pred_fallthru
          _
      $region56: #{tpu_custom_call.1} parent=5 // pred_fallthru
        _
      %p506 = scmp.le.s32.totalorder 1, %s32
      %p507 = scmp.lt.s32.totalorder %s32, 3
      %p508 = pnand %p506, %p507
      %p509 = pneg %p508
      // Predicated region
      $region65: #{tpu_custom_call.1} parent=5 // pred_check
        _
      $region66: #{tpu_custom_call.1} parent=5 // pred_check_branch
        %511 = sbr.rel (%p508) target = $region68
      $region67: #{tpu_custom_call.1} parent=5 // pred_region
        %s512 = ssub.s32 %s32, 1
        %s513 = sand.u32 %s57, 1
        %s514 = scalar_lea.sflag [#allocation5], %s513
        %s515 = sand.u32 %s57, 1
        %s516 = smul.addr %s515, 8
        %s517 = scalar_lea.vmem [#allocation4], %s516
        // Predicated region
        $region69: #{tpu_custom_call.1} parent=67 // pred_check
          %p518 = pneg %p70
        $region70: #{tpu_custom_call.1} parent=67 // pred_check_branch
          %520 = sbr.rel (%p518) target = $region72
        $region71: #{tpu_custom_call.1} parent=67 // pred_region
          %521 = dma.done %s514, 128
        $region72: #{tpu_custom_call.1} parent=67 // pred_fallthru
          _
        %s522 = sand.u32 %s37, 1
        %s523 = scalar_lea.sflag [#allocation8], %s522
        %s524 = sand.u32 %s83, 1
        %s525 = scalar_lea.vmem [#allocation7], %s524
        // Predicated region
        $region73: #{tpu_custom_call.1} parent=67 // pred_check
          %p526 = pneg %p96
        $region74: #{tpu_custom_call.1} parent=67 // pred_check_branch
          %528 = sbr.rel (%p526) target = $region76
        $region75: #{tpu_custom_call.1} parent=67 // pred_region
          %529 = dma.done %s523, 16
        $region76: #{tpu_custom_call.1} parent=67 // pred_fallthru
          _
        // Predicated region
        $region77: #{tpu_custom_call.1} parent=67 // pred_check
          %p530 = pneg %p117
        $region78: #{tpu_custom_call.1} parent=67 // pred_check_branch
          %532 = sbr.rel (%p530) target = $region80
        $region79: #{tpu_custom_call.1} parent=67 // pred_region
          %533 = dma.done [#allocation8], 256
        $region80: #{tpu_custom_call.1} parent=67 // pred_fallthru
          _
        // Predicated region
        $region81: #{tpu_custom_call.1} parent=67 // pred_check
          %p534 = pneg %p138
        $region82: #{tpu_custom_call.1} parent=67 // pred_check_branch
          %536 = sbr.rel (%p534) target = $region84
        $region83: #{tpu_custom_call.1} parent=67 // pred_region
          %537 = dma.done [#allocation11], 16
        $region84: #{tpu_custom_call.1} parent=67 // pred_fallthru
          _
        // Predicated region
        $region85: #{tpu_custom_call.1} parent=67 // pred_check
          %p538 = pneg %p159
        $region86: #{tpu_custom_call.1} parent=67 // pred_check_branch
          %540 = sbr.rel (%p538) target = $region88
        $region87: #{tpu_custom_call.1} parent=67 // pred_region
          %541 = dma.done [#allocation11], 256
        $region88: #{tpu_custom_call.1} parent=67 // pred_fallthru
          _
        // Predicated region
        $region89: #{tpu_custom_call.1} parent=67 // pred_check
          %p542 = pneg %p180
        $region90: #{tpu_custom_call.1} parent=67 // pred_check_branch
          %544 = sbr.rel (%p542) target = $region92
        $region91: #{tpu_custom_call.1} parent=67 // pred_region
          %545 = dma.done [#allocation14], 16
        $region92: #{tpu_custom_call.1} parent=67 // pred_fallthru
          _
        // Predicated region
        $region93: #{tpu_custom_call.1} parent=67 // pred_check
          %p546 = pneg %p201
        $region94: #{tpu_custom_call.1} parent=67 // pred_check_branch
          %548 = sbr.rel (%p546) target = $region96
        $region95: #{tpu_custom_call.1} parent=67 // pred_region
          %549 = dma.done [#allocation14], 256
        $region96: #{tpu_custom_call.1} parent=67 // pred_fallthru
          _
        // Predicated region
        $region97: #{tpu_custom_call.1} parent=67 // pred_check
          %p550 = pneg %p222
        $region98: #{tpu_custom_call.1} parent=67 // pred_check_branch
          %552 = sbr.rel (%p550) target = $region100
        $region99: #{tpu_custom_call.1} parent=67 // pred_region
          %553 = dma.done [#allocation17], 16
        $region100: #{tpu_custom_call.1} parent=67 // pred_fallthru
          _
        // Predicated region
        $region101: #{tpu_custom_call.1} parent=67 // pred_check
          %p554 = pneg %p243
        $region102: #{tpu_custom_call.1} parent=67 // pred_check_branch
          %556 = sbr.rel (%p554) target = $region104
        $region103: #{tpu_custom_call.1} parent=67 // pred_region
          %557 = dma.done [#allocation17], 256
        $region104: #{tpu_custom_call.1} parent=67 // pred_fallthru
          _
        // Predicated region
        $region105: #{tpu_custom_call.1} parent=67 // pred_check
          %p558 = pneg %p264
        $region106: #{tpu_custom_call.1} parent=67 // pred_check_branch
          %560 = sbr.rel (%p558) target = $region108
        $region107: #{tpu_custom_call.1} parent=67 // pred_region
          %561 = dma.done [#allocation20], 16
        $region108: #{tpu_custom_call.1} parent=67 // pred_fallthru
          _
        // Predicated region
        $region109: #{tpu_custom_call.1} parent=67 // pred_check
          %p562 = pneg %p285
        $region110: #{tpu_custom_call.1} parent=67 // pred_check_branch
          %564 = sbr.rel (%p562) target = $region112
        $region111: #{tpu_custom_call.1} parent=67 // pred_region
          %565 = dma.done [#allocation20], 16
        $region112: #{tpu_custom_call.1} parent=67 // pred_fallthru
          _
        // Predicated region
        $region113: #{tpu_custom_call.1} parent=67 // pred_check
          %p566 = pneg %p306
        $region114: #{tpu_custom_call.1} parent=67 // pred_check_branch
          %568 = sbr.rel (%p566) target = $region116
        $region115: #{tpu_custom_call.1} parent=67 // pred_region
          %569 = dma.done [#allocation23], 16
        $region116: #{tpu_custom_call.1} parent=67 // pred_fallthru
          _
        %s570 = sand.u32 %s57, 1
        %s571 = scalar_lea.sflag [#allocation5], %s570
        %s572 = sand.u32 %s57, 1
        %s573 = smul.addr %s572, 8
        %s574 = scalar_lea.vmem [#allocation4], %s573
        %p575 = pneg %p70
        %p576 = pneg %p67
        %s577 = sand.u32 %s37, 1
        %s578 = scalar_lea.sflag [#allocation8], %s577
        %s579 = sand.u32 %s83, 1
        %s580 = scalar_lea.vmem [#allocation7], %s579
        %p581 = pneg %p96
        %p582 = pneg %p93
        %p583 = pneg %p117
        %p584 = pneg %p114
        %p585 = pneg %p138
        %p586 = pneg %p135
        %p587 = pneg %p159
        %p588 = pneg %p156
        %p589 = pneg %p180
        %p590 = pneg %p177
        %p591 = pneg %p201
        %p592 = pneg %p198
        %p593 = pneg %p222
        %p594 = pneg %p219
        %p595 = pneg %p243
        %p596 = pneg %p240
        %p597 = pneg %p264
        %p598 = pneg %p261
        %p599 = pneg %p285
        %p600 = pneg %p282
        %p601 = pneg %p306
        %p602 = pneg %p303
        %p603 = pneg %p334
        %p604 = pneg %p331
        %s605 = sand.u32 %s321, 1
        %s606 = scalar_lea.sflag [#allocation6], %s605
        %s607 = sand.u32 %s321, 1
        %s608 = smul.addr %s607, 8
        %s609 = scalar_lea.vmem [#allocation24], %s608
        %p611 = scmp.eq.s32.totalorder %s42, 0
        // Predicated region
        $region117: #{tpu_custom_call.1} parent=67 // pred_check
          %p612 = pneg %p611
        $region118: #{tpu_custom_call.1} parent=67 // pred_check_branch
          %614 = sbr.rel (%p612) target = $region120
        $region119: #{tpu_custom_call.1} parent=67 // pred_region
          %v615 = vld [vmem:[%s517] sm:$0xff]
          %v616 = vpack.c.bf16 %v615, %v615
          %v617 = vld [vmem:[#allocation12] sm:$0xf]
          %v618 = vld [vmem:[#allocation12 + $0x4] sm:$0xf]
          %v619 = vld [vmem:[#allocation12 + $0x8] sm:$0xf]
          %v620 = vld [vmem:[#allocation12 + $0xc] sm:$0xf]
          %v621 = vld [vmem:[#allocation13] sm:$0x1]
          %v623 = vlaneseq
          %v624 = vshrl.u32 %v623, 7
          %v625 = vsub.s32 0, %v624
          %v626 = vrot.slane %v621, %v625
          %v632 = vunpack.c.l.b16 %v617
          %v633 = vunpack.c.l.b16 %v618
          %v634 = vunpack.c.l.b16 %v619
          %v635 = vunpack.c.l.b16 %v620
          %v636 = vpack.c.b16 %v633, %v632
          %v637 = vpack.c.b16 %v635, %v634
          %vm640 = vcmask 261120
          %v642 = vsel %vm640, %v616, 0
          %644 = vmatprep.subr.bf16.mxu0 0
          %645 = vmatpush1.bf16.msra.mxu0 %v636
          %646 = vmatprep.subr.bf16.mxu0 0
          %647 = vmatpush1.bf16.msra.mxu0 %v637
          %648 = vmatprep.subr.bf16.mxu0 0
          %649 = vmatpush1.bf16.msra.mxu0 0
          %650 = vmatprep.subr.bf16.mxu0 0
          %651 = vmatpush1.bf16.msra.mxu0 0
          %652 = vmatprep.subr.bf16.mxu0 0
          %653 = vmatpush1.bf16.msra.mxu0 0
          %654 = vmatprep.subr.bf16.mxu0 0
          %655 = vmatpush1.bf16.msra.mxu0 0
          %656 = vmatprep.subr.bf16.mxu0 0
          %657 = vmatpush1.bf16.msra.mxu0 0
          %658 = vmatprep.subr.bf16.mxu0 0
          %659 = vmatpush1.bf16.msra.mxu0 0
          %660 = vmatprep.subr.bf16.mxu0 0
          %661 = vmatpush1.bf16.msra.mxu0 0
          %662 = vmatprep.subr.bf16.mxu0 0
          %663 = vmatpush1.bf16.msra.mxu0 0
          %664 = vmatprep.subr.bf16.mxu0 0
          %665 = vmatpush1.bf16.msra.mxu0 0
          %666 = vmatprep.subr.bf16.mxu0 0
          %667 = vmatpush1.bf16.msra.mxu0 0
          %668 = vmatprep.subr.bf16.mxu0 0
          %669 = vmatpush1.bf16.msra.mxu0 0
          %670 = vmatprep.subr.bf16.mxu0 0
          %671 = vmatpush1.bf16.msra.mxu0 0
          %672 = vmatprep.subr.bf16.mxu0 0
          %673 = vmatpush1.bf16.msra.mxu0 0
          %674 = vmatprep.subr.bf16.mxu0 0
          %675 = vmatpush1.bf16.msra.mxu0 0
          %676 = vmatprep.mubr.bf16.mxu0 0
          %677 = vmatmul.mubr.bf16.gmra.mrb[0].mxu0 %v642
          %v678 = vpop.f32.mrb[0].mxu0
          %v679 = vadd.f32 %v626, %v678
          %v680 = vpop.f32.mrb[0].mxu0
          %v681 = vpop.f32.mrb[0].mxu0
          %v682 = vpop.f32.mrb[0].mxu0
          %683 = vdwg.mxu0
          %v684 = vld [vmem:[#allocation15] sm:$0xf]
          %v685 = vld [vmem:[#allocation15 + $0x4] sm:$0xf]
          %v686 = vld [vmem:[#allocation15 + $0x8] sm:$0xf]
          %v687 = vld [vmem:[#allocation15 + $0xc] sm:$0xf]
          %v688 = vld [vmem:[#allocation16] sm:$0x1]
          %v690 = vlaneseq
          %v691 = vshrl.u32 %v690, 7
          %v692 = vsub.s32 0, %v691
          %v693 = vrot.slane %v688, %v692
          %v699 = vunpack.c.l.b16 %v684
          %v700 = vunpack.c.l.b16 %v685
          %v701 = vunpack.c.l.b16 %v686
          %v702 = vunpack.c.l.b16 %v687
          %v703 = vpack.c.b16 %v700, %v699
          %v704 = vpack.c.b16 %v702, %v701
          %707 = vmatprep.subr.bf16.mxu0 0
          %708 = vmatpush1.bf16.msra.mxu0 %v703
          %709 = vmatprep.subr.bf16.mxu0 0
          %710 = vmatpush1.bf16.msra.mxu0 %v704
          %711 = vmatprep.subr.bf16.mxu0 0
          %712 = vmatpush1.bf16.msra.mxu0 0
          %713 = vmatprep.subr.bf16.mxu0 0
          %714 = vmatpush1.bf16.msra.mxu0 0
          %715 = vmatprep.subr.bf16.mxu0 0
          %716 = vmatpush1.bf16.msra.mxu0 0
          %717 = vmatprep.subr.bf16.mxu0 0
          %718 = vmatpush1.bf16.msra.mxu0 0
          %719 = vmatprep.subr.bf16.mxu0 0
          %720 = vmatpush1.bf16.msra.mxu0 0
          %721 = vmatprep.subr.bf16.mxu0 0
          %722 = vmatpush1.bf16.msra.mxu0 0
          %723 = vmatprep.subr.bf16.mxu0 0
          %724 = vmatpush1.bf16.msra.mxu0 0
          %725 = vmatprep.subr.bf16.mxu0 0
          %726 = vmatpush1.bf16.msra.mxu0 0
          %727 = vmatprep.subr.bf16.mxu0 0
          %728 = vmatpush1.bf16.msra.mxu0 0
          %729 = vmatprep.subr.bf16.mxu0 0
          %730 = vmatpush1.bf16.msra.mxu0 0
          %731 = vmatprep.subr.bf16.mxu0 0
          %732 = vmatpush1.bf16.msra.mxu0 0
          %733 = vmatprep.subr.bf16.mxu0 0
          %734 = vmatpush1.bf16.msra.mxu0 0
          %735 = vmatprep.subr.bf16.mxu0 0
          %736 = vmatpush1.bf16.msra.mxu0 0
          %737 = vmatprep.subr.bf16.mxu0 0
          %738 = vmatpush1.bf16.msra.mxu0 0
          %739 = vmatprep.mubr.bf16.mxu0 0
          %740 = vmatmul.mubr.bf16.gmra.mrb[0].mxu0 %v642
          %v741 = vpop.f32.mrb[0].mxu0
          %v742 = vadd.f32 %v693, %v741
          %v743 = vpop.f32.mrb[0].mxu0
          %v744 = vpop.f32.mrb[0].mxu0
          %v745 = vpop.f32.mrb[0].mxu0
          %746 = vdwg.mxu0
          %v747 = vpack.c.bf16 %v679, %v679
          %v748 = vpack.c.bf16 %v742, %v742
          %vm749 = vcmask 60416
          %750 = vst.msk [vmem:[#allocation2] sm:$0xf] %vm749, %v747
          %751 = vst.msk [vmem:[#allocation3] sm:$0xf] %vm749, %v748
          %v753 = vunpack.c.l.b16 %v747
          %v754 = vpack.c.b16 %v753, %v753
          %755 = vrot.lane.b32.xlu0 %v754, 120
          %v756 = vpop.permute.xlu0 %755
          %s758 = scalar_lea.vmem [#allocation2], 4
          %759 = vst.msk [vmem:[%s758] sm:$0xf] %vm749, %v756
          %v761 = vunpack.c.l.b16 %v748
          %v762 = vpack.c.b16 %v761, %v761
          %763 = vrot.lane.b32.xlu0 %v762, 120
          %v764 = vpop.permute.xlu0 %763
          %s766 = scalar_lea.vmem [#allocation3], 4
          %767 = vst.msk [vmem:[%s766] sm:$0xf] %vm749, %v764
          %768 = vrot.lane.b32.xlu0 %v754, 112
          %v769 = vpop.permute.xlu0 %768
          %s771 = scalar_lea.vmem [#allocation2], 8
          %772 = vst.msk [vmem:[%s771] sm:$0xf] %vm749, %v769
          %773 = vrot.lane.b32.xlu0 %v762, 112
          %v774 = vpop.permute.xlu0 %773
          %s776 = scalar_lea.vmem [#allocation3], 8
          %777 = vst.msk [vmem:[%s776] sm:$0xf] %vm749, %v774
          %778 = vrot.lane.b32.xlu0 %v754, 104
          %v779 = vpop.permute.xlu0 %778
          %s781 = scalar_lea.vmem [#allocation2], 12
          %782 = vst.msk [vmem:[%s781] sm:$0xf] %vm749, %v779
          %783 = vrot.lane.b32.xlu0 %v762, 104
          %v784 = vpop.permute.xlu0 %783
          %s786 = scalar_lea.vmem [#allocation3], 12
          %787 = vst.msk [vmem:[%s786] sm:$0xf] %vm749, %v784
        $region120: #{tpu_custom_call.1} parent=67 // pred_fallthru
          _
        %v788 = vld [vmem:[%s517] sm:$0xff]
        %v789 = vpack.c.bf16 %v788, %v788
        %v790 = vld [vmem:[#allocation9] sm:$0xf]
        %v791 = vld [vmem:[#allocation9 + $0x4] sm:$0xf]
        %v792 = vld [vmem:[#allocation9 + $0x8] sm:$0xf]
        %v793 = vld [vmem:[#allocation9 + $0xc] sm:$0xf]
        %v794 = vld [vmem:[#allocation10] sm:$0x1]
        %v796 = vlaneseq
        %v797 = vshrl.u32 %v796, 7
        %v798 = vsub.s32 0, %v797
        %v799 = vrot.slane %v794, %v798
        %v805 = vunpack.c.l.b16 %v790
        %v806 = vunpack.c.l.b16 %v791
        %v807 = vunpack.c.l.b16 %v792
        %v808 = vunpack.c.l.b16 %v793
        %v809 = vpack.c.b16 %v806, %v805
        %v810 = vpack.c.b16 %v808, %v807
        %vm813 = vcmask 261120
        %v815 = vsel %vm813, %v789, 0
        %817 = vmatprep.subr.bf16.mxu0 0
        %818 = vmatpush1.bf16.msra.mxu0 %v809
        %819 = vmatprep.subr.bf16.mxu0 0
        %820 = vmatpush1.bf16.msra.mxu0 %v810
        %821 = vmatprep.subr.bf16.mxu0 0
        %822 = vmatpush1.bf16.msra.mxu0 0
        %823 = vmatprep.subr.bf16.mxu0 0
        %824 = vmatpush1.bf16.msra.mxu0 0
        %825 = vmatprep.subr.bf16.mxu0 0
        %826 = vmatpush1.bf16.msra.mxu0 0
        %827 = vmatprep.subr.bf16.mxu0 0
        %828 = vmatpush1.bf16.msra.mxu0 0
        %829 = vmatprep.subr.bf16.mxu0 0
        %830 = vmatpush1.bf16.msra.mxu0 0
        %831 = vmatprep.subr.bf16.mxu0 0
        %832 = vmatpush1.bf16.msra.mxu0 0
        %833 = vmatprep.subr.bf16.mxu0 0
        %834 = vmatpush1.bf16.msra.mxu0 0
        %835 = vmatprep.subr.bf16.mxu0 0
        %836 = vmatpush1.bf16.msra.mxu0 0
        %837 = vmatprep.subr.bf16.mxu0 0
        %838 = vmatpush1.bf16.msra.mxu0 0
        %839 = vmatprep.subr.bf16.mxu0 0
        %840 = vmatpush1.bf16.msra.mxu0 0
        %841 = vmatprep.subr.bf16.mxu0 0
        %842 = vmatpush1.bf16.msra.mxu0 0
        %843 = vmatprep.subr.bf16.mxu0 0
        %844 = vmatpush1.bf16.msra.mxu0 0
        %845 = vmatprep.subr.bf16.mxu0 0
        %846 = vmatpush1.bf16.msra.mxu0 0
        %847 = vmatprep.subr.bf16.mxu0 0
        %848 = vmatpush1.bf16.msra.mxu0 0
        %849 = vmatprep.mubr.bf16.mxu0 0
        %850 = vmatmul.mubr.bf16.gmra.mrb[0].mxu0 %v815
        %v851 = vpop.f32.mrb[0].mxu0
        %v852 = vadd.f32 %v799, %v851
        %v853 = vpop.f32.mrb[0].mxu0
        %v854 = vpop.f32.mrb[0].mxu0
        %v855 = vpop.f32.mrb[0].mxu0
        %856 = vdwg.mxu0
        %v857 = vpack.c.bf16 %v852, %v852
        %859 = vrot.lane.b32.xlu0 %v857, 120
        %v860 = vpop.permute.xlu0 %859
        %861 = vrot.lane.b32.xlu0 %v857, 112
        %v862 = vpop.permute.xlu0 %861
        %863 = vrot.lane.b32.xlu0 %v857, 104
        %v864 = vpop.permute.xlu0 %863
        %v865 = vld [vmem:[#allocation2] sm:$0xf]
        %v866 = vld [vmem:[#allocation2 + $0x4] sm:$0xf]
        %v867 = vld [vmem:[#allocation2 + $0x8] sm:$0xf]
        %v868 = vld [vmem:[#allocation2 + $0xc] sm:$0xf]
        %v869 = vld [vmem:[#allocation3] sm:$0xf]
        %v870 = vld [vmem:[#allocation3 + $0x4] sm:$0xf]
        %v871 = vld [vmem:[#allocation3 + $0x8] sm:$0xf]
        %v872 = vld [vmem:[#allocation3 + $0xc] sm:$0xf]
        %v873 = vld [vmem:[%s525] sm:$0x1]
        %v875 = vlaneseq
        %v876 = vshrl.u32 %v875, 7
        %v877 = vsub.s32 0, %v876
        %v878 = vrot.slane %v873, %v877
        %vm880 = vcmask 64512
        %v882 = vsel %vm880, %v857, 0
        %v885 = vsel %vm880, %v865, 0
        %887 = vmatprep.subr.bf16.mxu0 0
        %888 = vmatpush1.bf16.xpose.msra.mxu0 %v885
        %889 = vmatprep.subr.bf16.mxu0 0
        %890 = vmatpush1.bf16.xpose.msra.mxu0 0
        %891 = vmatprep.subr.bf16.mxu0 0
        %892 = vmatpush1.bf16.xpose.msra.mxu0 0
        %893 = vmatprep.subr.bf16.mxu0 0
        %894 = vmatpush1.bf16.xpose.msra.mxu0 0
        %895 = vmatprep.subr.bf16.mxu0 0
        %896 = vmatpush1.bf16.xpose.msra.mxu0 0
        %897 = vmatprep.subr.bf16.mxu0 0
        %898 = vmatpush1.bf16.xpose.msra.mxu0 0
        %899 = vmatprep.subr.bf16.mxu0 0
        %900 = vmatpush1.bf16.xpose.msra.mxu0 0
        %901 = vmatprep.subr.bf16.mxu0 0
        %902 = vmatpush1.bf16.xpose.msra.mxu0 0
        %903 = vmatprep.subr.bf16.mxu0 0
        %904 = vmatpush1.bf16.xpose.msra.mxu0 0
        %905 = vmatprep.subr.bf16.mxu0 0
        %906 = vmatpush1.bf16.xpose.msra.mxu0 0
        %907 = vmatprep.subr.bf16.mxu0 0
        %908 = vmatpush1.bf16.xpose.msra.mxu0 0
        %909 = vmatprep.subr.bf16.mxu0 0
        %910 = vmatpush1.bf16.xpose.msra.mxu0 0
        %911 = vmatprep.subr.bf16.mxu0 0
        %912 = vmatpush1.bf16.xpose.msra.mxu0 0
        %913 = vmatprep.subr.bf16.mxu0 0
        %914 = vmatpush1.bf16.xpose.msra.mxu0 0
        %915 = vmatprep.subr.bf16.mxu0 0
        %916 = vmatpush1.bf16.xpose.msra.mxu0 0
        %917 = vmatprep.subr.bf16.mxu0 0
        %918 = vmatpush1.bf16.xpose.msra.mxu0 0
        %919 = vmatprep.mubr.bf16.mxu0 0
        %920 = vmatmul.mubr.bf16.gmra.mrb[0].mxu0 %v882
        %v921 = vpop.f32.mrb[0].mxu0
        %v922 = vadd.f32 %v878, %v921
        %v923 = vpop.f32.mrb[0].mxu0
        %v924 = vpop.f32.mrb[0].mxu0
        %v925 = vpop.f32.mrb[0].mxu0
        %926 = vdwg.mxu0
        %v928 = vsel %vm880, %v860, 0
        %v931 = vsel %vm880, %v866, 0
        %933 = vmatprep.subr.bf16.mxu0 0
        %934 = vmatpush1.bf16.xpose.msra.mxu0 %v931
        %935 = vmatprep.subr.bf16.mxu0 0
        %936 = vmatpush1.bf16.xpose.msra.mxu0 0
        %937 = vmatprep.subr.bf16.mxu0 0
        %938 = vmatpush1.bf16.xpose.msra.mxu0 0
        %939 = vmatprep.subr.bf16.mxu0 0
        %940 = vmatpush1.bf16.xpose.msra.mxu0 0
        %941 = vmatprep.subr.bf16.mxu0 0
        %942 = vmatpush1.bf16.xpose.msra.mxu0 0
        %943 = vmatprep.subr.bf16.mxu0 0
        %944 = vmatpush1.bf16.xpose.msra.mxu0 0
        %945 = vmatprep.subr.bf16.mxu0 0
        %946 = vmatpush1.bf16.xpose.msra.mxu0 0
        %947 = vmatprep.subr.bf16.mxu0 0
        %948 = vmatpush1.bf16.xpose.msra.mxu0 0
        %949 = vmatprep.subr.bf16.mxu0 0
        %950 = vmatpush1.bf16.xpose.msra.mxu0 0
        %951 = vmatprep.subr.bf16.mxu0 0
        %952 = vmatpush1.bf16.xpose.msra.mxu0 0
        %953 = vmatprep.subr.bf16.mxu0 0
        %954 = vmatpush1.bf16.xpose.msra.mxu0 0
        %955 = vmatprep.subr.bf16.mxu0 0
        %956 = vmatpush1.bf16.xpose.msra.mxu0 0
        %957 = vmatprep.subr.bf16.mxu0 0
        %958 = vmatpush1.bf16.xpose.msra.mxu0 0
        %959 = vmatprep.subr.bf16.mxu0 0
        %960 = vmatpush1.bf16.xpose.msra.mxu0 0
        %961 = vmatprep.subr.bf16.mxu0 0
        %962 = vmatpush1.bf16.xpose.msra.mxu0 0
        %963 = vmatprep.subr.bf16.mxu0 0
        %964 = vmatpush1.bf16.xpose.msra.mxu0 0
        %965 = vmatprep.mubr.bf16.mxu0 0
        %966 = vmatmul.mubr.bf16.gmra.mrb[0].mxu0 %v928
        %v967 = vpop.f32.mrb[0].mxu0
        %v968 = vadd.f32 %v878, %v967
        %v969 = vpop.f32.mrb[0].mxu0
        %v970 = vpop.f32.mrb[0].mxu0
        %v971 = vpop.f32.mrb[0].mxu0
        %972 = vdwg.mxu0
        %v974 = vsel %vm880, %v862, 0
        %v977 = vsel %vm880, %v867, 0
        %979 = vmatprep.subr.bf16.mxu0 0
        %980 = vmatpush1.bf16.xpose.msra.mxu0 %v977
        %981 = vmatprep.subr.bf16.mxu0 0
        %982 = vmatpush1.bf16.xpose.msra.mxu0 0
        %983 = vmatprep.subr.bf16.mxu0 0
        %984 = vmatpush1.bf16.xpose.msra.mxu0 0
        %985 = vmatprep.subr.bf16.mxu0 0
        %986 = vmatpush1.bf16.xpose.msra.mxu0 0
        %987 = vmatprep.subr.bf16.mxu0 0
        %988 = vmatpush1.bf16.xpose.msra.mxu0 0
        %989 = vmatprep.subr.bf16.mxu0 0
        %990 = vmatpush1.bf16.xpose.msra.mxu0 0
        %991 = vmatprep.subr.bf16.mxu0 0
        %992 = vmatpush1.bf16.xpose.msra.mxu0 0
        %993 = vmatprep.subr.bf16.mxu0 0
        %994 = vmatpush1.bf16.xpose.msra.mxu0 0
        %995 = vmatprep.subr.bf16.mxu0 0
        %996 = vmatpush1.bf16.xpose.msra.mxu0 0
        %997 = vmatprep.subr.bf16.mxu0 0
        %998 = vmatpush1.bf16.xpose.msra.mxu0 0
        %999 = vmatprep.subr.bf16.mxu0 0
        %1000 = vmatpush1.bf16.xpose.msra.mxu0 0
        %1001 = vmatprep.subr.bf16.mxu0 0
        %1002 = vmatpush1.bf16.xpose.msra.mxu0 0
        %1003 = vmatprep.subr.bf16.mxu0 0
        %1004 = vmatpush1.bf16.xpose.msra.mxu0 0
        %1005 = vmatprep.subr.bf16.mxu0 0
        %1006 = vmatpush1.bf16.xpose.msra.mxu0 0
        %1007 = vmatprep.subr.bf16.mxu0 0
        %1008 = vmatpush1.bf16.xpose.msra.mxu0 0
        %1009 = vmatprep.subr.bf16.mxu0 0
        %1010 = vmatpush1.bf16.xpose.msra.mxu0 0
        %1011 = vmatprep.mubr.bf16.mxu0 0
        %1012 = vmatmul.mubr.bf16.gmra.mrb[0].mxu0 %v974
        %v1013 = vpop.f32.mrb[0].mxu0
        %v1014 = vadd.f32 %v878, %v1013
        %v1015 = vpop.f32.mrb[0].mxu0
        %v1016 = vpop.f32.mrb[0].mxu0
        %v1017 = vpop.f32.mrb[0].mxu0
        %1018 = vdwg.mxu0
        %v1020 = vsel %vm880, %v864, 0
        %v1023 = vsel %vm880, %v868, 0
        %1025 = vmatprep.subr.bf16.mxu0 0
        %1026 = vmatpush1.bf16.xpose.msra.mxu0 %v1023
        %1027 = vmatprep.subr.bf16.mxu0 0
        %1028 = vmatpush1.bf16.xpose.msra.mxu0 0
        %1029 = vmatprep.subr.bf16.mxu0 0
        %1030 = vmatpush1.bf16.xpose.msra.mxu0 0
        %1031 = vmatprep.subr.bf16.mxu0 0
        %1032 = vmatpush1.bf16.xpose.msra.mxu0 0
        %1033 = vmatprep.subr.bf16.mxu0 0
        %1034 = vmatpush1.bf16.xpose.msra.mxu0 0
        %1035 = vmatprep.subr.bf16.mxu0 0
        %1036 = vmatpush1.bf16.xpose.msra.mxu0 0
        %1037 = vmatprep.subr.bf16.mxu0 0
        %1038 = vmatpush1.bf16.xpose.msra.mxu0 0
        %1039 = vmatprep.subr.bf16.mxu0 0
        %1040 = vmatpush1.bf16.xpose.msra.mxu0 0
        %1041 = vmatprep.subr.bf16.mxu0 0
        %1042 = vmatpush1.bf16.xpose.msra.mxu0 0
        %1043 = vmatprep.subr.bf16.mxu0 0
        %1044 = vmatpush1.bf16.xpose.msra.mxu0 0
        %1045 = vmatprep.subr.bf16.mxu0 0
        %1046 = vmatpush1.bf16.xpose.msra.mxu0 0
        %1047 = vmatprep.subr.bf16.mxu0 0
        %1048 = vmatpush1.bf16.xpose.msra.mxu0 0
        %1049 = vmatprep.subr.bf16.mxu0 0
        %1050 = vmatpush1.bf16.xpose.msra.mxu0 0
        %1051 = vmatprep.subr.bf16.mxu0 0
        %1052 = vmatpush1.bf16.xpose.msra.mxu0 0
        %1053 = vmatprep.subr.bf16.mxu0 0
        %1054 = vmatpush1.bf16.xpose.msra.mxu0 0
        %1055 = vmatprep.subr.bf16.mxu0 0
        %1056 = vmatpush1.bf16.xpose.msra.mxu0 0
        %1057 = vmatprep.mubr.bf16.mxu0 0
        %1058 = vmatmul.mubr.bf16.gmra.mrb[0].mxu0 %v1020
        %v1059 = vpop.f32.mrb[0].mxu0
        %v1060 = vadd.f32 %v878, %v1059
        %v1061 = vpop.f32.mrb[0].mxu0
        %v1062 = vpop.f32.mrb[0].mxu0
        %v1063 = vpop.f32.mrb[0].mxu0
        %1064 = vdwg.mxu0
        %v1065 = vsel %vm880, %v922, -inf
        %1066 = vmax.xlane.f32.xlu0 %v1065
        %v1067 = vpop.xlane.xlu0 %1066
        %v1068 = vsel %vm880, %v968, -inf
        %1069 = vmax.xlane.f32.xlu0 %v1068
        %v1070 = vpop.xlane.xlu0 %1069
        %v1071 = vsel %vm880, %v1014, -inf
        %1072 = vmax.xlane.f32.xlu0 %v1071
        %v1073 = vpop.xlane.xlu0 %1072
        %v1074 = vsel %vm880, %v1060, -inf
        %1075 = vmax.xlane.f32.xlu0 %v1074
        %v1076 = vpop.xlane.xlu0 %1075
        %v1077 = vsub.f32 %v922, %v1067
        %v1078 = vsub.f32 %v968, %v1070
        %v1079 = vsub.f32 %v1014, %v1073
        %v1080 = vsub.f32 %v1060, %v1076
        %v1081 = vmul.f32 %v1077, 1.442695
        %v1082 = vpow.pop %v1081
        %v1083 = vmul.f32 %v1078, 1.442695
        %v1084 = vpow.pop %v1083
        %v1085 = vmul.f32 %v1079, 1.442695
        %v1086 = vpow.pop %v1085
        %v1087 = vmul.f32 %v1080, 1.442695
        %v1088 = vpow.pop %v1087
        %v1089 = vsel %vm880, %v1082, 0.0
        %1090 = vadd.xlane.f32.xlu0 %v1089
        %v1091 = vpop.xlane.xlu0 %1090
        %v1092 = vsel %vm880, %v1084, 0.0
        %1093 = vadd.xlane.f32.xlu0 %v1092
        %v1094 = vpop.xlane.xlu0 %1093
        %v1095 = vsel %vm880, %v1086, 0.0
        %1096 = vadd.xlane.f32.xlu0 %v1095
        %v1097 = vpop.xlane.xlu0 %1096
        %v1098 = vsel %vm880, %v1088, 0.0
        %1099 = vadd.xlane.f32.xlu0 %v1098
        %v1100 = vpop.xlane.xlu0 %1099
        %v1101 = vrcp.pop %v1091
        %v1102 = vrcp.pop %v1094
        %v1103 = vrcp.pop %v1097
        %v1104 = vrcp.pop %v1100
        %v1105 = vmul.f32 %v1082, %v1101
        %v1106 = vmul.f32 %v1084, %v1102
        %v1107 = vmul.f32 %v1086, %v1103
        %v1108 = vmul.f32 %v1088, %v1104
        %v1109 = vpack.c.bf16 %v1105, %v1105
        %v1110 = vpack.c.bf16 %v1106, %v1106
        %v1111 = vpack.c.bf16 %v1107, %v1107
        %v1112 = vpack.c.bf16 %v1108, %v1108
        %v1114 = vsel %vm880, %v1109, 0
        %vm1116 = vcmask 1043456
        %v1118 = vsel %vm1116, %v869, 0
        %1120 = vmatprep.subr.bf16.mxu0 0
        %1121 = vmatpush1.bf16.msra.mxu0 %v1118
        %1122 = vmatprep.subr.bf16.mxu0 0
        %1123 = vmatpush1.bf16.msra.mxu0 0
        %1124 = vmatprep.subr.bf16.mxu0 0
        %1125 = vmatpush1.bf16.msra.mxu0 0
        %1126 = vmatprep.subr.bf16.mxu0 0
        %1127 = vmatpush1.bf16.msra.mxu0 0
        %1128 = vmatprep.subr.bf16.mxu0 0
        %1129 = vmatpush1.bf16.msra.mxu0 0
        %1130 = vmatprep.subr.bf16.mxu0 0
        %1131 = vmatpush1.bf16.msra.mxu0 0
        %1132 = vmatprep.subr.bf16.mxu0 0
        %1133 = vmatpush1.bf16.msra.mxu0 0
        %1134 = vmatprep.subr.bf16.mxu0 0
        %1135 = vmatpush1.bf16.msra.mxu0 0
        %1136 = vmatprep.subr.bf16.mxu0 0
        %1137 = vmatpush1.bf16.msra.mxu0 0
        %1138 = vmatprep.subr.bf16.mxu0 0
        %1139 = vmatpush1.bf16.msra.mxu0 0
        %1140 = vmatprep.subr.bf16.mxu0 0
        %1141 = vmatpush1.bf16.msra.mxu0 0
        %1142 = vmatprep.subr.bf16.mxu0 0
        %1143 = vmatpush1.bf16.msra.mxu0 0
        %1144 = vmatprep.subr.bf16.mxu0 0
        %1145 = vmatpush1.bf16.msra.mxu0 0
        %1146 = vmatprep.subr.bf16.mxu0 0
        %1147 = vmatpush1.bf16.msra.mxu0 0
        %1148 = vmatprep.subr.bf16.mxu0 0
        %1149 = vmatpush1.bf16.msra.mxu0 0
        %1150 = vmatprep.subr.bf16.mxu0 0
        %1151 = vmatpush1.bf16.msra.mxu0 0
        %1152 = vmatprep.mubr.bf16.mxu0 0
        %1153 = vmatmul.mubr.bf16.gmra.mrb[0].mxu0 %v1114
        %v1154 = vpop.f32.mrb[0].mxu0
        %v1155 = vadd.f32 0.0, %v1154
        %v1156 = vpop.f32.mrb[0].mxu0
        %v1157 = vpop.f32.mrb[0].mxu0
        %v1158 = vpop.f32.mrb[0].mxu0
        %1159 = vdwg.mxu0
        %v1161 = vsel %vm880, %v1110, 0
        %v1164 = vsel %vm1116, %v870, 0
        %1166 = vmatprep.subr.bf16.mxu0 0
        %1167 = vmatpush1.bf16.msra.mxu0 %v1164
        %1168 = vmatprep.subr.bf16.mxu0 0
        %1169 = vmatpush1.bf16.msra.mxu0 0
        %1170 = vmatprep.subr.bf16.mxu0 0
        %1171 = vmatpush1.bf16.msra.mxu0 0
        %1172 = vmatprep.subr.bf16.mxu0 0
        %1173 = vmatpush1.bf16.msra.mxu0 0
        %1174 = vmatprep.subr.bf16.mxu0 0
        %1175 = vmatpush1.bf16.msra.mxu0 0
        %1176 = vmatprep.subr.bf16.mxu0 0
        %1177 = vmatpush1.bf16.msra.mxu0 0
        %1178 = vmatprep.subr.bf16.mxu0 0
        %1179 = vmatpush1.bf16.msra.mxu0 0
        %1180 = vmatprep.subr.bf16.mxu0 0
        %1181 = vmatpush1.bf16.msra.mxu0 0
        %1182 = vmatprep.subr.bf16.mxu0 0
        %1183 = vmatpush1.bf16.msra.mxu0 0
        %1184 = vmatprep.subr.bf16.mxu0 0
        %1185 = vmatpush1.bf16.msra.mxu0 0
        %1186 = vmatprep.subr.bf16.mxu0 0
        %1187 = vmatpush1.bf16.msra.mxu0 0
        %1188 = vmatprep.subr.bf16.mxu0 0
        %1189 = vmatpush1.bf16.msra.mxu0 0
        %1190 = vmatprep.subr.bf16.mxu0 0
        %1191 = vmatpush1.bf16.msra.mxu0 0
        %1192 = vmatprep.subr.bf16.mxu0 0
        %1193 = vmatpush1.bf16.msra.mxu0 0
        %1194 = vmatprep.subr.bf16.mxu0 0
        %1195 = vmatpush1.bf16.msra.mxu0 0
        %1196 = vmatprep.subr.bf16.mxu0 0
        %1197 = vmatpush1.bf16.msra.mxu0 0
        %1198 = vmatprep.mubr.bf16.mxu0 0
        %1199 = vmatmul.mubr.bf16.gmra.mrb[0].mxu0 %v1161
        %v1200 = vpop.f32.mrb[0].mxu0
        %v1201 = vadd.f32 0.0, %v1200
        %v1202 = vpop.f32.mrb[0].mxu0
        %v1203 = vpop.f32.mrb[0].mxu0
        %v1204 = vpop.f32.mrb[0].mxu0
        %1205 = vdwg.mxu0
        %v1207 = vsel %vm880, %v1111, 0
        %v1210 = vsel %vm1116, %v871, 0
        %1212 = vmatprep.subr.bf16.mxu0 0
        %1213 = vmatpush1.bf16.msra.mxu0 %v1210
        %1214 = vmatprep.subr.bf16.mxu0 0
        %1215 = vmatpush1.bf16.msra.mxu0 0
        %1216 = vmatprep.subr.bf16.mxu0 0
        %1217 = vmatpush1.bf16.msra.mxu0 0
        %1218 = vmatprep.subr.bf16.mxu0 0
        %1219 = vmatpush1.bf16.msra.mxu0 0
        %1220 = vmatprep.subr.bf16.mxu0 0
        %1221 = vmatpush1.bf16.msra.mxu0 0
        %1222 = vmatprep.subr.bf16.mxu0 0
        %1223 = vmatpush1.bf16.msra.mxu0 0
        %1224 = vmatprep.subr.bf16.mxu0 0
        %1225 = vmatpush1.bf16.msra.mxu0 0
        %1226 = vmatprep.subr.bf16.mxu0 0
        %1227 = vmatpush1.bf16.msra.mxu0 0
        %1228 = vmatprep.subr.bf16.mxu0 0
        %1229 = vmatpush1.bf16.msra.mxu0 0
        %1230 = vmatprep.subr.bf16.mxu0 0
        %1231 = vmatpush1.bf16.msra.mxu0 0
        %1232 = vmatprep.subr.bf16.mxu0 0
        %1233 = vmatpush1.bf16.msra.mxu0 0
        %1234 = vmatprep.subr.bf16.mxu0 0
        %1235 = vmatpush1.bf16.msra.mxu0 0
        %1236 = vmatprep.subr.bf16.mxu0 0
        %1237 = vmatpush1.bf16.msra.mxu0 0
        %1238 = vmatprep.subr.bf16.mxu0 0
        %1239 = vmatpush1.bf16.msra.mxu0 0
        %1240 = vmatprep.subr.bf16.mxu0 0
        %1241 = vmatpush1.bf16.msra.mxu0 0
        %1242 = vmatprep.subr.bf16.mxu0 0
        %1243 = vmatpush1.bf16.msra.mxu0 0
        %1244 = vmatprep.mubr.bf16.mxu0 0
        %1245 = vmatmul.mubr.bf16.gmra.mrb[0].mxu0 %v1207
        %v1246 = vpop.f32.mrb[0].mxu0
        %v1247 = vadd.f32 0.0, %v1246
        %v1248 = vpop.f32.mrb[0].mxu0
        %v1249 = vpop.f32.mrb[0].mxu0
        %v1250 = vpop.f32.mrb[0].mxu0
        %1251 = vdwg.mxu0
        %v1253 = vsel %vm880, %v1112, 0
        %v1256 = vsel %vm1116, %v872, 0
        %1258 = vmatprep.subr.bf16.mxu0 0
        %1259 = vmatpush1.bf16.msra.mxu0 %v1256
        %1260 = vmatprep.subr.bf16.mxu0 0
        %1261 = vmatpush1.bf16.msra.mxu0 0
        %1262 = vmatprep.subr.bf16.mxu0 0
        %1263 = vmatpush1.bf16.msra.mxu0 0
        %1264 = vmatprep.subr.bf16.mxu0 0
        %1265 = vmatpush1.bf16.msra.mxu0 0
        %1266 = vmatprep.subr.bf16.mxu0 0
        %1267 = vmatpush1.bf16.msra.mxu0 0
        %1268 = vmatprep.subr.bf16.mxu0 0
        %1269 = vmatpush1.bf16.msra.mxu0 0
        %1270 = vmatprep.subr.bf16.mxu0 0
        %1271 = vmatpush1.bf16.msra.mxu0 0
        %1272 = vmatprep.subr.bf16.mxu0 0
        %1273 = vmatpush1.bf16.msra.mxu0 0
        %1274 = vmatprep.subr.bf16.mxu0 0
        %1275 = vmatpush1.bf16.msra.mxu0 0
        %1276 = vmatprep.subr.bf16.mxu0 0
        %1277 = vmatpush1.bf16.msra.mxu0 0
        %1278 = vmatprep.subr.bf16.mxu0 0
        %1279 = vmatpush1.bf16.msra.mxu0 0
        %1280 = vmatprep.subr.bf16.mxu0 0
        %1281 = vmatpush1.bf16.msra.mxu0 0
        %1282 = vmatprep.subr.bf16.mxu0 0
        %1283 = vmatpush1.bf16.msra.mxu0 0
        %1284 = vmatprep.subr.bf16.mxu0 0
        %1285 = vmatpush1.bf16.msra.mxu0 0
        %1286 = vmatprep.subr.bf16.mxu0 0
        %1287 = vmatpush1.bf16.msra.mxu0 0
        %1288 = vmatprep.subr.bf16.mxu0 0
        %1289 = vmatpush1.bf16.msra.mxu0 0
        %1290 = vmatprep.mubr.bf16.mxu0 0
        %1291 = vmatmul.mubr.bf16.gmra.mrb[0].mxu0 %v1253
        %v1292 = vpop.f32.mrb[0].mxu0
        %v1293 = vadd.f32 0.0, %v1292
        %v1294 = vpop.f32.mrb[0].mxu0
        %v1295 = vpop.f32.mrb[0].mxu0
        %v1296 = vpop.f32.mrb[0].mxu0
        %1297 = vdwg.mxu0
        %1299 = vrot.lane.b32.xlu0 %v1201, 8
        %v1300 = vpop.permute.xlu0 %1299
        %1303 = vrot.lane.b32.xlu0 %v1247, 16
        %v1304 = vpop.permute.xlu0 %1303
        %1307 = vrot.lane.b32.xlu0 %v1293, 24
        %v1308 = vpop.permute.xlu0 %1307
        %v1310 = vsel %vm880, %v1155, %v1300
        %vm1311 = vcmask 130048
        %v1312 = vsel %vm1311, %v1310, %v1304
        %vm1313 = vcmask 195584
        %v1314 = vsel %vm1313, %v1312, %v1308
        %v1315 = vpack.c.bf16 %v1314, %v1314
        %v1316 = vld [vmem:[#allocation18] sm:$0xf]
        %v1317 = vld [vmem:[#allocation18 + $0x4] sm:$0xf]
        %v1318 = vld [vmem:[#allocation18 + $0x8] sm:$0xf]
        %v1319 = vld [vmem:[#allocation18 + $0xc] sm:$0xf]
        %v1320 = vld [vmem:[#allocation19] sm:$0x1]
        %v1322 = vlaneseq
        %v1323 = vshrl.u32 %v1322, 7
        %v1324 = vsub.s32 0, %v1323
        %v1325 = vrot.slane %v1320, %v1324
        %v1331 = vunpack.c.l.b16 %v1316
        %v1332 = vunpack.c.l.b16 %v1317
        %v1333 = vunpack.c.l.b16 %v1318
        %v1334 = vunpack.c.l.b16 %v1319
        %v1335 = vpack.c.b16 %v1332, %v1331
        %v1336 = vpack.c.b16 %v1334, %v1333
        %v1340 = vsel %vm813, %v1315, 0
        %1342 = vmatprep.subr.bf16.mxu0 0
        %1343 = vmatpush1.bf16.msra.mxu0 %v1335
        %1344 = vmatprep.subr.bf16.mxu0 0
        %1345 = vmatpush1.bf16.msra.mxu0 %v1336
        %1346 = vmatprep.subr.bf16.mxu0 0
        %1347 = vmatpush1.bf16.msra.mxu0 0
        %1348 = vmatprep.subr.bf16.mxu0 0
        %1349 = vmatpush1.bf16.msra.mxu0 0
        %1350 = vmatprep.subr.bf16.mxu0 0
        %1351 = vmatpush1.bf16.msra.mxu0 0
        %1352 = vmatprep.subr.bf16.mxu0 0
        %1353 = vmatpush1.bf16.msra.mxu0 0
        %1354 = vmatprep.subr.bf16.mxu0 0
        %1355 = vmatpush1.bf16.msra.mxu0 0
        %1356 = vmatprep.subr.bf16.mxu0 0
        %1357 = vmatpush1.bf16.msra.mxu0 0
        %1358 = vmatprep.subr.bf16.mxu0 0
        %1359 = vmatpush1.bf16.msra.mxu0 0
        %1360 = vmatprep.subr.bf16.mxu0 0
        %1361 = vmatpush1.bf16.msra.mxu0 0
        %1362 = vmatprep.subr.bf16.mxu0 0
        %1363 = vmatpush1.bf16.msra.mxu0 0
        %1364 = vmatprep.subr.bf16.mxu0 0
        %1365 = vmatpush1.bf16.msra.mxu0 0
        %1366 = vmatprep.subr.bf16.mxu0 0
        %1367 = vmatpush1.bf16.msra.mxu0 0
        %1368 = vmatprep.subr.bf16.mxu0 0
        %1369 = vmatpush1.bf16.msra.mxu0 0
        %1370 = vmatprep.subr.bf16.mxu0 0
        %1371 = vmatpush1.bf16.msra.mxu0 0
        %1372 = vmatprep.subr.bf16.mxu0 0
        %1373 = vmatpush1.bf16.msra.mxu0 0
        %1374 = vmatprep.mubr.bf16.mxu0 0
        %1375 = vmatmul.mubr.bf16.gmra.mrb[0].mxu0 %v1340
        %v1376 = vpop.f32.mrb[0].mxu0
        %v1377 = vadd.f32 %v1325, %v1376
        %v1378 = vpop.f32.mrb[0].mxu0
        %v1379 = vpop.f32.mrb[0].mxu0
        %v1380 = vpop.f32.mrb[0].mxu0
        %1381 = vdwg.mxu0
        %v1382 = vadd.f32 %v1377, %v788
        %v1383 = vsel %vm813, %v1382, 0.0
        %1384 = vadd.xlane.f32.xlu0 %v1383
        %v1385 = vpop.xlane.xlu0 %1384
        %v1386 = vrcp.pop 32.0
        %v1387 = vmul.f32 %v1385, %v1386
        %v1388 = vsub.f32 %v1382, %v1387
        %v1389 = vmul.f32 %v1388, %v1388
        %v1390 = vsel %vm813, %v1389, 0.0
        %1391 = vadd.xlane.f32.xlu0 %v1390
        %v1392 = vpop.xlane.xlu0 %1391
        %v1393 = vmul.f32 %v1392, %v1386
        %v1394 = vadd.f32 %v1393, 1e-12
        %v1395 = vrsqrt.pop %v1394
        %v1396 = vmul.f32 %v1388, %v1395
        %v1397 = vld [vmem:[#allocation21] sm:$0x1]
        %v1399 = vlaneseq
        %v1400 = vshrl.u32 %v1399, 7
        %v1401 = vsub.s32 0, %v1400
        %v1402 = vrot.slane %v1397, %v1401
        %v1404 = vmul.f32 %v1396, %v1402
        %v1405 = vld [vmem:[#allocation22] sm:$0x1]
        %v1407 = vlaneseq
        %v1408 = vshrl.u32 %v1407, 7
        %v1409 = vsub.s32 0, %v1408
        %v1410 = vrot.slane %v1405, %v1409
        %v1412 = vadd.f32 %v1404, %v1410
        %v1413 = vmul.f32 %v1412, 0.5
        %v1414 = vrcp.pop 1.4142135
        %v1415 = vmul.f32 %v1412, %v1414
        %v1416 = verf.f32.pop %v1415
        %v1417 = vadd.f32 %v1416, 1.0
        %v1418 = vmul.f32 %v1413, %v1417
        %1419 = vst.msk [vmem:[%s609] sm:$0xff] %vm813, %v1418
        %s1420 = sand.u32 %s321, 1
        %s1421 = scalar_lea.sflag [#allocation6], %s1420
        %s1422 = sand.u32 %s321, 1
        %s1423 = smul.addr %s1422, 8
        %s1424 = scalar_lea.vmem [#allocation24], %s1423
        // Predicated region
        $region121: #{tpu_custom_call.1} parent=67 // pred_check
          %p1425 = pneg %p331
        $region122: #{tpu_custom_call.1} parent=67 // pred_check_branch
          %1427 = sbr.rel (%p1425) target = $region124
        $region123: #{tpu_custom_call.1} parent=67 // pred_region
          %s1429 = ssub.s32 128, 128
          %1430 = vsyncadd %s1421, %s1429
          %s1431 = sadd.s32 %s42, %s41
          %s1432 = smul.addr %s1431, 128
          %s1433 = scalar_lea.hbm %s12, %s1432
          %s1435 = sshll.u32 %s1424, 4
          %s1436 = int_to_ptr.vmem [resolvable:$true] %s1435
          %1438 = dma.vmem_to_hbm [thread:$0]  %s1436, 128, %s1433, %s1421
        $region124: #{tpu_custom_call.1} parent=67 // pred_fallthru
          _
      $region68: #{tpu_custom_call.1} parent=5 // pred_fallthru
        _
      %p1439 = scmp.le.s32.totalorder 2, %s32
      // Predicated region
      $region125: #{tpu_custom_call.1} parent=5 // pred_check
        %p1440 = pneg %p1439
      $region126: #{tpu_custom_call.1} parent=5 // pred_check_branch
        %1442 = sbr.rel (%p1440) target = $region128
      $region127: #{tpu_custom_call.1} parent=5 // pred_region
        %s1443 = ssub.s32 %s32, 2
        // Predicated region
        $region129: #{tpu_custom_call.1} parent=127 // pred_check
          %p1444 = pneg %p337
        $region130: #{tpu_custom_call.1} parent=127 // pred_check_branch
          %1446 = sbr.rel (%p1444) target = $region132
        $region131: #{tpu_custom_call.1} parent=127 // pred_region
          %s1447 = sand.u32 %s322, 1
          %s1448 = scalar_lea.sflag [#allocation6], %s1447
          %s1449 = sand.u32 %s322, 1
          %s1450 = smul.addr %s1449, 8
          %s1451 = scalar_lea.vmem [#allocation24], %s1450
          %1452 = dma.done %s1448, 128
        $region132: #{tpu_custom_call.1} parent=127 // pred_fallthru
          _
      $region128: #{tpu_custom_call.1} parent=5 // pred_fallthru
        _
    $region6: #{tpu_custom_call.1} parent=1 // loop_footer
      %s36 = sadd.s32 1, %s32
    $region7: #{tpu_custom_call.1} parent=1 // loop_footer_branch
      %31 = sbr.rel target = $region3
    $region8: #{tpu_custom_call.1} parent=1 // loop_exit
      _
    %1453 = vsyncpa [#allocation5], 1
    %s1454 = scalar_lea.sflag [#allocation5], 1
    %1455 = vsyncpa %s1454, 1
    %1456 = vsyncpa [#allocation8], 1
    %s1457 = scalar_lea.sflag [#allocation8], 1
    %1458 = vsyncpa %s1457, 1
    %1459 = vsyncpa [#allocation11], 1
    %1460 = vsyncpa [#allocation14], 1
    %1461 = vsyncpa [#allocation17], 1
    %1462 = vsyncpa [#allocation20], 1
    %1463 = vsyncpa [#allocation23], 1
    %1464 = vsyncpa [#allocation6], 1
    %s1465 = scalar_lea.sflag [#allocation6], 1
    %1466 = vsyncpa %s1465, 1

</llo_original>
